<compile_context>
chip_gen: v5e
topology: v5e:2x2
jax: 0.10.0
libtpu: 0.0.40
codegen_flags: <defaults>
</compile_context>

<pallas_src>
import jax
import jax.numpy as jnp
from jax.experimental import pallas as pl
from jax.experimental.pallas import tpu as pltpu


# ----------------------------- fused Pallas kernel -------------------------- #

def _convnet_kernel(x_ref, w1_ref, b1_ref, w2_ref, b2_ref,
                    wf1_ref, bf1_ref, wf2_ref, bf2_ref, wf3_ref, bf3_ref,
                    o_ref):
    f32 = jnp.float32
    bf16 = jnp.bfloat16
    B = x_ref.shape[0]

    b1 = b1_ref[...]    # (1, 256) conv1 bias (even/odd column halves)
    b2 = b2_ref[...]    # (1, 256) conv2 bias
    bf1 = bf1_ref[...]  # (1, 120)
    bf2 = bf2_ref[...]  # (1, 90)
    bf3 = bf3_ref[...]  # (1, 10)

    def pool2x2(row_a, row_b):
        # row_a / row_b: conv outputs (already ReLU'd) for two vertically
        # adjacent output rows, shape (R, 256) f32.  Lanes [0:128) hold the
        # even output columns, lanes [128:256) the odd ones, so the 2x2 max
        # pool is a vertical elementwise max + an aligned half-lane max.
        v = jnp.maximum(row_a, row_b)
        return jnp.maximum(v[:, :128], v[:, 128:])          # (R, 128)

    for b in range(B):
        # ------------------- conv1 + ReLU + pool1 -------------------
        # X[t][s, :] = input image row (4*s + t), flattened over (width, Cin).
        X = [x_ref[b, t % 4, pl.ds(t // 4, 7), :].astype(bf16) for t in range(8)]
        conv1 = []
        for d in range(4):                      # conv1 output rows {4s + d}
            acc = jnp.dot(X[d], w1_ref[0], preferred_element_type=f32)
            for i in range(1, 5):
                acc = acc + jnp.dot(X[d + i], w1_ref[i],
                                    preferred_element_type=f32)
            conv1.append(jnp.maximum(acc + b1, 0.0))        # (7, 256)
        p1_even = pool2x2(conv1[0], conv1[1])   # pooled rows 2s   -> (7, 128)
        p1_odd = pool2x2(conv1[2], conv1[3])    # pooled rows 2s+1 -> (7, 128)

        # ------------------- conv2 + ReLU + pool2 -------------------
        # Y[t][k, :] = pool1 row (2*k + t), lanes = c_in*14 + col.
        Y = [(p1_even if t % 2 == 0 else p1_odd)[t // 2:t // 2 + 5, :].astype(bf16)
             for t in range(6)]
        conv2 = []
        for d in range(2):                      # conv2 output rows {2k + d}
            acc = jnp.dot(Y[d], w2_ref[0], preferred_element_type=f32)
            for i in range(1, 5):
                acc = acc + jnp.dot(Y[d + i], w2_ref[i],
                                    preferred_element_type=f32)
            conv2.append(jnp.maximum(acc + b2, 0.0))        # (5, 256)
        p2 = pool2x2(conv2[0], conv2[1])        # (5, 128), lanes = c2*5 + col

        # --------- fc1 + ReLU (torch flatten order folded into wf1) ---------
        acc = jnp.dot(p2[0:1, :].astype(bf16), wf1_ref[0],
                      preferred_element_type=f32)
        for h in range(1, 5):
            acc = acc + jnp.dot(p2[h:h + 1, :].astype(bf16), wf1_ref[h],
                                preferred_element_type=f32)
        h1 = jnp.maximum(acc + bf1, 0.0)                     # (1, 120)

        # ------------------- fc2 + ReLU, fc3 -------------------
        h2 = jnp.maximum(
            jnp.dot(h1.astype(bf16), wf2_ref[...], preferred_element_type=f32) + bf2,
            0.0)                                             # (1, 90)
        out = jnp.dot(h2.astype(bf16), wf3_ref[...],
                      preferred_element_type=f32) + bf3      # (1, 10)
        o_ref[pl.ds(b, 1), :] = out.astype(o_ref.dtype)


# ----------------------- one-time parameter preparation --------------------- #

def prepare_params(params):
    """Convert torch-layout parameters into kernel-ready matrices.

    Conv weights become per-kernel-row width-Toeplitz matrices whose two
    128-lane column halves generate the even / odd output columns (so the 2x2
    pool is a pure elementwise max in-kernel).  fc1 is permuted so it consumes
    the kernel's (channel*5 + col) lane layout row-by-row; fc2/fc3 are
    pre-transposed.  Runs once, outside the jitted forward.
    """
    f32, bf16 = jnp.float32, jnp.bfloat16
    j = jnp.arange(5)

    # conv1: (6,3,5,5) -> (5, 96, 256).  rows: input lane w*3+ci.
    # cols [0:84)  -> output (co, ow=2m), cols [128:212) -> output (co, ow=2m+1).
    w1 = params["conv1_w"].astype(f32)
    m = jnp.arange(14)
    w32 = jnp.arange(32)
    sel_e = (w32[None, :, None] == (2 * m[None, None, :] + j[:, None, None])).astype(f32)
    sel_o = (w32[None, :, None] == (2 * m[None, None, :] + 1 + j[:, None, None])).astype(f32)
    t1e = jnp.einsum("acij,jwm->iwcam", w1, sel_e).reshape(5, 96, 84)
    t1o = jnp.einsum("acij,jwm->iwcam", w1, sel_o).reshape(5, 96, 84)
    w1t = (jnp.zeros((5, 96, 256), f32)
           .at[:, :, 0:84].set(t1e).at[:, :, 128:212].set(t1o))
    b1rep = jnp.repeat(params["conv1_b"].astype(f32), 14)
    b1row = jnp.zeros((256,), f32).at[0:84].set(b1rep).at[128:212].set(b1rep)

    # conv2: (16,6,5,5) -> (5, 128, 256).  rows: pooled lane co*14+m (>=84 zero).
    # cols [0:80) -> output (c2, ow=2*m2), cols [128:208) -> output (c2, 2*m2+1).
    w2 = params["conv2_w"].astype(f32)
    m2 = jnp.arange(5)
    sel2_e = (m[None, :, None] == (2 * m2[None, None, :] + j[:, None, None])).astype(f32)
    sel2_o = (m[None, :, None] == (2 * m2[None, None, :] + 1 + j[:, None, None])).astype(f32)
    t2e = jnp.einsum("acij,jmn->icman", w2, sel2_e).reshape(5, 84, 80)
    t2o = jnp.einsum("acij,jmn->icman", w2, sel2_o).reshape(5, 84, 80)
    w2t = (jnp.zeros((5, 128, 256), f32)
           .at[:, 0:84, 0:80].set(t2e).at[:, 0:84, 128:208].set(t2o))
    b2rep = jnp.repeat(params["conv2_b"].astype(f32), 5)
    b2row = jnp.zeros((256,), f32).at[0:80].set(b2rep).at[128:208].set(b2rep)

    # fc1: wf1[h, c2*5+w, o] = fc1_w[o, c2*25 + h*5 + w]  (rows >= 80 are zero).
    f4 = params["fc1_w"].astype(f32).reshape(120, 16, 5, 5)      # [o, c2, h, w]
    wf1 = jnp.transpose(f4, (2, 1, 3, 0)).reshape(5, 80, 120)    # [h, c2*5+w, o]
    wf1 = jnp.zeros((5, 128, 120), f32).at[:, 0:80, :].set(wf1)

    return {
        "w1": w1t.astype(bf16), "b1": b1row.reshape(1, 256),
        "w2": w2t.astype(bf16), "b2": b2row.reshape(1, 256),
        "wf1": wf1.astype(bf16), "bf1": params["fc1_b"].astype(f32).reshape(1, 120),
        "wf2": params["fc2_w"].astype(f32).T.astype(bf16),       # (120, 90)
        "bf2": params["fc2_b"].astype(f32).reshape(1, 90),
        "wf3": params["fc3_w"].astype(f32).T.astype(bf16),       # (90, 10)
        "bf3": params["fc3_b"].astype(f32).reshape(1, 10),
    }


# ------------------------------- forward pass ------------------------------- #

@jax.jit
def convnet_forward(x_nchw, prep):
    B, C, H, W = x_nchw.shape
    assert (C, H, W) == (3, 32, 32), (C, H, W)

    # NCHW -> image rows grouped by (row index mod 4), each row flattened to
    # (W*Cin,): x_re[b, q, k, :] holds image row 4k+q in (w, ci) lane order.
    x = jnp.transpose(x_nchw, (0, 2, 3, 1)).reshape(B, 32, 96)
    x_re = x.reshape(B, 8, 4, 96).transpose(0, 2, 1, 3)           # (B, 4, 8, 96)

    flops = 2 * B * (20 * 7 * 96 * 256 + 10 * 5 * 128 * 256
                     + 5 * 128 * 120 + 120 * 90 + 90 * 10)
    bytes_accessed = int(x_re.size) * 4 + B * 10 * 4 + sum(
        int(v.size) * v.dtype.itemsize for v in prep.values())

    vmem = pl.BlockSpec(memory_space=pltpu.MemorySpace.VMEM)
    return pl.pallas_call(
        _convnet_kernel,
        out_shape=jax.ShapeDtypeStruct((B, 10), jnp.float32),
        in_specs=[vmem] * 11,
        out_specs=vmem,
        cost_estimate=pl.CostEstimate(flops=flops, transcendentals=0,
                                      bytes_accessed=bytes_accessed),
    )(x_re, prep["w1"], prep["b1"], prep["w2"], prep["b2"],
      prep["wf1"], prep["bf1"], prep["wf2"], prep["bf2"],
      prep["wf3"], prep["bf3"])


# ------------------------- params / plain-JAX reference --------------------- #

def init_params(key):
    """Deterministic synthetic parameters with PyTorch-default-like uniform init."""
    def uniform(k, shape, fan_in):
        bound = 1.0 / jnp.sqrt(float(fan_in))
        return jax.random.uniform(k, shape, jnp.float32, -bound, bound)

    ks = jax.random.split(key, 10)
    return {
        "conv1_w": uniform(ks[0], (6, 3, 5, 5), 3 * 5 * 5),
        "conv1_b": uniform(ks[1], (6,), 3 * 5 * 5),
        "conv2_w": uniform(ks[2], (16, 6, 5, 5), 6 * 5 * 5),
        "conv2_b": uniform(ks[3], (16,), 6 * 5 * 5),
        "fc1_w": uniform(ks[4], (120, 400), 400),   # torch Linear: (out, in)
        "fc1_b": uniform(ks[5], (120,), 400),
        "fc2_w": uniform(ks[6], (90, 120), 120),
        "fc2_b": uniform(ks[7], (90,), 120),
        "fc3_w": uniform(ks[8], (10, 90), 90),
        "fc3_b": uniform(ks[9], (10,), 90),
    }


def convnet_reference(x_nchw, params):
    """Plain-JAX f32 reference matching the PyTorch forward (for sanity check)."""
    dn = ("NCHW", "OIHW", "NCHW")

    def conv(x, w, b):
        y = jax.lax.conv_general_dilated(x, w, (1, 1), "VALID",
                                         dimension_numbers=dn)
        return jnp.maximum(y + b.reshape(1, -1, 1, 1), 0.0)

    def pool(x):
        return jax.lax.reduce_window(x, -jnp.inf, jax.lax.max,
                                     (1, 1, 2, 2), (1, 1, 2, 2), "VALID")

    x = pool(conv(x_nchw, params["conv1_w"], params["conv1_b"]))
    x = pool(conv(x, params["conv2_w"], params["conv2_b"]))
    x = x.reshape(x.shape[0], 16 * 5 * 5)
    x = jnp.maximum(x @ params["fc1_w"].T + params["fc1_b"], 0.0)
    x = jnp.maximum(x @ params["fc2_w"].T + params["fc2_b"], 0.0)
    return x @ params["fc3_w"].T + params["fc3_b"]


if __name__ == "__main__":
    key = jax.random.PRNGKey(0)
    kx, kp = jax.random.split(key)
    # ConvNet's geometry (16*5*5 flatten) implies 32x32 inputs with 3 channels.
    x = jax.random.normal(kx, (2, 3, 32, 32), dtype=jnp.float32)
    params = init_params(kp)
    prep = prepare_params(params)          # one-time, outside the forward pass

    out = convnet_forward(x, prep)
    out = jax.block_until_ready(out)
    assert out.shape == (2, 10), out.shape

    # Sanity check against the f32 reference (loose tol: bf16 MXU operands).
    ref = convnet_reference(x, params)
    err = float(jnp.max(jnp.abs(out - ref)))
    assert err < 2e-2, f"kernel deviates from reference: max abs err = {err}"
    print("KERNEL_OK")
</pallas_src>

<mosaic_0001>
module attributes {stable_mosaic.version = 11 : i64} {
  func.func @_convnet_kernel(%arg0: memref<2x4x8x96xf32, #tpu.memory_space<vmem>>, %arg1: memref<5x96x256xbf16, #tpu.memory_space<vmem>>, %arg2: memref<1x256xf32, #tpu.memory_space<vmem>>, %arg3: memref<5x128x256xbf16, #tpu.memory_space<vmem>>, %arg4: memref<1x256xf32, #tpu.memory_space<vmem>>, %arg5: memref<5x128x120xbf16, #tpu.memory_space<vmem>>, %arg6: memref<1x120xf32, #tpu.memory_space<vmem>>, %arg7: memref<120x90xbf16, #tpu.memory_space<vmem>>, %arg8: memref<1x90xf32, #tpu.memory_space<vmem>>, %arg9: memref<90x10xbf16, #tpu.memory_space<vmem>>, %arg10: memref<1x10xf32, #tpu.memory_space<vmem>>, %arg11: memref<2x10xf32, #tpu.memory_space<vmem>>) attributes {dimension_semantics = [], scalar_prefetch = 0 : i64, scratch_operands = 0 : i64, tpu.core_type = #tpu.core_type<tc>} {
    %c0 = arith.constant 0 : index
    %c0_0 = arith.constant 0 : index
    %0 = vector.load %arg2[%c0, %c0_0] : memref<1x256xf32, #tpu.memory_space<vmem>>, vector<1x256xf32>
    %c0_1 = arith.constant 0 : index
    %c0_2 = arith.constant 0 : index
    %1 = vector.load %arg4[%c0_1, %c0_2] : memref<1x256xf32, #tpu.memory_space<vmem>>, vector<1x256xf32>
    %c0_3 = arith.constant 0 : index
    %c0_4 = arith.constant 0 : index
    %2 = vector.load %arg6[%c0_3, %c0_4] : memref<1x120xf32, #tpu.memory_space<vmem>>, vector<1x120xf32>
    %c0_5 = arith.constant 0 : index
    %c0_6 = arith.constant 0 : index
    %3 = vector.load %arg8[%c0_5, %c0_6] : memref<1x90xf32, #tpu.memory_space<vmem>>, vector<1x90xf32>
    %c0_7 = arith.constant 0 : index
    %c0_8 = arith.constant 0 : index
    %4 = vector.load %arg10[%c0_7, %c0_8] : memref<1x10xf32, #tpu.memory_space<vmem>>, vector<1x10xf32>
    %c0_9 = arith.constant 0 : index
    %c0_10 = arith.constant 0 : index
    %c0_11 = arith.constant 0 : index
    %c0_12 = arith.constant 0 : index
    %5 = vector.load %arg0[%c0_9, %c0_10, %c0_11, %c0_12] : memref<2x4x8x96xf32, #tpu.memory_space<vmem>>, vector<1x1x7x96xf32>
    %6 = vector.shape_cast %5 : vector<1x1x7x96xf32> to vector<7x96xf32>
    %7 = arith.truncf %6 : vector<7x96xf32> to vector<7x96xbf16>
    %c0_13 = arith.constant 0 : index
    %c1 = arith.constant 1 : index
    %c0_14 = arith.constant 0 : index
    %c0_15 = arith.constant 0 : index
    %8 = vector.load %arg0[%c0_13, %c1, %c0_14, %c0_15] : memref<2x4x8x96xf32, #tpu.memory_space<vmem>>, vector<1x1x7x96xf32>
    %9 = vector.shape_cast %8 : vector<1x1x7x96xf32> to vector<7x96xf32>
    %10 = arith.truncf %9 : vector<7x96xf32> to vector<7x96xbf16>
    %c0_16 = arith.constant 0 : index
    %c2 = arith.constant 2 : index
    %c0_17 = arith.constant 0 : index
    %c0_18 = arith.constant 0 : index
    %11 = vector.load %arg0[%c0_16, %c2, %c0_17, %c0_18] : memref<2x4x8x96xf32, #tpu.memory_space<vmem>>, vector<1x1x7x96xf32>
    %12 = vector.shape_cast %11 : vector<1x1x7x96xf32> to vector<7x96xf32>
    %13 = arith.truncf %12 : vector<7x96xf32> to vector<7x96xbf16>
    %c0_19 = arith.constant 0 : index
    %c3 = arith.constant 3 : index
    %c0_20 = arith.constant 0 : index
    %c0_21 = arith.constant 0 : index
    %14 = vector.load %arg0[%c0_19, %c3, %c0_20, %c0_21] : memref<2x4x8x96xf32, #tpu.memory_space<vmem>>, vector<1x1x7x96xf32>
    %15 = vector.shape_cast %14 : vector<1x1x7x96xf32> to vector<7x96xf32>
    %16 = arith.truncf %15 : vector<7x96xf32> to vector<7x96xbf16>
    %c0_22 = arith.constant 0 : index
    %c0_23 = arith.constant 0 : index
    %c1_24 = arith.constant 1 : index
    %c0_25 = arith.constant 0 : index
    %17 = vector.load %arg0[%c0_22, %c0_23, %c1_24, %c0_25] : memref<2x4x8x96xf32, #tpu.memory_space<vmem>>, vector<1x1x7x96xf32>
    %18 = vector.shape_cast %17 : vector<1x1x7x96xf32> to vector<7x96xf32>
    %19 = arith.truncf %18 : vector<7x96xf32> to vector<7x96xbf16>
    %c0_26 = arith.constant 0 : index
    %c1_27 = arith.constant 1 : index
    %c1_28 = arith.constant 1 : index
    %c0_29 = arith.constant 0 : index
    %20 = vector.load %arg0[%c0_26, %c1_27, %c1_28, %c0_29] : memref<2x4x8x96xf32, #tpu.memory_space<vmem>>, vector<1x1x7x96xf32>
    %21 = vector.shape_cast %20 : vector<1x1x7x96xf32> to vector<7x96xf32>
    %22 = arith.truncf %21 : vector<7x96xf32> to vector<7x96xbf16>
    %c0_30 = arith.constant 0 : index
    %c2_31 = arith.constant 2 : index
    %c1_32 = arith.constant 1 : index
    %c0_33 = arith.constant 0 : index
    %23 = vector.load %arg0[%c0_30, %c2_31, %c1_32, %c0_33] : memref<2x4x8x96xf32, #tpu.memory_space<vmem>>, vector<1x1x7x96xf32>
    %24 = vector.shape_cast %23 : vector<1x1x7x96xf32> to vector<7x96xf32>
    %25 = arith.truncf %24 : vector<7x96xf32> to vector<7x96xbf16>
    %c0_34 = arith.constant 0 : index
    %c3_35 = arith.constant 3 : index
    %c1_36 = arith.constant 1 : index
    %c0_37 = arith.constant 0 : index
    %26 = vector.load %arg0[%c0_34, %c3_35, %c1_36, %c0_37] : memref<2x4x8x96xf32, #tpu.memory_space<vmem>>, vector<1x1x7x96xf32>
    %27 = vector.shape_cast %26 : vector<1x1x7x96xf32> to vector<7x96xf32>
    %28 = arith.truncf %27 : vector<7x96xf32> to vector<7x96xbf16>
    %c0_38 = arith.constant 0 : index
    %c0_39 = arith.constant 0 : index
    %c0_40 = arith.constant 0 : index
    %29 = vector.load %arg1[%c0_38, %c0_39, %c0_40] : memref<5x96x256xbf16, #tpu.memory_space<vmem>>, vector<1x96x256xbf16>
    %30 = vector.shape_cast %29 : vector<1x96x256xbf16> to vector<96x256xbf16>
    %cst = arith.constant dense<0.000000e+00> : vector<7x256xf32>
    %31 = tpu.matmul %7, %30, %cst {dimension_numbers = #tpu.dot_dimension_numbers<[1], [0], [0], [1], [0, 0, 1, 1], [], []>} : vector<7x96xbf16>, vector<96x256xbf16>, vector<7x256xf32> -> vector<7x256xf32>
    %c1_41 = arith.constant 1 : index
    %c0_42 = arith.constant 0 : index
    %c0_43 = arith.constant 0 : index
    %32 = vector.load %arg1[%c1_41, %c0_42, %c0_43] : memref<5x96x256xbf16, #tpu.memory_space<vmem>>, vector<1x96x256xbf16>
    %33 = vector.shape_cast %32 : vector<1x96x256xbf16> to vector<96x256xbf16>
    %cst_44 = arith.constant dense<0.000000e+00> : vector<7x256xf32>
    %34 = tpu.matmul %10, %33, %cst_44 {dimension_numbers = #tpu.dot_dimension_numbers<[1], [0], [0], [1], [0, 0, 1, 1], [], []>} : vector<7x96xbf16>, vector<96x256xbf16>, vector<7x256xf32> -> vector<7x256xf32>
    %35 = arith.addf %31, %34 : vector<7x256xf32>
    %c2_45 = arith.constant 2 : index
    %c0_46 = arith.constant 0 : index
    %c0_47 = arith.constant 0 : index
    %36 = vector.load %arg1[%c2_45, %c0_46, %c0_47] : memref<5x96x256xbf16, #tpu.memory_space<vmem>>, vector<1x96x256xbf16>
    %37 = vector.shape_cast %36 : vector<1x96x256xbf16> to vector<96x256xbf16>
    %cst_48 = arith.constant dense<0.000000e+00> : vector<7x256xf32>
    %38 = tpu.matmul %13, %37, %cst_48 {dimension_numbers = #tpu.dot_dimension_numbers<[1], [0], [0], [1], [0, 0, 1, 1], [], []>} : vector<7x96xbf16>, vector<96x256xbf16>, vector<7x256xf32> -> vector<7x256xf32>
    %39 = arith.addf %35, %38 : vector<7x256xf32>
    %c3_49 = arith.constant 3 : index
    %c0_50 = arith.constant 0 : index
    %c0_51 = arith.constant 0 : index
    %40 = vector.load %arg1[%c3_49, %c0_50, %c0_51] : memref<5x96x256xbf16, #tpu.memory_space<vmem>>, vector<1x96x256xbf16>
    %41 = vector.shape_cast %40 : vector<1x96x256xbf16> to vector<96x256xbf16>
    %cst_52 = arith.constant dense<0.000000e+00> : vector<7x256xf32>
    %42 = tpu.matmul %16, %41, %cst_52 {dimension_numbers = #tpu.dot_dimension_numbers<[1], [0], [0], [1], [0, 0, 1, 1], [], []>} : vector<7x96xbf16>, vector<96x256xbf16>, vector<7x256xf32> -> vector<7x256xf32>
    %43 = arith.addf %39, %42 : vector<7x256xf32>
    %c4 = arith.constant 4 : index
    %c0_53 = arith.constant 0 : index
    %c0_54 = arith.constant 0 : index
    %44 = vector.load %arg1[%c4, %c0_53, %c0_54] : memref<5x96x256xbf16, #tpu.memory_space<vmem>>, vector<1x96x256xbf16>
    %45 = vector.shape_cast %44 : vector<1x96x256xbf16> to vector<96x256xbf16>
    %cst_55 = arith.constant dense<0.000000e+00> : vector<7x256xf32>
    %46 = tpu.matmul %19, %45, %cst_55 {dimension_numbers = #tpu.dot_dimension_numbers<[1], [0], [0], [1], [0, 0, 1, 1], [], []>} : vector<7x96xbf16>, vector<96x256xbf16>, vector<7x256xf32> -> vector<7x256xf32>
    %47 = arith.addf %43, %46 : vector<7x256xf32>
    %48 = vector.broadcast %0 : vector<1x256xf32> to vector<7x256xf32>
    %49 = arith.addf %47, %48 : vector<7x256xf32>
    %cst_56 = arith.constant 0.000000e+00 : f32
    %50 = vector.broadcast %cst_56 : f32 to vector<7x256xf32>
    %51 = arith.maximumf %49, %50 : vector<7x256xf32>
    %c0_57 = arith.constant 0 : index
    %c0_58 = arith.constant 0 : index
    %c0_59 = arith.constant 0 : index
    %52 = vector.load %arg1[%c0_57, %c0_58, %c0_59] : memref<5x96x256xbf16, #tpu.memory_space<vmem>>, vector<1x96x256xbf16>
    %53 = vector.shape_cast %52 : vector<1x96x256xbf16> to vector<96x256xbf16>
    %cst_60 = arith.constant dense<0.000000e+00> : vector<7x256xf32>
    %54 = tpu.matmul %10, %53, %cst_60 {dimension_numbers = #tpu.dot_dimension_numbers<[1], [0], [0], [1], [0, 0, 1, 1], [], []>} : vector<7x96xbf16>, vector<96x256xbf16>, vector<7x256xf32> -> vector<7x256xf32>
    %c1_61 = arith.constant 1 : index
    %c0_62 = arith.constant 0 : index
    %c0_63 = arith.constant 0 : index
    %55 = vector.load %arg1[%c1_61, %c0_62, %c0_63] : memref<5x96x256xbf16, #tpu.memory_space<vmem>>, vector<1x96x256xbf16>
    %56 = vector.shape_cast %55 : vector<1x96x256xbf16> to vector<96x256xbf16>
    %cst_64 = arith.constant dense<0.000000e+00> : vector<7x256xf32>
    %57 = tpu.matmul %13, %56, %cst_64 {dimension_numbers = #tpu.dot_dimension_numbers<[1], [0], [0], [1], [0, 0, 1, 1], [], []>} : vector<7x96xbf16>, vector<96x256xbf16>, vector<7x256xf32> -> vector<7x256xf32>
    %58 = arith.addf %54, %57 : vector<7x256xf32>
    %c2_65 = arith.constant 2 : index
    %c0_66 = arith.constant 0 : index
    %c0_67 = arith.constant 0 : index
    %59 = vector.load %arg1[%c2_65, %c0_66, %c0_67] : memref<5x96x256xbf16, #tpu.memory_space<vmem>>, vector<1x96x256xbf16>
    %60 = vector.shape_cast %59 : vector<1x96x256xbf16> to vector<96x256xbf16>
    %cst_68 = arith.constant dense<0.000000e+00> : vector<7x256xf32>
    %61 = tpu.matmul %16, %60, %cst_68 {dimension_numbers = #tpu.dot_dimension_numbers<[1], [0], [0], [1], [0, 0, 1, 1], [], []>} : vector<7x96xbf16>, vector<96x256xbf16>, vector<7x256xf32> -> vector<7x256xf32>
    %62 = arith.addf %58, %61 : vector<7x256xf32>
    %c3_69 = arith.constant 3 : index
    %c0_70 = arith.constant 0 : index
    %c0_71 = arith.constant 0 : index
    %63 = vector.load %arg1[%c3_69, %c0_70, %c0_71] : memref<5x96x256xbf16, #tpu.memory_space<vmem>>, vector<1x96x256xbf16>
    %64 = vector.shape_cast %63 : vector<1x96x256xbf16> to vector<96x256xbf16>
    %cst_72 = arith.constant dense<0.000000e+00> : vector<7x256xf32>
    %65 = tpu.matmul %19, %64, %cst_72 {dimension_numbers = #tpu.dot_dimension_numbers<[1], [0], [0], [1], [0, 0, 1, 1], [], []>} : vector<7x96xbf16>, vector<96x256xbf16>, vector<7x256xf32> -> vector<7x256xf32>
    %66 = arith.addf %62, %65 : vector<7x256xf32>
    %c4_73 = arith.constant 4 : index
    %c0_74 = arith.constant 0 : index
    %c0_75 = arith.constant 0 : index
    %67 = vector.load %arg1[%c4_73, %c0_74, %c0_75] : memref<5x96x256xbf16, #tpu.memory_space<vmem>>, vector<1x96x256xbf16>
    %68 = vector.shape_cast %67 : vector<1x96x256xbf16> to vector<96x256xbf16>
    %cst_76 = arith.constant dense<0.000000e+00> : vector<7x256xf32>
    %69 = tpu.matmul %22, %68, %cst_76 {dimension_numbers = #tpu.dot_dimension_numbers<[1], [0], [0], [1], [0, 0, 1, 1], [], []>} : vector<7x96xbf16>, vector<96x256xbf16>, vector<7x256xf32> -> vector<7x256xf32>
    %70 = arith.addf %66, %69 : vector<7x256xf32>
    %71 = vector.broadcast %0 : vector<1x256xf32> to vector<7x256xf32>
    %72 = arith.addf %70, %71 : vector<7x256xf32>
    %cst_77 = arith.constant 0.000000e+00 : f32
    %73 = vector.broadcast %cst_77 : f32 to vector<7x256xf32>
    %74 = arith.maximumf %72, %73 : vector<7x256xf32>
    %c0_78 = arith.constant 0 : index
    %c0_79 = arith.constant 0 : index
    %c0_80 = arith.constant 0 : index
    %75 = vector.load %arg1[%c0_78, %c0_79, %c0_80] : memref<5x96x256xbf16, #tpu.memory_space<vmem>>, vector<1x96x256xbf16>
    %76 = vector.shape_cast %75 : vector<1x96x256xbf16> to vector<96x256xbf16>
    %cst_81 = arith.constant dense<0.000000e+00> : vector<7x256xf32>
    %77 = tpu.matmul %13, %76, %cst_81 {dimension_numbers = #tpu.dot_dimension_numbers<[1], [0], [0], [1], [0, 0, 1, 1], [], []>} : vector<7x96xbf16>, vector<96x256xbf16>, vector<7x256xf32> -> vector<7x256xf32>
    %c1_82 = arith.constant 1 : index
    %c0_83 = arith.constant 0 : index
    %c0_84 = arith.constant 0 : index
    %78 = vector.load %arg1[%c1_82, %c0_83, %c0_84] : memref<5x96x256xbf16, #tpu.memory_space<vmem>>, vector<1x96x256xbf16>
    %79 = vector.shape_cast %78 : vector<1x96x256xbf16> to vector<96x256xbf16>
    %cst_85 = arith.constant dense<0.000000e+00> : vector<7x256xf32>
    %80 = tpu.matmul %16, %79, %cst_85 {dimension_numbers = #tpu.dot_dimension_numbers<[1], [0], [0], [1], [0, 0, 1, 1], [], []>} : vector<7x96xbf16>, vector<96x256xbf16>, vector<7x256xf32> -> vector<7x256xf32>
    %81 = arith.addf %77, %80 : vector<7x256xf32>
    %c2_86 = arith.constant 2 : index
    %c0_87 = arith.constant 0 : index
    %c0_88 = arith.constant 0 : index
    %82 = vector.load %arg1[%c2_86, %c0_87, %c0_88] : memref<5x96x256xbf16, #tpu.memory_space<vmem>>, vector<1x96x256xbf16>
    %83 = vector.shape_cast %82 : vector<1x96x256xbf16> to vector<96x256xbf16>
    %cst_89 = arith.constant dense<0.000000e+00> : vector<7x256xf32>
    %84 = tpu.matmul %19, %83, %cst_89 {dimension_numbers = #tpu.dot_dimension_numbers<[1], [0], [0], [1], [0, 0, 1, 1], [], []>} : vector<7x96xbf16>, vector<96x256xbf16>, vector<7x256xf32> -> vector<7x256xf32>
    %85 = arith.addf %81, %84 : vector<7x256xf32>
    %c3_90 = arith.constant 3 : index
    %c0_91 = arith.constant 0 : index
    %c0_92 = arith.constant 0 : index
    %86 = vector.load %arg1[%c3_90, %c0_91, %c0_92] : memref<5x96x256xbf16, #tpu.memory_space<vmem>>, vector<1x96x256xbf16>
    %87 = vector.shape_cast %86 : vector<1x96x256xbf16> to vector<96x256xbf16>
    %cst_93 = arith.constant dense<0.000000e+00> : vector<7x256xf32>
    %88 = tpu.matmul %22, %87, %cst_93 {dimension_numbers = #tpu.dot_dimension_numbers<[1], [0], [0], [1], [0, 0, 1, 1], [], []>} : vector<7x96xbf16>, vector<96x256xbf16>, vector<7x256xf32> -> vector<7x256xf32>
    %89 = arith.addf %85, %88 : vector<7x256xf32>
    %c4_94 = arith.constant 4 : index
    %c0_95 = arith.constant 0 : index
    %c0_96 = arith.constant 0 : index
    %90 = vector.load %arg1[%c4_94, %c0_95, %c0_96] : memref<5x96x256xbf16, #tpu.memory_space<vmem>>, vector<1x96x256xbf16>
    %91 = vector.shape_cast %90 : vector<1x96x256xbf16> to vector<96x256xbf16>
    %cst_97 = arith.constant dense<0.000000e+00> : vector<7x256xf32>
    %92 = tpu.matmul %25, %91, %cst_97 {dimension_numbers = #tpu.dot_dimension_numbers<[1], [0], [0], [1], [0, 0, 1, 1], [], []>} : vector<7x96xbf16>, vector<96x256xbf16>, vector<7x256xf32> -> vector<7x256xf32>
    %93 = arith.addf %89, %92 : vector<7x256xf32>
    %94 = vector.broadcast %0 : vector<1x256xf32> to vector<7x256xf32>
    %95 = arith.addf %93, %94 : vector<7x256xf32>
    %cst_98 = arith.constant 0.000000e+00 : f32
    %96 = vector.broadcast %cst_98 : f32 to vector<7x256xf32>
    %97 = arith.maximumf %95, %96 : vector<7x256xf32>
    %c0_99 = arith.constant 0 : index
    %c0_100 = arith.constant 0 : index
    %c0_101 = arith.constant 0 : index
    %98 = vector.load %arg1[%c0_99, %c0_100, %c0_101] : memref<5x96x256xbf16, #tpu.memory_space<vmem>>, vector<1x96x256xbf16>
    %99 = vector.shape_cast %98 : vector<1x96x256xbf16> to vector<96x256xbf16>
    %cst_102 = arith.constant dense<0.000000e+00> : vector<7x256xf32>
    %100 = tpu.matmul %16, %99, %cst_102 {dimension_numbers = #tpu.dot_dimension_numbers<[1], [0], [0], [1], [0, 0, 1, 1], [], []>} : vector<7x96xbf16>, vector<96x256xbf16>, vector<7x256xf32> -> vector<7x256xf32>
    %c1_103 = arith.constant 1 : index
    %c0_104 = arith.constant 0 : index
    %c0_105 = arith.constant 0 : index
    %101 = vector.load %arg1[%c1_103, %c0_104, %c0_105] : memref<5x96x256xbf16, #tpu.memory_space<vmem>>, vector<1x96x256xbf16>
    %102 = vector.shape_cast %101 : vector<1x96x256xbf16> to vector<96x256xbf16>
    %cst_106 = arith.constant dense<0.000000e+00> : vector<7x256xf32>
    %103 = tpu.matmul %19, %102, %cst_106 {dimension_numbers = #tpu.dot_dimension_numbers<[1], [0], [0], [1], [0, 0, 1, 1], [], []>} : vector<7x96xbf16>, vector<96x256xbf16>, vector<7x256xf32> -> vector<7x256xf32>
    %104 = arith.addf %100, %103 : vector<7x256xf32>
    %c2_107 = arith.constant 2 : index
    %c0_108 = arith.constant 0 : index
    %c0_109 = arith.constant 0 : index
    %105 = vector.load %arg1[%c2_107, %c0_108, %c0_109] : memref<5x96x256xbf16, #tpu.memory_space<vmem>>, vector<1x96x256xbf16>
    %106 = vector.shape_cast %105 : vector<1x96x256xbf16> to vector<96x256xbf16>
    %cst_110 = arith.constant dense<0.000000e+00> : vector<7x256xf32>
    %107 = tpu.matmul %22, %106, %cst_110 {dimension_numbers = #tpu.dot_dimension_numbers<[1], [0], [0], [1], [0, 0, 1, 1], [], []>} : vector<7x96xbf16>, vector<96x256xbf16>, vector<7x256xf32> -> vector<7x256xf32>
    %108 = arith.addf %104, %107 : vector<7x256xf32>
    %c3_111 = arith.constant 3 : index
    %c0_112 = arith.constant 0 : index
    %c0_113 = arith.constant 0 : index
    %109 = vector.load %arg1[%c3_111, %c0_112, %c0_113] : memref<5x96x256xbf16, #tpu.memory_space<vmem>>, vector<1x96x256xbf16>
    %110 = vector.shape_cast %109 : vector<1x96x256xbf16> to vector<96x256xbf16>
    %cst_114 = arith.constant dense<0.000000e+00> : vector<7x256xf32>
    %111 = tpu.matmul %25, %110, %cst_114 {dimension_numbers = #tpu.dot_dimension_numbers<[1], [0], [0], [1], [0, 0, 1, 1], [], []>} : vector<7x96xbf16>, vector<96x256xbf16>, vector<7x256xf32> -> vector<7x256xf32>
    %112 = arith.addf %108, %111 : vector<7x256xf32>
    %c4_115 = arith.constant 4 : index
    %c0_116 = arith.constant 0 : index
    %c0_117 = arith.constant 0 : index
    %113 = vector.load %arg1[%c4_115, %c0_116, %c0_117] : memref<5x96x256xbf16, #tpu.memory_space<vmem>>, vector<1x96x256xbf16>
    %114 = vector.shape_cast %113 : vector<1x96x256xbf16> to vector<96x256xbf16>
    %cst_118 = arith.constant dense<0.000000e+00> : vector<7x256xf32>
    %115 = tpu.matmul %28, %114, %cst_118 {dimension_numbers = #tpu.dot_dimension_numbers<[1], [0], [0], [1], [0, 0, 1, 1], [], []>} : vector<7x96xbf16>, vector<96x256xbf16>, vector<7x256xf32> -> vector<7x256xf32>
    %116 = arith.addf %112, %115 : vector<7x256xf32>
    %117 = vector.broadcast %0 : vector<1x256xf32> to vector<7x256xf32>
    %118 = arith.addf %116, %117 : vector<7x256xf32>
    %cst_119 = arith.constant 0.000000e+00 : f32
    %119 = vector.broadcast %cst_119 : f32 to vector<7x256xf32>
    %120 = arith.maximumf %118, %119 : vector<7x256xf32>
    %121 = arith.maximumf %51, %74 : vector<7x256xf32>
    %122 = vector.extract_strided_slice %121 {offsets = [0, 0], sizes = [7, 128], strides = [1, 1]} : vector<7x256xf32> to vector<7x128xf32>
    %123 = vector.extract_strided_slice %121 {offsets = [0, 128], sizes = [7, 128], strides = [1, 1]} : vector<7x256xf32> to vector<7x128xf32>
    %124 = arith.maximumf %122, %123 : vector<7x128xf32>
    %125 = arith.maximumf %97, %120 : vector<7x256xf32>
    %126 = vector.extract_strided_slice %125 {offsets = [0, 0], sizes = [7, 128], strides = [1, 1]} : vector<7x256xf32> to vector<7x128xf32>
    %127 = vector.extract_strided_slice %125 {offsets = [0, 128], sizes = [7, 128], strides = [1, 1]} : vector<7x256xf32> to vector<7x128xf32>
    %128 = arith.maximumf %126, %127 : vector<7x128xf32>
    %129 = vector.extract_strided_slice %124 {offsets = [0, 0], sizes = [5, 128], strides = [1, 1]} : vector<7x128xf32> to vector<5x128xf32>
    %130 = arith.truncf %129 : vector<5x128xf32> to vector<5x128xbf16>
    %131 = vector.extract_strided_slice %128 {offsets = [0, 0], sizes = [5, 128], strides = [1, 1]} : vector<7x128xf32> to vector<5x128xf32>
    %132 = arith.truncf %131 : vector<5x128xf32> to vector<5x128xbf16>
    %133 = vector.extract_strided_slice %124 {offsets = [1, 0], sizes = [5, 128], strides = [1, 1]} : vector<7x128xf32> to vector<5x128xf32>
    %134 = arith.truncf %133 : vector<5x128xf32> to vector<5x128xbf16>
    %135 = vector.extract_strided_slice %128 {offsets = [1, 0], sizes = [5, 128], strides = [1, 1]} : vector<7x128xf32> to vector<5x128xf32>
    %136 = arith.truncf %135 : vector<5x128xf32> to vector<5x128xbf16>
    %137 = vector.extract_strided_slice %124 {offsets = [2, 0], sizes = [5, 128], strides = [1, 1]} : vector<7x128xf32> to vector<5x128xf32>
    %138 = arith.truncf %137 : vector<5x128xf32> to vector<5x128xbf16>
    %139 = vector.extract_strided_slice %128 {offsets = [2, 0], sizes = [5, 128], strides = [1, 1]} : vector<7x128xf32> to vector<5x128xf32>
    %140 = arith.truncf %139 : vector<5x128xf32> to vector<5x128xbf16>
    %c0_120 = arith.constant 0 : index
    %c0_121 = arith.constant 0 : index
    %c0_122 = arith.constant 0 : index
    %141 = vector.load %arg3[%c0_120, %c0_121, %c0_122] : memref<5x128x256xbf16, #tpu.memory_space<vmem>>, vector<1x128x256xbf16>
    %142 = vector.shape_cast %141 : vector<1x128x256xbf16> to vector<128x256xbf16>
    %cst_123 = arith.constant dense<0.000000e+00> : vector<5x256xf32>
    %143 = tpu.matmul %130, %142, %cst_123 {dimension_numbers = #tpu.dot_dimension_numbers<[1], [0], [0], [1], [0, 0, 1, 1], [], []>} : vector<5x128xbf16>, vector<128x256xbf16>, vector<5x256xf32> -> vector<5x256xf32>
    %c1_124 = arith.constant 1 : index
    %c0_125 = arith.constant 0 : index
    %c0_126 = arith.constant 0 : index
    %144 = vector.load %arg3[%c1_124, %c0_125, %c0_126] : memref<5x128x256xbf16, #tpu.memory_space<vmem>>, vector<1x128x256xbf16>
    %145 = vector.shape_cast %144 : vector<1x128x256xbf16> to vector<128x256xbf16>
    %cst_127 = arith.constant dense<0.000000e+00> : vector<5x256xf32>
    %146 = tpu.matmul %132, %145, %cst_127 {dimension_numbers = #tpu.dot_dimension_numbers<[1], [0], [0], [1], [0, 0, 1, 1], [], []>} : vector<5x128xbf16>, vector<128x256xbf16>, vector<5x256xf32> -> vector<5x256xf32>
    %147 = arith.addf %143, %146 : vector<5x256xf32>
    %c2_128 = arith.constant 2 : index
    %c0_129 = arith.constant 0 : index
    %c0_130 = arith.constant 0 : index
    %148 = vector.load %arg3[%c2_128, %c0_129, %c0_130] : memref<5x128x256xbf16, #tpu.memory_space<vmem>>, vector<1x128x256xbf16>
    %149 = vector.shape_cast %148 : vector<1x128x256xbf16> to vector<128x256xbf16>
    %cst_131 = arith.constant dense<0.000000e+00> : vector<5x256xf32>
    %150 = tpu.matmul %134, %149, %cst_131 {dimension_numbers = #tpu.dot_dimension_numbers<[1], [0], [0], [1], [0, 0, 1, 1], [], []>} : vector<5x128xbf16>, vector<128x256xbf16>, vector<5x256xf32> -> vector<5x256xf32>
    %151 = arith.addf %147, %150 : vector<5x256xf32>
    %c3_132 = arith.constant 3 : index
    %c0_133 = arith.constant 0 : index
    %c0_134 = arith.constant 0 : index
    %152 = vector.load %arg3[%c3_132, %c0_133, %c0_134] : memref<5x128x256xbf16, #tpu.memory_space<vmem>>, vector<1x128x256xbf16>
    %153 = vector.shape_cast %152 : vector<1x128x256xbf16> to vector<128x256xbf16>
    %cst_135 = arith.constant dense<0.000000e+00> : vector<5x256xf32>
    %154 = tpu.matmul %136, %153, %cst_135 {dimension_numbers = #tpu.dot_dimension_numbers<[1], [0], [0], [1], [0, 0, 1, 1], [], []>} : vector<5x128xbf16>, vector<128x256xbf16>, vector<5x256xf32> -> vector<5x256xf32>
    %155 = arith.addf %151, %154 : vector<5x256xf32>
    %c4_136 = arith.constant 4 : index
    %c0_137 = arith.constant 0 : index
    %c0_138 = arith.constant 0 : index
    %156 = vector.load %arg3[%c4_136, %c0_137, %c0_138] : memref<5x128x256xbf16, #tpu.memory_space<vmem>>, vector<1x128x256xbf16>
    %157 = vector.shape_cast %156 : vector<1x128x256xbf16> to vector<128x256xbf16>
    %cst_139 = arith.constant dense<0.000000e+00> : vector<5x256xf32>
    %158 = tpu.matmul %138, %157, %cst_139 {dimension_numbers = #tpu.dot_dimension_numbers<[1], [0], [0], [1], [0, 0, 1, 1], [], []>} : vector<5x128xbf16>, vector<128x256xbf16>, vector<5x256xf32> -> vector<5x256xf32>
    %159 = arith.addf %155, %158 : vector<5x256xf32>
    %160 = vector.broadcast %1 : vector<1x256xf32> to vector<5x256xf32>
    %161 = arith.addf %159, %160 : vector<5x256xf32>
    %cst_140 = arith.constant 0.000000e+00 : f32
    %162 = vector.broadcast %cst_140 : f32 to vector<5x256xf32>
    %163 = arith.maximumf %161, %162 : vector<5x256xf32>
    %c0_141 = arith.constant 0 : index
    %c0_142 = arith.constant 0 : index
    %c0_143 = arith.constant 0 : index
    %164 = vector.load %arg3[%c0_141, %c0_142, %c0_143] : memref<5x128x256xbf16, #tpu.memory_space<vmem>>, vector<1x128x256xbf16>
    %165 = vector.shape_cast %164 : vector<1x128x256xbf16> to vector<128x256xbf16>
    %cst_144 = arith.constant dense<0.000000e+00> : vector<5x256xf32>
    %166 = tpu.matmul %132, %165, %cst_144 {dimension_numbers = #tpu.dot_dimension_numbers<[1], [0], [0], [1], [0, 0, 1, 1], [], []>} : vector<5x128xbf16>, vector<128x256xbf16>, vector<5x256xf32> -> vector<5x256xf32>
    %c1_145 = arith.constant 1 : index
    %c0_146 = arith.constant 0 : index
    %c0_147 = arith.constant 0 : index
    %167 = vector.load %arg3[%c1_145, %c0_146, %c0_147] : memref<5x128x256xbf16, #tpu.memory_space<vmem>>, vector<1x128x256xbf16>
    %168 = vector.shape_cast %167 : vector<1x128x256xbf16> to vector<128x256xbf16>
    %cst_148 = arith.constant dense<0.000000e+00> : vector<5x256xf32>
    %169 = tpu.matmul %134, %168, %cst_148 {dimension_numbers = #tpu.dot_dimension_numbers<[1], [0], [0], [1], [0, 0, 1, 1], [], []>} : vector<5x128xbf16>, vector<128x256xbf16>, vector<5x256xf32> -> vector<5x256xf32>
    %170 = arith.addf %166, %169 : vector<5x256xf32>
    %c2_149 = arith.constant 2 : index
    %c0_150 = arith.constant 0 : index
    %c0_151 = arith.constant 0 : index
    %171 = vector.load %arg3[%c2_149, %c0_150, %c0_151] : memref<5x128x256xbf16, #tpu.memory_space<vmem>>, vector<1x128x256xbf16>
    %172 = vector.shape_cast %171 : vector<1x128x256xbf16> to vector<128x256xbf16>
    %cst_152 = arith.constant dense<0.000000e+00> : vector<5x256xf32>
    %173 = tpu.matmul %136, %172, %cst_152 {dimension_numbers = #tpu.dot_dimension_numbers<[1], [0], [0], [1], [0, 0, 1, 1], [], []>} : vector<5x128xbf16>, vector<128x256xbf16>, vector<5x256xf32> -> vector<5x256xf32>
    %174 = arith.addf %170, %173 : vector<5x256xf32>
    %c3_153 = arith.constant 3 : index
    %c0_154 = arith.constant 0 : index
    %c0_155 = arith.constant 0 : index
    %175 = vector.load %arg3[%c3_153, %c0_154, %c0_155] : memref<5x128x256xbf16, #tpu.memory_space<vmem>>, vector<1x128x256xbf16>
    %176 = vector.shape_cast %175 : vector<1x128x256xbf16> to vector<128x256xbf16>
    %cst_156 = arith.constant dense<0.000000e+00> : vector<5x256xf32>
    %177 = tpu.matmul %138, %176, %cst_156 {dimension_numbers = #tpu.dot_dimension_numbers<[1], [0], [0], [1], [0, 0, 1, 1], [], []>} : vector<5x128xbf16>, vector<128x256xbf16>, vector<5x256xf32> -> vector<5x256xf32>
    %178 = arith.addf %174, %177 : vector<5x256xf32>
    %c4_157 = arith.constant 4 : index
    %c0_158 = arith.constant 0 : index
    %c0_159 = arith.constant 0 : index
    %179 = vector.load %arg3[%c4_157, %c0_158, %c0_159] : memref<5x128x256xbf16, #tpu.memory_space<vmem>>, vector<1x128x256xbf16>
    %180 = vector.shape_cast %179 : vector<1x128x256xbf16> to vector<128x256xbf16>
    %cst_160 = arith.constant dense<0.000000e+00> : vector<5x256xf32>
    %181 = tpu.matmul %140, %180, %cst_160 {dimension_numbers = #tpu.dot_dimension_numbers<[1], [0], [0], [1], [0, 0, 1, 1], [], []>} : vector<5x128xbf16>, vector<128x256xbf16>, vector<5x256xf32> -> vector<5x256xf32>
    %182 = arith.addf %178, %181 : vector<5x256xf32>
    %183 = vector.broadcast %1 : vector<1x256xf32> to vector<5x256xf32>
    %184 = arith.addf %182, %183 : vector<5x256xf32>
    %cst_161 = arith.constant 0.000000e+00 : f32
    %185 = vector.broadcast %cst_161 : f32 to vector<5x256xf32>
    %186 = arith.maximumf %184, %185 : vector<5x256xf32>
    %187 = arith.maximumf %163, %186 : vector<5x256xf32>
    %188 = vector.extract_strided_slice %187 {offsets = [0, 0], sizes = [5, 128], strides = [1, 1]} : vector<5x256xf32> to vector<5x128xf32>
    %189 = vector.extract_strided_slice %187 {offsets = [0, 128], sizes = [5, 128], strides = [1, 1]} : vector<5x256xf32> to vector<5x128xf32>
    %190 = arith.maximumf %188, %189 : vector<5x128xf32>
    %191 = vector.extract_strided_slice %190 {offsets = [0, 0], sizes = [1, 128], strides = [1, 1]} : vector<5x128xf32> to vector<1x128xf32>
    %192 = arith.truncf %191 : vector<1x128xf32> to vector<1x128xbf16>
    %c0_162 = arith.constant 0 : index
    %c0_163 = arith.constant 0 : index
    %c0_164 = arith.constant 0 : index
    %193 = vector.load %arg5[%c0_162, %c0_163, %c0_164] : memref<5x128x120xbf16, #tpu.memory_space<vmem>>, vector<1x128x120xbf16>
    %194 = vector.shape_cast %193 : vector<1x128x120xbf16> to vector<128x120xbf16>
    %cst_165 = arith.constant dense<0.000000e+00> : vector<1x120xf32>
    %195 = tpu.matmul %192, %194, %cst_165 {dimension_numbers = #tpu.dot_dimension_numbers<[1], [0], [0], [1], [0, 0, 1, 1], [], []>} : vector<1x128xbf16>, vector<128x120xbf16>, vector<1x120xf32> -> vector<1x120xf32>
    %196 = vector.extract_strided_slice %190 {offsets = [1, 0], sizes = [1, 128], strides = [1, 1]} : vector<5x128xf32> to vector<1x128xf32>
    %197 = arith.truncf %196 : vector<1x128xf32> to vector<1x128xbf16>
    %c1_166 = arith.constant 1 : index
    %c0_167 = arith.constant 0 : index
    %c0_168 = arith.constant 0 : index
    %198 = vector.load %arg5[%c1_166, %c0_167, %c0_168] : memref<5x128x120xbf16, #tpu.memory_space<vmem>>, vector<1x128x120xbf16>
    %199 = vector.shape_cast %198 : vector<1x128x120xbf16> to vector<128x120xbf16>
    %cst_169 = arith.constant dense<0.000000e+00> : vector<1x120xf32>
    %200 = tpu.matmul %197, %199, %cst_169 {dimension_numbers = #tpu.dot_dimension_numbers<[1], [0], [0], [1], [0, 0, 1, 1], [], []>} : vector<1x128xbf16>, vector<128x120xbf16>, vector<1x120xf32> -> vector<1x120xf32>
    %201 = arith.addf %195, %200 : vector<1x120xf32>
    %202 = vector.extract_strided_slice %190 {offsets = [2, 0], sizes = [1, 128], strides = [1, 1]} : vector<5x128xf32> to vector<1x128xf32>
    %203 = arith.truncf %202 : vector<1x128xf32> to vector<1x128xbf16>
    %c2_170 = arith.constant 2 : index
    %c0_171 = arith.constant 0 : index
    %c0_172 = arith.constant 0 : index
    %204 = vector.load %arg5[%c2_170, %c0_171, %c0_172] : memref<5x128x120xbf16, #tpu.memory_space<vmem>>, vector<1x128x120xbf16>
    %205 = vector.shape_cast %204 : vector<1x128x120xbf16> to vector<128x120xbf16>
    %cst_173 = arith.constant dense<0.000000e+00> : vector<1x120xf32>
    %206 = tpu.matmul %203, %205, %cst_173 {dimension_numbers = #tpu.dot_dimension_numbers<[1], [0], [0], [1], [0, 0, 1, 1], [], []>} : vector<1x128xbf16>, vector<128x120xbf16>, vector<1x120xf32> -> vector<1x120xf32>
    %207 = arith.addf %201, %206 : vector<1x120xf32>
    %208 = vector.extract_strided_slice %190 {offsets = [3, 0], sizes = [1, 128], strides = [1, 1]} : vector<5x128xf32> to vector<1x128xf32>
    %209 = arith.truncf %208 : vector<1x128xf32> to vector<1x128xbf16>
    %c3_174 = arith.constant 3 : index
    %c0_175 = arith.constant 0 : index
    %c0_176 = arith.constant 0 : index
    %210 = vector.load %arg5[%c3_174, %c0_175, %c0_176] : memref<5x128x120xbf16, #tpu.memory_space<vmem>>, vector<1x128x120xbf16>
    %211 = vector.shape_cast %210 : vector<1x128x120xbf16> to vector<128x120xbf16>
    %cst_177 = arith.constant dense<0.000000e+00> : vector<1x120xf32>
    %212 = tpu.matmul %209, %211, %cst_177 {dimension_numbers = #tpu.dot_dimension_numbers<[1], [0], [0], [1], [0, 0, 1, 1], [], []>} : vector<1x128xbf16>, vector<128x120xbf16>, vector<1x120xf32> -> vector<1x120xf32>
    %213 = arith.addf %207, %212 : vector<1x120xf32>
    %214 = vector.extract_strided_slice %190 {offsets = [4, 0], sizes = [1, 128], strides = [1, 1]} : vector<5x128xf32> to vector<1x128xf32>
    %215 = arith.truncf %214 : vector<1x128xf32> to vector<1x128xbf16>
    %c4_178 = arith.constant 4 : index
    %c0_179 = arith.constant 0 : index
    %c0_180 = arith.constant 0 : index
    %216 = vector.load %arg5[%c4_178, %c0_179, %c0_180] : memref<5x128x120xbf16, #tpu.memory_space<vmem>>, vector<1x128x120xbf16>
    %217 = vector.shape_cast %216 : vector<1x128x120xbf16> to vector<128x120xbf16>
    %cst_181 = arith.constant dense<0.000000e+00> : vector<1x120xf32>
    %218 = tpu.matmul %215, %217, %cst_181 {dimension_numbers = #tpu.dot_dimension_numbers<[1], [0], [0], [1], [0, 0, 1, 1], [], []>} : vector<1x128xbf16>, vector<128x120xbf16>, vector<1x120xf32> -> vector<1x120xf32>
    %219 = arith.addf %213, %218 : vector<1x120xf32>
    %220 = arith.addf %219, %2 : vector<1x120xf32>
    %cst_182 = arith.constant 0.000000e+00 : f32
    %221 = vector.broadcast %cst_182 : f32 to vector<1x120xf32>
    %222 = arith.maximumf %220, %221 : vector<1x120xf32>
    %223 = arith.truncf %222 : vector<1x120xf32> to vector<1x120xbf16>
    %c0_183 = arith.constant 0 : index
    %c0_184 = arith.constant 0 : index
    %224 = vector.load %arg7[%c0_183, %c0_184] : memref<120x90xbf16, #tpu.memory_space<vmem>>, vector<120x90xbf16>
    %cst_185 = arith.constant dense<0.000000e+00> : vector<1x90xf32>
    %225 = tpu.matmul %223, %224, %cst_185 {dimension_numbers = #tpu.dot_dimension_numbers<[1], [0], [0], [1], [0, 0, 1, 1], [], []>} : vector<1x120xbf16>, vector<120x90xbf16>, vector<1x90xf32> -> vector<1x90xf32>
    %226 = arith.addf %225, %3 : vector<1x90xf32>
    %cst_186 = arith.constant 0.000000e+00 : f32
    %227 = vector.broadcast %cst_186 : f32 to vector<1x90xf32>
    %228 = arith.maximumf %226, %227 : vector<1x90xf32>
    %229 = arith.truncf %228 : vector<1x90xf32> to vector<1x90xbf16>
    %c0_187 = arith.constant 0 : index
    %c0_188 = arith.constant 0 : index
    %230 = vector.load %arg9[%c0_187, %c0_188] : memref<90x10xbf16, #tpu.memory_space<vmem>>, vector<90x10xbf16>
    %cst_189 = arith.constant dense<0.000000e+00> : vector<1x10xf32>
    %231 = tpu.matmul %229, %230, %cst_189 {dimension_numbers = #tpu.dot_dimension_numbers<[1], [0], [0], [1], [0, 0, 1, 1], [], []>} : vector<1x90xbf16>, vector<90x10xbf16>, vector<1x10xf32> -> vector<1x10xf32>
    %232 = arith.addf %231, %4 : vector<1x10xf32>
    %c0_190 = arith.constant 0 : index
    %c0_191 = arith.constant 0 : index
    %233 = vector.load %arg11[%c0_190, %c0_191] : memref<2x10xf32, #tpu.memory_space<vmem>>, vector<1x10xf32>
    tpu.vector_store %arg11[%c0_190, %c0_191], %232 {strides = array<i32>} : memref<2x10xf32, #tpu.memory_space<vmem>>, vector<1x10xf32>,
    %c1_192 = arith.constant 1 : index
    %c0_193 = arith.constant 0 : index
    %c0_194 = arith.constant 0 : index
    %c0_195 = arith.constant 0 : index
    %234 = vector.load %arg0[%c1_192, %c0_193, %c0_194, %c0_195] : memref<2x4x8x96xf32, #tpu.memory_space<vmem>>, vector<1x1x7x96xf32>
    %235 = vector.shape_cast %234 : vector<1x1x7x96xf32> to vector<7x96xf32>
    %236 = arith.truncf %235 : vector<7x96xf32> to vector<7x96xbf16>
    %c1_196 = arith.constant 1 : index
    %c1_197 = arith.constant 1 : index
    %c0_198 = arith.constant 0 : index
    %c0_199 = arith.constant 0 : index
    %237 = vector.load %arg0[%c1_196, %c1_197, %c0_198, %c0_199] : memref<2x4x8x96xf32, #tpu.memory_space<vmem>>, vector<1x1x7x96xf32>
    %238 = vector.shape_cast %237 : vector<1x1x7x96xf32> to vector<7x96xf32>
    %239 = arith.truncf %238 : vector<7x96xf32> to vector<7x96xbf16>
    %c1_200 = arith.constant 1 : index
    %c2_201 = arith.constant 2 : index
    %c0_202 = arith.constant 0 : index
    %c0_203 = arith.constant 0 : index
    %240 = vector.load %arg0[%c1_200, %c2_201, %c0_202, %c0_203] : memref<2x4x8x96xf32, #tpu.memory_space<vmem>>, vector<1x1x7x96xf32>
    %241 = vector.shape_cast %240 : vector<1x1x7x96xf32> to vector<7x96xf32>
    %242 = arith.truncf %241 : vector<7x96xf32> to vector<7x96xbf16>
    %c1_204 = arith.constant 1 : index
    %c3_205 = arith.constant 3 : index
    %c0_206 = arith.constant 0 : index
    %c0_207 = arith.constant 0 : index
    %243 = vector.load %arg0[%c1_204, %c3_205, %c0_206, %c0_207] : memref<2x4x8x96xf32, #tpu.memory_space<vmem>>, vector<1x1x7x96xf32>
    %244 = vector.shape_cast %243 : vector<1x1x7x96xf32> to vector<7x96xf32>
    %245 = arith.truncf %244 : vector<7x96xf32> to vector<7x96xbf16>
    %c1_208 = arith.constant 1 : index
    %c0_209 = arith.constant 0 : index
    %c1_210 = arith.constant 1 : index
    %c0_211 = arith.constant 0 : index
    %246 = vector.load %arg0[%c1_208, %c0_209, %c1_210, %c0_211] : memref<2x4x8x96xf32, #tpu.memory_space<vmem>>, vector<1x1x7x96xf32>
    %247 = vector.shape_cast %246 : vector<1x1x7x96xf32> to vector<7x96xf32>
    %248 = arith.truncf %247 : vector<7x96xf32> to vector<7x96xbf16>
    %c1_212 = arith.constant 1 : index
    %c1_213 = arith.constant 1 : index
    %c1_214 = arith.constant 1 : index
    %c0_215 = arith.constant 0 : index
    %249 = vector.load %arg0[%c1_212, %c1_213, %c1_214, %c0_215] : memref<2x4x8x96xf32, #tpu.memory_space<vmem>>, vector<1x1x7x96xf32>
    %250 = vector.shape_cast %249 : vector<1x1x7x96xf32> to vector<7x96xf32>
    %251 = arith.truncf %250 : vector<7x96xf32> to vector<7x96xbf16>
    %c1_216 = arith.constant 1 : index
    %c2_217 = arith.constant 2 : index
    %c1_218 = arith.constant 1 : index
    %c0_219 = arith.constant 0 : index
    %252 = vector.load %arg0[%c1_216, %c2_217, %c1_218, %c0_219] : memref<2x4x8x96xf32, #tpu.memory_space<vmem>>, vector<1x1x7x96xf32>
    %253 = vector.shape_cast %252 : vector<1x1x7x96xf32> to vector<7x96xf32>
    %254 = arith.truncf %253 : vector<7x96xf32> to vector<7x96xbf16>
    %c1_220 = arith.constant 1 : index
    %c3_221 = arith.constant 3 : index
    %c1_222 = arith.constant 1 : index
    %c0_223 = arith.constant 0 : index
    %255 = vector.load %arg0[%c1_220, %c3_221, %c1_222, %c0_223] : memref<2x4x8x96xf32, #tpu.memory_space<vmem>>, vector<1x1x7x96xf32>
    %256 = vector.shape_cast %255 : vector<1x1x7x96xf32> to vector<7x96xf32>
    %257 = arith.truncf %256 : vector<7x96xf32> to vector<7x96xbf16>
    %c0_224 = arith.constant 0 : index
    %c0_225 = arith.constant 0 : index
    %c0_226 = arith.constant 0 : index
    %258 = vector.load %arg1[%c0_224, %c0_225, %c0_226] : memref<5x96x256xbf16, #tpu.memory_space<vmem>>, vector<1x96x256xbf16>
    %259 = vector.shape_cast %258 : vector<1x96x256xbf16> to vector<96x256xbf16>
    %cst_227 = arith.constant dense<0.000000e+00> : vector<7x256xf32>
    %260 = tpu.matmul %236, %259, %cst_227 {dimension_numbers = #tpu.dot_dimension_numbers<[1], [0], [0], [1], [0, 0, 1, 1], [], []>} : vector<7x96xbf16>, vector<96x256xbf16>, vector<7x256xf32> -> vector<7x256xf32>
    %c1_228 = arith.constant 1 : index
    %c0_229 = arith.constant 0 : index
    %c0_230 = arith.constant 0 : index
    %261 = vector.load %arg1[%c1_228, %c0_229, %c0_230] : memref<5x96x256xbf16, #tpu.memory_space<vmem>>, vector<1x96x256xbf16>
    %262 = vector.shape_cast %261 : vector<1x96x256xbf16> to vector<96x256xbf16>
    %cst_231 = arith.constant dense<0.000000e+00> : vector<7x256xf32>
    %263 = tpu.matmul %239, %262, %cst_231 {dimension_numbers = #tpu.dot_dimension_numbers<[1], [0], [0], [1], [0, 0, 1, 1], [], []>} : vector<7x96xbf16>, vector<96x256xbf16>, vector<7x256xf32> -> vector<7x256xf32>
    %264 = arith.addf %260, %263 : vector<7x256xf32>
    %c2_232 = arith.constant 2 : index
    %c0_233 = arith.constant 0 : index
    %c0_234 = arith.constant 0 : index
    %265 = vector.load %arg1[%c2_232, %c0_233, %c0_234] : memref<5x96x256xbf16, #tpu.memory_space<vmem>>, vector<1x96x256xbf16>
    %266 = vector.shape_cast %265 : vector<1x96x256xbf16> to vector<96x256xbf16>
    %cst_235 = arith.constant dense<0.000000e+00> : vector<7x256xf32>
    %267 = tpu.matmul %242, %266, %cst_235 {dimension_numbers = #tpu.dot_dimension_numbers<[1], [0], [0], [1], [0, 0, 1, 1], [], []>} : vector<7x96xbf16>, vector<96x256xbf16>, vector<7x256xf32> -> vector<7x256xf32>
    %268 = arith.addf %264, %267 : vector<7x256xf32>
    %c3_236 = arith.constant 3 : index
    %c0_237 = arith.constant 0 : index
    %c0_238 = arith.constant 0 : index
    %269 = vector.load %arg1[%c3_236, %c0_237, %c0_238] : memref<5x96x256xbf16, #tpu.memory_space<vmem>>, vector<1x96x256xbf16>
    %270 = vector.shape_cast %269 : vector<1x96x256xbf16> to vector<96x256xbf16>
    %cst_239 = arith.constant dense<0.000000e+00> : vector<7x256xf32>
    %271 = tpu.matmul %245, %270, %cst_239 {dimension_numbers = #tpu.dot_dimension_numbers<[1], [0], [0], [1], [0, 0, 1, 1], [], []>} : vector<7x96xbf16>, vector<96x256xbf16>, vector<7x256xf32> -> vector<7x256xf32>
    %272 = arith.addf %268, %271 : vector<7x256xf32>
    %c4_240 = arith.constant 4 : index
    %c0_241 = arith.constant 0 : index
    %c0_242 = arith.constant 0 : index
    %273 = vector.load %arg1[%c4_240, %c0_241, %c0_242] : memref<5x96x256xbf16, #tpu.memory_space<vmem>>, vector<1x96x256xbf16>
    %274 = vector.shape_cast %273 : vector<1x96x256xbf16> to vector<96x256xbf16>
    %cst_243 = arith.constant dense<0.000000e+00> : vector<7x256xf32>
    %275 = tpu.matmul %248, %274, %cst_243 {dimension_numbers = #tpu.dot_dimension_numbers<[1], [0], [0], [1], [0, 0, 1, 1], [], []>} : vector<7x96xbf16>, vector<96x256xbf16>, vector<7x256xf32> -> vector<7x256xf32>
    %276 = arith.addf %272, %275 : vector<7x256xf32>
    %277 = vector.broadcast %0 : vector<1x256xf32> to vector<7x256xf32>
    %278 = arith.addf %276, %277 : vector<7x256xf32>
    %cst_244 = arith.constant 0.000000e+00 : f32
    %279 = vector.broadcast %cst_244 : f32 to vector<7x256xf32>
    %280 = arith.maximumf %278, %279 : vector<7x256xf32>
    %c0_245 = arith.constant 0 : index
    %c0_246 = arith.constant 0 : index
    %c0_247 = arith.constant 0 : index
    %281 = vector.load %arg1[%c0_245, %c0_246, %c0_247] : memref<5x96x256xbf16, #tpu.memory_space<vmem>>, vector<1x96x256xbf16>
    %282 = vector.shape_cast %281 : vector<1x96x256xbf16> to vector<96x256xbf16>
    %cst_248 = arith.constant dense<0.000000e+00> : vector<7x256xf32>
    %283 = tpu.matmul %239, %282, %cst_248 {dimension_numbers = #tpu.dot_dimension_numbers<[1], [0], [0], [1], [0, 0, 1, 1], [], []>} : vector<7x96xbf16>, vector<96x256xbf16>, vector<7x256xf32> -> vector<7x256xf32>
    %c1_249 = arith.constant 1 : index
    %c0_250 = arith.constant 0 : index
    %c0_251 = arith.constant 0 : index
    %284 = vector.load %arg1[%c1_249, %c0_250, %c0_251] : memref<5x96x256xbf16, #tpu.memory_space<vmem>>, vector<1x96x256xbf16>
    %285 = vector.shape_cast %284 : vector<1x96x256xbf16> to vector<96x256xbf16>
    %cst_252 = arith.constant dense<0.000000e+00> : vector<7x256xf32>
    %286 = tpu.matmul %242, %285, %cst_252 {dimension_numbers = #tpu.dot_dimension_numbers<[1], [0], [0], [1], [0, 0, 1, 1], [], []>} : vector<7x96xbf16>, vector<96x256xbf16>, vector<7x256xf32> -> vector<7x256xf32>
    %287 = arith.addf %283, %286 : vector<7x256xf32>
    %c2_253 = arith.constant 2 : index
    %c0_254 = arith.constant 0 : index
    %c0_255 = arith.constant 0 : index
    %288 = vector.load %arg1[%c2_253, %c0_254, %c0_255] : memref<5x96x256xbf16, #tpu.memory_space<vmem>>, vector<1x96x256xbf16>
    %289 = vector.shape_cast %288 : vector<1x96x256xbf16> to vector<96x256xbf16>
    %cst_256 = arith.constant dense<0.000000e+00> : vector<7x256xf32>
    %290 = tpu.matmul %245, %289, %cst_256 {dimension_numbers = #tpu.dot_dimension_numbers<[1], [0], [0], [1], [0, 0, 1, 1], [], []>} : vector<7x96xbf16>, vector<96x256xbf16>, vector<7x256xf32> -> vector<7x256xf32>
    %291 = arith.addf %287, %290 : vector<7x256xf32>
    %c3_257 = arith.constant 3 : index
    %c0_258 = arith.constant 0 : index
    %c0_259 = arith.constant 0 : index
    %292 = vector.load %arg1[%c3_257, %c0_258, %c0_259] : memref<5x96x256xbf16, #tpu.memory_space<vmem>>, vector<1x96x256xbf16>
    %293 = vector.shape_cast %292 : vector<1x96x256xbf16> to vector<96x256xbf16>
    %cst_260 = arith.constant dense<0.000000e+00> : vector<7x256xf32>
    %294 = tpu.matmul %248, %293, %cst_260 {dimension_numbers = #tpu.dot_dimension_numbers<[1], [0], [0], [1], [0, 0, 1, 1], [], []>} : vector<7x96xbf16>, vector<96x256xbf16>, vector<7x256xf32> -> vector<7x256xf32>
    %295 = arith.addf %291, %294 : vector<7x256xf32>
    %c4_261 = arith.constant 4 : index
    %c0_262 = arith.constant 0 : index
    %c0_263 = arith.constant 0 : index
    %296 = vector.load %arg1[%c4_261, %c0_262, %c0_263] : memref<5x96x256xbf16, #tpu.memory_space<vmem>>, vector<1x96x256xbf16>
    %297 = vector.shape_cast %296 : vector<1x96x256xbf16> to vector<96x256xbf16>
    %cst_264 = arith.constant dense<0.000000e+00> : vector<7x256xf32>
    %298 = tpu.matmul %251, %297, %cst_264 {dimension_numbers = #tpu.dot_dimension_numbers<[1], [0], [0], [1], [0, 0, 1, 1], [], []>} : vector<7x96xbf16>, vector<96x256xbf16>, vector<7x256xf32> -> vector<7x256xf32>
    %299 = arith.addf %295, %298 : vector<7x256xf32>
    %300 = vector.broadcast %0 : vector<1x256xf32> to vector<7x256xf32>
    %301 = arith.addf %299, %300 : vector<7x256xf32>
    %cst_265 = arith.constant 0.000000e+00 : f32
    %302 = vector.broadcast %cst_265 : f32 to vector<7x256xf32>
    %303 = arith.maximumf %301, %302 : vector<7x256xf32>
    %c0_266 = arith.constant 0 : index
    %c0_267 = arith.constant 0 : index
    %c0_268 = arith.constant 0 : index
    %304 = vector.load %arg1[%c0_266, %c0_267, %c0_268] : memref<5x96x256xbf16, #tpu.memory_space<vmem>>, vector<1x96x256xbf16>
    %305 = vector.shape_cast %304 : vector<1x96x256xbf16> to vector<96x256xbf16>
    %cst_269 = arith.constant dense<0.000000e+00> : vector<7x256xf32>
    %306 = tpu.matmul %242, %305, %cst_269 {dimension_numbers = #tpu.dot_dimension_numbers<[1], [0], [0], [1], [0, 0, 1, 1], [], []>} : vector<7x96xbf16>, vector<96x256xbf16>, vector<7x256xf32> -> vector<7x256xf32>
    %c1_270 = arith.constant 1 : index
    %c0_271 = arith.constant 0 : index
    %c0_272 = arith.constant 0 : index
    %307 = vector.load %arg1[%c1_270, %c0_271, %c0_272] : memref<5x96x256xbf16, #tpu.memory_space<vmem>>, vector<1x96x256xbf16>
    %308 = vector.shape_cast %307 : vector<1x96x256xbf16> to vector<96x256xbf16>
    %cst_273 = arith.constant dense<0.000000e+00> : vector<7x256xf32>
    %309 = tpu.matmul %245, %308, %cst_273 {dimension_numbers = #tpu.dot_dimension_numbers<[1], [0], [0], [1], [0, 0, 1, 1], [], []>} : vector<7x96xbf16>, vector<96x256xbf16>, vector<7x256xf32> -> vector<7x256xf32>
    %310 = arith.addf %306, %309 : vector<7x256xf32>
    %c2_274 = arith.constant 2 : index
    %c0_275 = arith.constant 0 : index
    %c0_276 = arith.constant 0 : index
    %311 = vector.load %arg1[%c2_274, %c0_275, %c0_276] : memref<5x96x256xbf16, #tpu.memory_space<vmem>>, vector<1x96x256xbf16>
    %312 = vector.shape_cast %311 : vector<1x96x256xbf16> to vector<96x256xbf16>
    %cst_277 = arith.constant dense<0.000000e+00> : vector<7x256xf32>
    %313 = tpu.matmul %248, %312, %cst_277 {dimension_numbers = #tpu.dot_dimension_numbers<[1], [0], [0], [1], [0, 0, 1, 1], [], []>} : vector<7x96xbf16>, vector<96x256xbf16>, vector<7x256xf32> -> vector<7x256xf32>
    %314 = arith.addf %310, %313 : vector<7x256xf32>
    %c3_278 = arith.constant 3 : index
    %c0_279 = arith.constant 0 : index
    %c0_280 = arith.constant 0 : index
    %315 = vector.load %arg1[%c3_278, %c0_279, %c0_280] : memref<5x96x256xbf16, #tpu.memory_space<vmem>>, vector<1x96x256xbf16>
    %316 = vector.shape_cast %315 : vector<1x96x256xbf16> to vector<96x256xbf16>
    %cst_281 = arith.constant dense<0.000000e+00> : vector<7x256xf32>
    %317 = tpu.matmul %251, %316, %cst_281 {dimension_numbers = #tpu.dot_dimension_numbers<[1], [0], [0], [1], [0, 0, 1, 1], [], []>} : vector<7x96xbf16>, vector<96x256xbf16>, vector<7x256xf32> -> vector<7x256xf32>
    %318 = arith.addf %314, %317 : vector<7x256xf32>
    %c4_282 = arith.constant 4 : index
    %c0_283 = arith.constant 0 : index
    %c0_284 = arith.constant 0 : index
    %319 = vector.load %arg1[%c4_282, %c0_283, %c0_284] : memref<5x96x256xbf16, #tpu.memory_space<vmem>>, vector<1x96x256xbf16>
    %320 = vector.shape_cast %319 : vector<1x96x256xbf16> to vector<96x256xbf16>
    %cst_285 = arith.constant dense<0.000000e+00> : vector<7x256xf32>
    %321 = tpu.matmul %254, %320, %cst_285 {dimension_numbers = #tpu.dot_dimension_numbers<[1], [0], [0], [1], [0, 0, 1, 1], [], []>} : vector<7x96xbf16>, vector<96x256xbf16>, vector<7x256xf32> -> vector<7x256xf32>
    %322 = arith.addf %318, %321 : vector<7x256xf32>
    %323 = vector.broadcast %0 : vector<1x256xf32> to vector<7x256xf32>
    %324 = arith.addf %322, %323 : vector<7x256xf32>
    %cst_286 = arith.constant 0.000000e+00 : f32
    %325 = vector.broadcast %cst_286 : f32 to vector<7x256xf32>
    %326 = arith.maximumf %324, %325 : vector<7x256xf32>
    %c0_287 = arith.constant 0 : index
    %c0_288 = arith.constant 0 : index
    %c0_289 = arith.constant 0 : index
    %327 = vector.load %arg1[%c0_287, %c0_288, %c0_289] : memref<5x96x256xbf16, #tpu.memory_space<vmem>>, vector<1x96x256xbf16>
    %328 = vector.shape_cast %327 : vector<1x96x256xbf16> to vector<96x256xbf16>
    %cst_290 = arith.constant dense<0.000000e+00> : vector<7x256xf32>
    %329 = tpu.matmul %245, %328, %cst_290 {dimension_numbers = #tpu.dot_dimension_numbers<[1], [0], [0], [1], [0, 0, 1, 1], [], []>} : vector<7x96xbf16>, vector<96x256xbf16>, vector<7x256xf32> -> vector<7x256xf32>
    %c1_291 = arith.constant 1 : index
    %c0_292 = arith.constant 0 : index
    %c0_293 = arith.constant 0 : index
    %330 = vector.load %arg1[%c1_291, %c0_292, %c0_293] : memref<5x96x256xbf16, #tpu.memory_space<vmem>>, vector<1x96x256xbf16>
    %331 = vector.shape_cast %330 : vector<1x96x256xbf16> to vector<96x256xbf16>
    %cst_294 = arith.constant dense<0.000000e+00> : vector<7x256xf32>
    %332 = tpu.matmul %248, %331, %cst_294 {dimension_numbers = #tpu.dot_dimension_numbers<[1], [0], [0], [1], [0, 0, 1, 1], [], []>} : vector<7x96xbf16>, vector<96x256xbf16>, vector<7x256xf32> -> vector<7x256xf32>
    %333 = arith.addf %329, %332 : vector<7x256xf32>
    %c2_295 = arith.constant 2 : index
    %c0_296 = arith.constant 0 : index
    %c0_297 = arith.constant 0 : index
    %334 = vector.load %arg1[%c2_295, %c0_296, %c0_297] : memref<5x96x256xbf16, #tpu.memory_space<vmem>>, vector<1x96x256xbf16>
    %335 = vector.shape_cast %334 : vector<1x96x256xbf16> to vector<96x256xbf16>
    %cst_298 = arith.constant dense<0.000000e+00> : vector<7x256xf32>
    %336 = tpu.matmul %251, %335, %cst_298 {dimension_numbers = #tpu.dot_dimension_numbers<[1], [0], [0], [1], [0, 0, 1, 1], [], []>} : vector<7x96xbf16>, vector<96x256xbf16>, vector<7x256xf32> -> vector<7x256xf32>
    %337 = arith.addf %333, %336 : vector<7x256xf32>
    %c3_299 = arith.constant 3 : index
    %c0_300 = arith.constant 0 : index
    %c0_301 = arith.constant 0 : index
    %338 = vector.load %arg1[%c3_299, %c0_300, %c0_301] : memref<5x96x256xbf16, #tpu.memory_space<vmem>>, vector<1x96x256xbf16>
    %339 = vector.shape_cast %338 : vector<1x96x256xbf16> to vector<96x256xbf16>
    %cst_302 = arith.constant dense<0.000000e+00> : vector<7x256xf32>
    %340 = tpu.matmul %254, %339, %cst_302 {dimension_numbers = #tpu.dot_dimension_numbers<[1], [0], [0], [1], [0, 0, 1, 1], [], []>} : vector<7x96xbf16>, vector<96x256xbf16>, vector<7x256xf32> -> vector<7x256xf32>
    %341 = arith.addf %337, %340 : vector<7x256xf32>
    %c4_303 = arith.constant 4 : index
    %c0_304 = arith.constant 0 : index
    %c0_305 = arith.constant 0 : index
    %342 = vector.load %arg1[%c4_303, %c0_304, %c0_305] : memref<5x96x256xbf16, #tpu.memory_space<vmem>>, vector<1x96x256xbf16>
    %343 = vector.shape_cast %342 : vector<1x96x256xbf16> to vector<96x256xbf16>
    %cst_306 = arith.constant dense<0.000000e+00> : vector<7x256xf32>
    %344 = tpu.matmul %257, %343, %cst_306 {dimension_numbers = #tpu.dot_dimension_numbers<[1], [0], [0], [1], [0, 0, 1, 1], [], []>} : vector<7x96xbf16>, vector<96x256xbf16>, vector<7x256xf32> -> vector<7x256xf32>
    %345 = arith.addf %341, %344 : vector<7x256xf32>
    %346 = vector.broadcast %0 : vector<1x256xf32> to vector<7x256xf32>
    %347 = arith.addf %345, %346 : vector<7x256xf32>
    %cst_307 = arith.constant 0.000000e+00 : f32
    %348 = vector.broadcast %cst_307 : f32 to vector<7x256xf32>
    %349 = arith.maximumf %347, %348 : vector<7x256xf32>
    %350 = arith.maximumf %280, %303 : vector<7x256xf32>
    %351 = vector.extract_strided_slice %350 {offsets = [0, 0], sizes = [7, 128], strides = [1, 1]} : vector<7x256xf32> to vector<7x128xf32>
    %352 = vector.extract_strided_slice %350 {offsets = [0, 128], sizes = [7, 128], strides = [1, 1]} : vector<7x256xf32> to vector<7x128xf32>
    %353 = arith.maximumf %351, %352 : vector<7x128xf32>
    %354 = arith.maximumf %326, %349 : vector<7x256xf32>
    %355 = vector.extract_strided_slice %354 {offsets = [0, 0], sizes = [7, 128], strides = [1, 1]} : vector<7x256xf32> to vector<7x128xf32>
    %356 = vector.extract_strided_slice %354 {offsets = [0, 128], sizes = [7, 128], strides = [1, 1]} : vector<7x256xf32> to vector<7x128xf32>
    %357 = arith.maximumf %355, %356 : vector<7x128xf32>
    %358 = vector.extract_strided_slice %353 {offsets = [0, 0], sizes = [5, 128], strides = [1, 1]} : vector<7x128xf32> to vector<5x128xf32>
    %359 = arith.truncf %358 : vector<5x128xf32> to vector<5x128xbf16>
    %360 = vector.extract_strided_slice %357 {offsets = [0, 0], sizes = [5, 128], strides = [1, 1]} : vector<7x128xf32> to vector<5x128xf32>
    %361 = arith.truncf %360 : vector<5x128xf32> to vector<5x128xbf16>
    %362 = vector.extract_strided_slice %353 {offsets = [1, 0], sizes = [5, 128], strides = [1, 1]} : vector<7x128xf32> to vector<5x128xf32>
    %363 = arith.truncf %362 : vector<5x128xf32> to vector<5x128xbf16>
    %364 = vector.extract_strided_slice %357 {offsets = [1, 0], sizes = [5, 128], strides = [1, 1]} : vector<7x128xf32> to vector<5x128xf32>
    %365 = arith.truncf %364 : vector<5x128xf32> to vector<5x128xbf16>
    %366 = vector.extract_strided_slice %353 {offsets = [2, 0], sizes = [5, 128], strides = [1, 1]} : vector<7x128xf32> to vector<5x128xf32>
    %367 = arith.truncf %366 : vector<5x128xf32> to vector<5x128xbf16>
    %368 = vector.extract_strided_slice %357 {offsets = [2, 0], sizes = [5, 128], strides = [1, 1]} : vector<7x128xf32> to vector<5x128xf32>
    %369 = arith.truncf %368 : vector<5x128xf32> to vector<5x128xbf16>
    %c0_308 = arith.constant 0 : index
    %c0_309 = arith.constant 0 : index
    %c0_310 = arith.constant 0 : index
    %370 = vector.load %arg3[%c0_308, %c0_309, %c0_310] : memref<5x128x256xbf16, #tpu.memory_space<vmem>>, vector<1x128x256xbf16>
    %371 = vector.shape_cast %370 : vector<1x128x256xbf16> to vector<128x256xbf16>
    %cst_311 = arith.constant dense<0.000000e+00> : vector<5x256xf32>
    %372 = tpu.matmul %359, %371, %cst_311 {dimension_numbers = #tpu.dot_dimension_numbers<[1], [0], [0], [1], [0, 0, 1, 1], [], []>} : vector<5x128xbf16>, vector<128x256xbf16>, vector<5x256xf32> -> vector<5x256xf32>
    %c1_312 = arith.constant 1 : index
    %c0_313 = arith.constant 0 : index
    %c0_314 = arith.constant 0 : index
    %373 = vector.load %arg3[%c1_312, %c0_313, %c0_314] : memref<5x128x256xbf16, #tpu.memory_space<vmem>>, vector<1x128x256xbf16>
    %374 = vector.shape_cast %373 : vector<1x128x256xbf16> to vector<128x256xbf16>
    %cst_315 = arith.constant dense<0.000000e+00> : vector<5x256xf32>
    %375 = tpu.matmul %361, %374, %cst_315 {dimension_numbers = #tpu.dot_dimension_numbers<[1], [0], [0], [1], [0, 0, 1, 1], [], []>} : vector<5x128xbf16>, vector<128x256xbf16>, vector<5x256xf32> -> vector<5x256xf32>
    %376 = arith.addf %372, %375 : vector<5x256xf32>
    %c2_316 = arith.constant 2 : index
    %c0_317 = arith.constant 0 : index
    %c0_318 = arith.constant 0 : index
    %377 = vector.load %arg3[%c2_316, %c0_317, %c0_318] : memref<5x128x256xbf16, #tpu.memory_space<vmem>>, vector<1x128x256xbf16>
    %378 = vector.shape_cast %377 : vector<1x128x256xbf16> to vector<128x256xbf16>
    %cst_319 = arith.constant dense<0.000000e+00> : vector<5x256xf32>
    %379 = tpu.matmul %363, %378, %cst_319 {dimension_numbers = #tpu.dot_dimension_numbers<[1], [0], [0], [1], [0, 0, 1, 1], [], []>} : vector<5x128xbf16>, vector<128x256xbf16>, vector<5x256xf32> -> vector<5x256xf32>
    %380 = arith.addf %376, %379 : vector<5x256xf32>
    %c3_320 = arith.constant 3 : index
    %c0_321 = arith.constant 0 : index
    %c0_322 = arith.constant 0 : index
    %381 = vector.load %arg3[%c3_320, %c0_321, %c0_322] : memref<5x128x256xbf16, #tpu.memory_space<vmem>>, vector<1x128x256xbf16>
    %382 = vector.shape_cast %381 : vector<1x128x256xbf16> to vector<128x256xbf16>
    %cst_323 = arith.constant dense<0.000000e+00> : vector<5x256xf32>
    %383 = tpu.matmul %365, %382, %cst_323 {dimension_numbers = #tpu.dot_dimension_numbers<[1], [0], [0], [1], [0, 0, 1, 1], [], []>} : vector<5x128xbf16>, vector<128x256xbf16>, vector<5x256xf32> -> vector<5x256xf32>
    %384 = arith.addf %380, %383 : vector<5x256xf32>
    %c4_324 = arith.constant 4 : index
    %c0_325 = arith.constant 0 : index
    %c0_326 = arith.constant 0 : index
    %385 = vector.load %arg3[%c4_324, %c0_325, %c0_326] : memref<5x128x256xbf16, #tpu.memory_space<vmem>>, vector<1x128x256xbf16>
    %386 = vector.shape_cast %385 : vector<1x128x256xbf16> to vector<128x256xbf16>
    %cst_327 = arith.constant dense<0.000000e+00> : vector<5x256xf32>
    %387 = tpu.matmul %367, %386, %cst_327 {dimension_numbers = #tpu.dot_dimension_numbers<[1], [0], [0], [1], [0, 0, 1, 1], [], []>} : vector<5x128xbf16>, vector<128x256xbf16>, vector<5x256xf32> -> vector<5x256xf32>
    %388 = arith.addf %384, %387 : vector<5x256xf32>
    %389 = vector.broadcast %1 : vector<1x256xf32> to vector<5x256xf32>
    %390 = arith.addf %388, %389 : vector<5x256xf32>
    %cst_328 = arith.constant 0.000000e+00 : f32
    %391 = vector.broadcast %cst_328 : f32 to vector<5x256xf32>
    %392 = arith.maximumf %390, %391 : vector<5x256xf32>
    %c0_329 = arith.constant 0 : index
    %c0_330 = arith.constant 0 : index
    %c0_331 = arith.constant 0 : index
    %393 = vector.load %arg3[%c0_329, %c0_330, %c0_331] : memref<5x128x256xbf16, #tpu.memory_space<vmem>>, vector<1x128x256xbf16>
    %394 = vector.shape_cast %393 : vector<1x128x256xbf16> to vector<128x256xbf16>
    %cst_332 = arith.constant dense<0.000000e+00> : vector<5x256xf32>
    %395 = tpu.matmul %361, %394, %cst_332 {dimension_numbers = #tpu.dot_dimension_numbers<[1], [0], [0], [1], [0, 0, 1, 1], [], []>} : vector<5x128xbf16>, vector<128x256xbf16>, vector<5x256xf32> -> vector<5x256xf32>
    %c1_333 = arith.constant 1 : index
    %c0_334 = arith.constant 0 : index
    %c0_335 = arith.constant 0 : index
    %396 = vector.load %arg3[%c1_333, %c0_334, %c0_335] : memref<5x128x256xbf16, #tpu.memory_space<vmem>>, vector<1x128x256xbf16>
    %397 = vector.shape_cast %396 : vector<1x128x256xbf16> to vector<128x256xbf16>
    %cst_336 = arith.constant dense<0.000000e+00> : vector<5x256xf32>
    %398 = tpu.matmul %363, %397, %cst_336 {dimension_numbers = #tpu.dot_dimension_numbers<[1], [0], [0], [1], [0, 0, 1, 1], [], []>} : vector<5x128xbf16>, vector<128x256xbf16>, vector<5x256xf32> -> vector<5x256xf32>
    %399 = arith.addf %395, %398 : vector<5x256xf32>
    %c2_337 = arith.constant 2 : index
    %c0_338 = arith.constant 0 : index
    %c0_339 = arith.constant 0 : index
    %400 = vector.load %arg3[%c2_337, %c0_338, %c0_339] : memref<5x128x256xbf16, #tpu.memory_space<vmem>>, vector<1x128x256xbf16>
    %401 = vector.shape_cast %400 : vector<1x128x256xbf16> to vector<128x256xbf16>
    %cst_340 = arith.constant dense<0.000000e+00> : vector<5x256xf32>
    %402 = tpu.matmul %365, %401, %cst_340 {dimension_numbers = #tpu.dot_dimension_numbers<[1], [0], [0], [1], [0, 0, 1, 1], [], []>} : vector<5x128xbf16>, vector<128x256xbf16>, vector<5x256xf32> -> vector<5x256xf32>
    %403 = arith.addf %399, %402 : vector<5x256xf32>
    %c3_341 = arith.constant 3 : index
    %c0_342 = arith.constant 0 : index
    %c0_343 = arith.constant 0 : index
    %404 = vector.load %arg3[%c3_341, %c0_342, %c0_343] : memref<5x128x256xbf16, #tpu.memory_space<vmem>>, vector<1x128x256xbf16>
    %405 = vector.shape_cast %404 : vector<1x128x256xbf16> to vector<128x256xbf16>
    %cst_344 = arith.constant dense<0.000000e+00> : vector<5x256xf32>
    %406 = tpu.matmul %367, %405, %cst_344 {dimension_numbers = #tpu.dot_dimension_numbers<[1], [0], [0], [1], [0, 0, 1, 1], [], []>} : vector<5x128xbf16>, vector<128x256xbf16>, vector<5x256xf32> -> vector<5x256xf32>
    %407 = arith.addf %403, %406 : vector<5x256xf32>
    %c4_345 = arith.constant 4 : index
    %c0_346 = arith.constant 0 : index
    %c0_347 = arith.constant 0 : index
    %408 = vector.load %arg3[%c4_345, %c0_346, %c0_347] : memref<5x128x256xbf16, #tpu.memory_space<vmem>>, vector<1x128x256xbf16>
    %409 = vector.shape_cast %408 : vector<1x128x256xbf16> to vector<128x256xbf16>
    %cst_348 = arith.constant dense<0.000000e+00> : vector<5x256xf32>
    %410 = tpu.matmul %369, %409, %cst_348 {dimension_numbers = #tpu.dot_dimension_numbers<[1], [0], [0], [1], [0, 0, 1, 1], [], []>} : vector<5x128xbf16>, vector<128x256xbf16>, vector<5x256xf32> -> vector<5x256xf32>
    %411 = arith.addf %407, %410 : vector<5x256xf32>
    %412 = vector.broadcast %1 : vector<1x256xf32> to vector<5x256xf32>
    %413 = arith.addf %411, %412 : vector<5x256xf32>
    %cst_349 = arith.constant 0.000000e+00 : f32
    %414 = vector.broadcast %cst_349 : f32 to vector<5x256xf32>
    %415 = arith.maximumf %413, %414 : vector<5x256xf32>
    %416 = arith.maximumf %392, %415 : vector<5x256xf32>
    %417 = vector.extract_strided_slice %416 {offsets = [0, 0], sizes = [5, 128], strides = [1, 1]} : vector<5x256xf32> to vector<5x128xf32>
    %418 = vector.extract_strided_slice %416 {offsets = [0, 128], sizes = [5, 128], strides = [1, 1]} : vector<5x256xf32> to vector<5x128xf32>
    %419 = arith.maximumf %417, %418 : vector<5x128xf32>
    %420 = vector.extract_strided_slice %419 {offsets = [0, 0], sizes = [1, 128], strides = [1, 1]} : vector<5x128xf32> to vector<1x128xf32>
    %421 = arith.truncf %420 : vector<1x128xf32> to vector<1x128xbf16>
    %c0_350 = arith.constant 0 : index
    %c0_351 = arith.constant 0 : index
    %c0_352 = arith.constant 0 : index
    %422 = vector.load %arg5[%c0_350, %c0_351, %c0_352] : memref<5x128x120xbf16, #tpu.memory_space<vmem>>, vector<1x128x120xbf16>
    %423 = vector.shape_cast %422 : vector<1x128x120xbf16> to vector<128x120xbf16>
    %cst_353 = arith.constant dense<0.000000e+00> : vector<1x120xf32>
    %424 = tpu.matmul %421, %423, %cst_353 {dimension_numbers = #tpu.dot_dimension_numbers<[1], [0], [0], [1], [0, 0, 1, 1], [], []>} : vector<1x128xbf16>, vector<128x120xbf16>, vector<1x120xf32> -> vector<1x120xf32>
    %425 = vector.extract_strided_slice %419 {offsets = [1, 0], sizes = [1, 128], strides = [1, 1]} : vector<5x128xf32> to vector<1x128xf32>
    %426 = arith.truncf %425 : vector<1x128xf32> to vector<1x128xbf16>
    %c1_354 = arith.constant 1 : index
    %c0_355 = arith.constant 0 : index
    %c0_356 = arith.constant 0 : index
    %427 = vector.load %arg5[%c1_354, %c0_355, %c0_356] : memref<5x128x120xbf16, #tpu.memory_space<vmem>>, vector<1x128x120xbf16>
    %428 = vector.shape_cast %427 : vector<1x128x120xbf16> to vector<128x120xbf16>
    %cst_357 = arith.constant dense<0.000000e+00> : vector<1x120xf32>
    %429 = tpu.matmul %426, %428, %cst_357 {dimension_numbers = #tpu.dot_dimension_numbers<[1], [0], [0], [1], [0, 0, 1, 1], [], []>} : vector<1x128xbf16>, vector<128x120xbf16>, vector<1x120xf32> -> vector<1x120xf32>
    %430 = arith.addf %424, %429 : vector<1x120xf32>
    %431 = vector.extract_strided_slice %419 {offsets = [2, 0], sizes = [1, 128], strides = [1, 1]} : vector<5x128xf32> to vector<1x128xf32>
    %432 = arith.truncf %431 : vector<1x128xf32> to vector<1x128xbf16>
    %c2_358 = arith.constant 2 : index
    %c0_359 = arith.constant 0 : index
    %c0_360 = arith.constant 0 : index
    %433 = vector.load %arg5[%c2_358, %c0_359, %c0_360] : memref<5x128x120xbf16, #tpu.memory_space<vmem>>, vector<1x128x120xbf16>
    %434 = vector.shape_cast %433 : vector<1x128x120xbf16> to vector<128x120xbf16>
    %cst_361 = arith.constant dense<0.000000e+00> : vector<1x120xf32>
    %435 = tpu.matmul %432, %434, %cst_361 {dimension_numbers = #tpu.dot_dimension_numbers<[1], [0], [0], [1], [0, 0, 1, 1], [], []>} : vector<1x128xbf16>, vector<128x120xbf16>, vector<1x120xf32> -> vector<1x120xf32>
    %436 = arith.addf %430, %435 : vector<1x120xf32>
    %437 = vector.extract_strided_slice %419 {offsets = [3, 0], sizes = [1, 128], strides = [1, 1]} : vector<5x128xf32> to vector<1x128xf32>
    %438 = arith.truncf %437 : vector<1x128xf32> to vector<1x128xbf16>
    %c3_362 = arith.constant 3 : index
    %c0_363 = arith.constant 0 : index
    %c0_364 = arith.constant 0 : index
    %439 = vector.load %arg5[%c3_362, %c0_363, %c0_364] : memref<5x128x120xbf16, #tpu.memory_space<vmem>>, vector<1x128x120xbf16>
    %440 = vector.shape_cast %439 : vector<1x128x120xbf16> to vector<128x120xbf16>
    %cst_365 = arith.constant dense<0.000000e+00> : vector<1x120xf32>
    %441 = tpu.matmul %438, %440, %cst_365 {dimension_numbers = #tpu.dot_dimension_numbers<[1], [0], [0], [1], [0, 0, 1, 1], [], []>} : vector<1x128xbf16>, vector<128x120xbf16>, vector<1x120xf32> -> vector<1x120xf32>
    %442 = arith.addf %436, %441 : vector<1x120xf32>
    %443 = vector.extract_strided_slice %419 {offsets = [4, 0], sizes = [1, 128], strides = [1, 1]} : vector<5x128xf32> to vector<1x128xf32>
    %444 = arith.truncf %443 : vector<1x128xf32> to vector<1x128xbf16>
    %c4_366 = arith.constant 4 : index
    %c0_367 = arith.constant 0 : index
    %c0_368 = arith.constant 0 : index
    %445 = vector.load %arg5[%c4_366, %c0_367, %c0_368] : memref<5x128x120xbf16, #tpu.memory_space<vmem>>, vector<1x128x120xbf16>
    %446 = vector.shape_cast %445 : vector<1x128x120xbf16> to vector<128x120xbf16>
    %cst_369 = arith.constant dense<0.000000e+00> : vector<1x120xf32>
    %447 = tpu.matmul %444, %446, %cst_369 {dimension_numbers = #tpu.dot_dimension_numbers<[1], [0], [0], [1], [0, 0, 1, 1], [], []>} : vector<1x128xbf16>, vector<128x120xbf16>, vector<1x120xf32> -> vector<1x120xf32>
    %448 = arith.addf %442, %447 : vector<1x120xf32>
    %449 = arith.addf %448, %2 : vector<1x120xf32>
    %cst_370 = arith.constant 0.000000e+00 : f32
    %450 = vector.broadcast %cst_370 : f32 to vector<1x120xf32>
    %451 = arith.maximumf %449, %450 : vector<1x120xf32>
    %452 = arith.truncf %451 : vector<1x120xf32> to vector<1x120xbf16>
    %c0_371 = arith.constant 0 : index
    %c0_372 = arith.constant 0 : index
    %453 = vector.load %arg7[%c0_371, %c0_372] : memref<120x90xbf16, #tpu.memory_space<vmem>>, vector<120x90xbf16>
    %cst_373 = arith.constant dense<0.000000e+00> : vector<1x90xf32>
    %454 = tpu.matmul %452, %453, %cst_373 {dimension_numbers = #tpu.dot_dimension_numbers<[1], [0], [0], [1], [0, 0, 1, 1], [], []>} : vector<1x120xbf16>, vector<120x90xbf16>, vector<1x90xf32> -> vector<1x90xf32>
    %455 = arith.addf %454, %3 : vector<1x90xf32>
    %cst_374 = arith.constant 0.000000e+00 : f32
    %456 = vector.broadcast %cst_374 : f32 to vector<1x90xf32>
    %457 = arith.maximumf %455, %456 : vector<1x90xf32>
    %458 = arith.truncf %457 : vector<1x90xf32> to vector<1x90xbf16>
    %c0_375 = arith.constant 0 : index
    %c0_376 = arith.constant 0 : index
    %459 = vector.load %arg9[%c0_375, %c0_376] : memref<90x10xbf16, #tpu.memory_space<vmem>>, vector<90x10xbf16>
    %cst_377 = arith.constant dense<0.000000e+00> : vector<1x10xf32>
    %460 = tpu.matmul %458, %459, %cst_377 {dimension_numbers = #tpu.dot_dimension_numbers<[1], [0], [0], [1], [0, 0, 1, 1], [], []>} : vector<1x90xbf16>, vector<90x10xbf16>, vector<1x10xf32> -> vector<1x10xf32>
    %461 = arith.addf %460, %4 : vector<1x10xf32>
    %c1_378 = arith.constant 1 : index
    %c0_379 = arith.constant 0 : index
    %462 = vector.load %arg11[%c1_378, %c0_379] : memref<2x10xf32, #tpu.memory_space<vmem>>, vector<1x10xf32>
    tpu.vector_store %arg11[%c1_378, %c0_379], %461 {strides = array<i32>} : memref<2x10xf32, #tpu.memory_space<vmem>>, vector<1x10xf32>,
    return
  }
}

</mosaic_0001>

<llo_original>
// kernel: convnet_forward.1
$region0: #{convnet_forward.1}
  #allocation0 [shape = 'u32[]', space=smem, size = 0x4, offset = 0x4, fixed_abs, tag = 'smem constant byte address 0x4 - core index']
  #allocation1 [shape = 'u32[72,128]{1,0:T(1,128)}', space=vmem, size = 0x9000, scoped, tag = 'internal scratch']
  %s0 = inlined_call_operand.vmem [shape: f32[2,4,8,96], index: 0, kind: input, shape index: {}]
  %s1 = inlined_call_operand.vmem [shape: bf16[5,96,256], index: 1, kind: input, shape index: {}]
  %s2 = inlined_call_operand.vmem [shape: f32[1,256], index: 2, kind: input, shape index: {}]
  %s3 = inlined_call_operand.vmem [shape: bf16[5,128,256], index: 3, kind: input, shape index: {}]
  %s4 = inlined_call_operand.vmem [shape: f32[1,256], index: 4, kind: input, shape index: {}]
  %s5 = inlined_call_operand.vmem [shape: bf16[5,128,120], index: 5, kind: input, shape index: {}]
  %s6 = inlined_call_operand.vmem [shape: f32[1,120], index: 6, kind: input, shape index: {}]
  %s7 = inlined_call_operand.vmem [shape: bf16[120,90], index: 7, kind: input, shape index: {}]
  %s8 = inlined_call_operand.vmem [shape: f32[1,90], index: 8, kind: input, shape index: {}]
  %s9 = inlined_call_operand.vmem [shape: bf16[90,10], index: 9, kind: input, shape index: {}]
  %s10 = inlined_call_operand.vmem [shape: f32[1,10], index: 10, kind: input, shape index: {}]
  %s11 = inlined_call_operand.hbm [shape: f32[2,10], index: 11, kind: output, shape index: {}]
  %s12 = sld [smem:[#allocation0]]
  $region54: #{convnet_forward.1} parent=0
    _
  %s14 = ssub.s32 1, %s12
  %s15 = scalar_select 0, %s14, %s12
  $region1: #{convnet_forward.1} parent=0
    #allocation2 [shape = 'u8[1024]{0}', space=vmem, size = 0x400, scoped, tag = 'output window, operand 0, single buffered']
    #allocation3 [shape = 's32[1]{0}', space=sflag, size = 0x4, scoped, tag = 'scoped memory for convnet_forward.1']
    %16 = vsyncpa [#allocation3], 0
    // Predicated region
    $region2: #{convnet_forward.1} parent=1 // pred_check
      _
    $region3: #{convnet_forward.1} parent=1 // pred_check_branch
      %18 = sbr.rel (0) target = $region5
    $region4: #{convnet_forward.1} parent=1 // pred_region
      _
    $region5: #{convnet_forward.1} parent=1 // pred_fallthru
      _
    // Predicated region
    $region6: #{convnet_forward.1} parent=1 // pred_check
      _
    $region7: #{convnet_forward.1} parent=1 // pred_check_branch
      %20 = sbr.rel (0) target = $region9
    $region8: #{convnet_forward.1} parent=1 // pred_region
      _
    $region9: #{convnet_forward.1} parent=1 // pred_fallthru
      _
    // Predicated region
    $region10: #{convnet_forward.1} parent=1 // pred_check
      _
    $region11: #{convnet_forward.1} parent=1 // pred_check_branch
      %22 = sbr.rel (0) target = $region13
    $region12: #{convnet_forward.1} parent=1 // pred_region
      _
    $region13: #{convnet_forward.1} parent=1 // pred_fallthru
      _
    // Predicated region
    $region14: #{convnet_forward.1} parent=1 // pred_check
      _
    $region15: #{convnet_forward.1} parent=1 // pred_check_branch
      %24 = sbr.rel (0) target = $region17
    $region16: #{convnet_forward.1} parent=1 // pred_region
      _
    $region17: #{convnet_forward.1} parent=1 // pred_fallthru
      _
    // Predicated region
    $region18: #{convnet_forward.1} parent=1 // pred_check
      _
    $region19: #{convnet_forward.1} parent=1 // pred_check_branch
      %26 = sbr.rel (0) target = $region21
    $region20: #{convnet_forward.1} parent=1 // pred_region
      _
    $region21: #{convnet_forward.1} parent=1 // pred_fallthru
      _
    // Predicated region
    $region22: #{convnet_forward.1} parent=1 // pred_check
      _
    $region23: #{convnet_forward.1} parent=1 // pred_check_branch
      %28 = sbr.rel (0) target = $region25
    $region24: #{convnet_forward.1} parent=1 // pred_region
      _
    $region25: #{convnet_forward.1} parent=1 // pred_fallthru
      _
    // Predicated region
    $region26: #{convnet_forward.1} parent=1 // pred_check
      _
    $region27: #{convnet_forward.1} parent=1 // pred_check_branch
      %30 = sbr.rel (0) target = $region29
    $region28: #{convnet_forward.1} parent=1 // pred_region
      _
    $region29: #{convnet_forward.1} parent=1 // pred_fallthru
      _
    // Predicated region
    $region30: #{convnet_forward.1} parent=1 // pred_check
      _
    $region31: #{convnet_forward.1} parent=1 // pred_check_branch
      %32 = sbr.rel (0) target = $region33
    $region32: #{convnet_forward.1} parent=1 // pred_region
      _
    $region33: #{convnet_forward.1} parent=1 // pred_fallthru
      _
    // Predicated region
    $region34: #{convnet_forward.1} parent=1 // pred_check
      _
    $region35: #{convnet_forward.1} parent=1 // pred_check_branch
      %34 = sbr.rel (0) target = $region37
    $region36: #{convnet_forward.1} parent=1 // pred_region
      _
    $region37: #{convnet_forward.1} parent=1 // pred_fallthru
      _
    // Predicated region
    $region38: #{convnet_forward.1} parent=1 // pred_check
      _
    $region39: #{convnet_forward.1} parent=1 // pred_check_branch
      %36 = sbr.rel (0) target = $region41
    $region40: #{convnet_forward.1} parent=1 // pred_region
      _
    $region41: #{convnet_forward.1} parent=1 // pred_fallthru
      _
    // Predicated region
    $region42: #{convnet_forward.1} parent=1 // pred_check
      _
    $region43: #{convnet_forward.1} parent=1 // pred_check_branch
      %38 = sbr.rel (0) target = $region45
    $region44: #{convnet_forward.1} parent=1 // pred_region
      _
    $region45: #{convnet_forward.1} parent=1 // pred_fallthru
      _
    %v40 = vld [vmem:[%s2] sm:$0x3]
    %v41 = vld [vmem:[%s4] sm:$0x3]
    %v42 = vld [vmem:[%s6] sm:$0x1]
    %v43 = vld [vmem:[%s8] sm:$0x1]
    %v44 = vld [vmem:[%s10] sm:$0x1]
    %v45 = vld [vmem:[%s0] sm:$0x7f]
    %v46 = vpack.c.bf16 %v45, %v45
    %s47 = scalar_lea.vmem %s0, 8
    %v48 = vld [vmem:[%s47] sm:$0x7f]
    %v49 = vpack.c.bf16 %v48, %v48
    %s50 = scalar_lea.vmem %s0, 16
    %v51 = vld [vmem:[%s50] sm:$0x7f]
    %v52 = vpack.c.bf16 %v51, %v51
    %s53 = scalar_lea.vmem %s0, 24
    %v54 = vld [vmem:[%s53] sm:$0x7f]
    %v55 = vpack.c.bf16 %v54, %v54
    %v56 = vld [vmem:[%s0 + $0x1] sm:$0x7f]
    %v57 = vpack.c.bf16 %v56, %v56
    %v58 = vld [vmem:[%s47 + $0x1] sm:$0x7f]
    %v59 = vpack.c.bf16 %v58, %v58
    %v60 = vld [vmem:[%s50 + $0x1] sm:$0x7f]
    %v61 = vpack.c.bf16 %v60, %v60
    %v62 = vld [vmem:[%s53 + $0x1] sm:$0x7f]
    %v63 = vpack.c.bf16 %v62, %v62
    %v64 = vld [vmem:[%s1] sm:$0xff]
    %v65 = vld [vmem:[%s1 + $0x8] sm:$0xff]
    %v66 = vld [vmem:[%s1 + $0x10] sm:$0xff]
    %v67 = vld [vmem:[%s1 + $0x18] sm:$0xff]
    %v68 = vld [vmem:[%s1 + $0x20] sm:$0xff]
    %v69 = vld [vmem:[%s1 + $0x28] sm:$0xff]
    %v70 = vld [vmem:[%s1 + $0x30] sm:$0xff]
    %v71 = vld [vmem:[%s1 + $0x38] sm:$0xff]
    %v72 = vld [vmem:[%s1 + $0x40] sm:$0xff]
    %v73 = vld [vmem:[%s1 + $0x48] sm:$0xff]
    %v74 = vld [vmem:[%s1 + $0x50] sm:$0xff]
    %v75 = vld [vmem:[%s1 + $0x58] sm:$0xff]
    %s76 = scalar_lea.vmem %s1, 96
    %v77 = vld [vmem:[%s76] sm:$0xff]
    %v78 = vld [vmem:[%s76 + $0x8] sm:$0xff]
    %v79 = vld [vmem:[%s76 + $0x10] sm:$0xff]
    %v80 = vld [vmem:[%s76 + $0x18] sm:$0xff]
    %v81 = vld [vmem:[%s76 + $0x20] sm:$0xff]
    %v82 = vld [vmem:[%s76 + $0x28] sm:$0xff]
    %v83 = vld [vmem:[%s76 + $0x30] sm:$0xff]
    %v84 = vld [vmem:[%s76 + $0x38] sm:$0xff]
    %v85 = vld [vmem:[%s76 + $0x40] sm:$0xff]
    %v86 = vld [vmem:[%s76 + $0x48] sm:$0xff]
    %v87 = vld [vmem:[%s76 + $0x50] sm:$0xff]
    %v88 = vld [vmem:[%s76 + $0x58] sm:$0xff]
    %v101 = vunpack.c.l.b16 %v77
    %v102 = vunpack.c.h.b16 %v77
    %v103 = vunpack.c.l.b16 %v78
    %v104 = vunpack.c.h.b16 %v78
    %v105 = vunpack.c.l.b16 %v79
    %v106 = vunpack.c.h.b16 %v79
    %v107 = vunpack.c.l.b16 %v80
    %v108 = vunpack.c.h.b16 %v80
    %v109 = vunpack.c.l.b16 %v81
    %v110 = vunpack.c.h.b16 %v81
    %v111 = vunpack.c.l.b16 %v82
    %v112 = vunpack.c.h.b16 %v82
    %v113 = vunpack.c.l.b16 %v83
    %v114 = vunpack.c.h.b16 %v83
    %v115 = vunpack.c.l.b16 %v84
    %v116 = vunpack.c.h.b16 %v84
    %v117 = vunpack.c.l.b16 %v85
    %v118 = vunpack.c.h.b16 %v85
    %v119 = vunpack.c.l.b16 %v86
    %v120 = vunpack.c.h.b16 %v86
    %v121 = vunpack.c.l.b16 %v87
    %v122 = vunpack.c.h.b16 %v87
    %v123 = vunpack.c.l.b16 %v88
    %v124 = vunpack.c.h.b16 %v88
    %v125 = vpack.c.b16 %v103, %v101
    %v126 = vpack.c.b16 %v104, %v102
    %v127 = vpack.c.b16 %v107, %v105
    %v128 = vpack.c.b16 %v108, %v106
    %v129 = vpack.c.b16 %v111, %v109
    %v130 = vpack.c.b16 %v112, %v110
    %v131 = vpack.c.b16 %v115, %v113
    %v132 = vpack.c.b16 %v116, %v114
    %v133 = vpack.c.b16 %v119, %v117
    %v134 = vpack.c.b16 %v120, %v118
    %v135 = vpack.c.b16 %v123, %v121
    %v136 = vpack.c.b16 %v124, %v122
    %vm149 = vcmask 785408
    %v151 = vsel %vm149, %v49, 0
    %153 = vmatpush.bf16.msra.mxu0 0
    %154 = vmatpush.bf16.msra.mxu0 0
    %155 = vmatpush.bf16.msra.mxu0 %v135
    %156 = vmatpush.bf16.msra.mxu0 %v133
    %157 = vmatpush.bf16.msra.mxu0 %v131
    %158 = vmatpush.bf16.msra.mxu0 %v129
    %159 = vmatpush.bf16.msra.mxu0 %v127
    %160 = vmatpush.bf16.msra.mxu0 %v125
    %161 = vmatmul.bf16.gmra.mxu0 %v151
    %v162 = vpop.f32.mrf.mxu0
    %v163 = vadd.f32 0.0, %v162
    %v164 = vpop.f32.mrf.mxu0
    %165 = vdwg.mxu0
    %166 = vmatpush.bf16.msra.mxu0 0
    %167 = vmatpush.bf16.msra.mxu0 0
    %168 = vmatpush.bf16.msra.mxu0 %v136
    %169 = vmatpush.bf16.msra.mxu0 %v134
    %170 = vmatpush.bf16.msra.mxu0 %v132
    %171 = vmatpush.bf16.msra.mxu0 %v130
    %172 = vmatpush.bf16.msra.mxu0 %v128
    %173 = vmatpush.bf16.msra.mxu0 %v126
    %174 = vmatmul.bf16.gmra.mxu0 %v151
    %v175 = vpop.f32.mrf.mxu0
    %v176 = vadd.f32 0.0, %v175
    %v177 = vpop.f32.mrf.mxu0
    %178 = vdwg.mxu0
    %v191 = vunpack.c.l.b16 %v64
    %v192 = vunpack.c.h.b16 %v64
    %v193 = vunpack.c.l.b16 %v65
    %v194 = vunpack.c.h.b16 %v65
    %v195 = vunpack.c.l.b16 %v66
    %v196 = vunpack.c.h.b16 %v66
    %v197 = vunpack.c.l.b16 %v67
    %v198 = vunpack.c.h.b16 %v67
    %v199 = vunpack.c.l.b16 %v68
    %v200 = vunpack.c.h.b16 %v68
    %v201 = vunpack.c.l.b16 %v69
    %v202 = vunpack.c.h.b16 %v69
    %v203 = vunpack.c.l.b16 %v70
    %v204 = vunpack.c.h.b16 %v70
    %v205 = vunpack.c.l.b16 %v71
    %v206 = vunpack.c.h.b16 %v71
    %v207 = vunpack.c.l.b16 %v72
    %v208 = vunpack.c.h.b16 %v72
    %v209 = vunpack.c.l.b16 %v73
    %v210 = vunpack.c.h.b16 %v73
    %v211 = vunpack.c.l.b16 %v74
    %v212 = vunpack.c.h.b16 %v74
    %v213 = vunpack.c.l.b16 %v75
    %v214 = vunpack.c.h.b16 %v75
    %v215 = vpack.c.b16 %v193, %v191
    %v216 = vpack.c.b16 %v194, %v192
    %v217 = vpack.c.b16 %v197, %v195
    %v218 = vpack.c.b16 %v198, %v196
    %v219 = vpack.c.b16 %v201, %v199
    %v220 = vpack.c.b16 %v202, %v200
    %v221 = vpack.c.b16 %v205, %v203
    %v222 = vpack.c.b16 %v206, %v204
    %v223 = vpack.c.b16 %v209, %v207
    %v224 = vpack.c.b16 %v210, %v208
    %v225 = vpack.c.b16 %v213, %v211
    %v226 = vpack.c.b16 %v214, %v212
    %v240 = vsel %vm149, %v46, 0
    %242 = vmatpush.bf16.msra.mxu0 0
    %243 = vmatpush.bf16.msra.mxu0 0
    %244 = vmatpush.bf16.msra.mxu0 %v225
    %245 = vmatpush.bf16.msra.mxu0 %v223
    %246 = vmatpush.bf16.msra.mxu0 %v221
    %247 = vmatpush.bf16.msra.mxu0 %v219
    %248 = vmatpush.bf16.msra.mxu0 %v217
    %249 = vmatpush.bf16.msra.mxu0 %v215
    %250 = vmatmul.bf16.gmra.mxu0 %v240
    %v251 = vpop.f32.mrf.mxu0
    %v252 = vadd.f32 %v163, %v251
    %v253 = vpop.f32.mrf.mxu0
    %254 = vdwg.mxu0
    %255 = vmatpush.bf16.msra.mxu0 0
    %256 = vmatpush.bf16.msra.mxu0 0
    %257 = vmatpush.bf16.msra.mxu0 %v226
    %258 = vmatpush.bf16.msra.mxu0 %v224
    %259 = vmatpush.bf16.msra.mxu0 %v222
    %260 = vmatpush.bf16.msra.mxu0 %v220
    %261 = vmatpush.bf16.msra.mxu0 %v218
    %262 = vmatpush.bf16.msra.mxu0 %v216
    %263 = vmatmul.bf16.gmra.mxu0 %v240
    %v264 = vpop.f32.mrf.mxu0
    %v265 = vadd.f32 %v176, %v264
    %v266 = vpop.f32.mrf.mxu0
    %267 = vdwg.mxu0
    %s268 = scalar_lea.vmem %s1, 192
    %v269 = vld [vmem:[%s268] sm:$0xff]
    %v270 = vld [vmem:[%s268 + $0x8] sm:$0xff]
    %v271 = vld [vmem:[%s268 + $0x10] sm:$0xff]
    %v272 = vld [vmem:[%s268 + $0x18] sm:$0xff]
    %v273 = vld [vmem:[%s268 + $0x20] sm:$0xff]
    %v274 = vld [vmem:[%s268 + $0x28] sm:$0xff]
    %v275 = vld [vmem:[%s268 + $0x30] sm:$0xff]
    %v276 = vld [vmem:[%s268 + $0x38] sm:$0xff]
    %v277 = vld [vmem:[%s268 + $0x40] sm:$0xff]
    %v278 = vld [vmem:[%s268 + $0x48] sm:$0xff]
    %v279 = vld [vmem:[%s268 + $0x50] sm:$0xff]
    %v280 = vld [vmem:[%s268 + $0x58] sm:$0xff]
    %v293 = vunpack.c.l.b16 %v269
    %v294 = vunpack.c.h.b16 %v269
    %v295 = vunpack.c.l.b16 %v270
    %v296 = vunpack.c.h.b16 %v270
    %v297 = vunpack.c.l.b16 %v271
    %v298 = vunpack.c.h.b16 %v271
    %v299 = vunpack.c.l.b16 %v272
    %v300 = vunpack.c.h.b16 %v272
    %v301 = vunpack.c.l.b16 %v273
    %v302 = vunpack.c.h.b16 %v273
    %v303 = vunpack.c.l.b16 %v274
    %v304 = vunpack.c.h.b16 %v274
    %v305 = vunpack.c.l.b16 %v275
    %v306 = vunpack.c.h.b16 %v275
    %v307 = vunpack.c.l.b16 %v276
    %v308 = vunpack.c.h.b16 %v276
    %v309 = vunpack.c.l.b16 %v277
    %v310 = vunpack.c.h.b16 %v277
    %v311 = vunpack.c.l.b16 %v278
    %v312 = vunpack.c.h.b16 %v278
    %v313 = vunpack.c.l.b16 %v279
    %v314 = vunpack.c.h.b16 %v279
    %v315 = vunpack.c.l.b16 %v280
    %v316 = vunpack.c.h.b16 %v280
    %v317 = vpack.c.b16 %v295, %v293
    %v318 = vpack.c.b16 %v296, %v294
    %v319 = vpack.c.b16 %v299, %v297
    %v320 = vpack.c.b16 %v300, %v298
    %v321 = vpack.c.b16 %v303, %v301
    %v322 = vpack.c.b16 %v304, %v302
    %v323 = vpack.c.b16 %v307, %v305
    %v324 = vpack.c.b16 %v308, %v306
    %v325 = vpack.c.b16 %v311, %v309
    %v326 = vpack.c.b16 %v312, %v310
    %v327 = vpack.c.b16 %v315, %v313
    %v328 = vpack.c.b16 %v316, %v314
    %v342 = vsel %vm149, %v52, 0
    %344 = vmatpush.bf16.msra.mxu0 0
    %345 = vmatpush.bf16.msra.mxu0 0
    %346 = vmatpush.bf16.msra.mxu0 %v327
    %347 = vmatpush.bf16.msra.mxu0 %v325
    %348 = vmatpush.bf16.msra.mxu0 %v323
    %349 = vmatpush.bf16.msra.mxu0 %v321
    %350 = vmatpush.bf16.msra.mxu0 %v319
    %351 = vmatpush.bf16.msra.mxu0 %v317
    %352 = vmatmul.bf16.gmra.mxu0 %v342
    %v353 = vpop.f32.mrf.mxu0
    %v354 = vadd.f32 0.0, %v353
    %v355 = vpop.f32.mrf.mxu0
    %356 = vdwg.mxu0
    %357 = vmatpush.bf16.msra.mxu0 0
    %358 = vmatpush.bf16.msra.mxu0 0
    %359 = vmatpush.bf16.msra.mxu0 %v328
    %360 = vmatpush.bf16.msra.mxu0 %v326
    %361 = vmatpush.bf16.msra.mxu0 %v324
    %362 = vmatpush.bf16.msra.mxu0 %v322
    %363 = vmatpush.bf16.msra.mxu0 %v320
    %364 = vmatpush.bf16.msra.mxu0 %v318
    %365 = vmatmul.bf16.gmra.mxu0 %v342
    %v366 = vpop.f32.mrf.mxu0
    %v367 = vadd.f32 0.0, %v366
    %v368 = vpop.f32.mrf.mxu0
    %369 = vdwg.mxu0
    %v370 = vadd.f32 %v252, %v354
    %v371 = vadd.f32 %v265, %v367
    %s372 = scalar_lea.vmem %s1, 288
    %v373 = vld [vmem:[%s372] sm:$0xff]
    %v374 = vld [vmem:[%s372 + $0x8] sm:$0xff]
    %v375 = vld [vmem:[%s372 + $0x10] sm:$0xff]
    %v376 = vld [vmem:[%s372 + $0x18] sm:$0xff]
    %v377 = vld [vmem:[%s372 + $0x20] sm:$0xff]
    %v378 = vld [vmem:[%s372 + $0x28] sm:$0xff]
    %v379 = vld [vmem:[%s372 + $0x30] sm:$0xff]
    %v380 = vld [vmem:[%s372 + $0x38] sm:$0xff]
    %v381 = vld [vmem:[%s372 + $0x40] sm:$0xff]
    %v382 = vld [vmem:[%s372 + $0x48] sm:$0xff]
    %v383 = vld [vmem:[%s372 + $0x50] sm:$0xff]
    %v384 = vld [vmem:[%s372 + $0x58] sm:$0xff]
    %v397 = vunpack.c.l.b16 %v373
    %v398 = vunpack.c.h.b16 %v373
    %v399 = vunpack.c.l.b16 %v374
    %v400 = vunpack.c.h.b16 %v374
    %v401 = vunpack.c.l.b16 %v375
    %v402 = vunpack.c.h.b16 %v375
    %v403 = vunpack.c.l.b16 %v376
    %v404 = vunpack.c.h.b16 %v376
    %v405 = vunpack.c.l.b16 %v377
    %v406 = vunpack.c.h.b16 %v377
    %v407 = vunpack.c.l.b16 %v378
    %v408 = vunpack.c.h.b16 %v378
    %v409 = vunpack.c.l.b16 %v379
    %v410 = vunpack.c.h.b16 %v379
    %v411 = vunpack.c.l.b16 %v380
    %v412 = vunpack.c.h.b16 %v380
    %v413 = vunpack.c.l.b16 %v381
    %v414 = vunpack.c.h.b16 %v381
    %v415 = vunpack.c.l.b16 %v382
    %v416 = vunpack.c.h.b16 %v382
    %v417 = vunpack.c.l.b16 %v383
    %v418 = vunpack.c.h.b16 %v383
    %v419 = vunpack.c.l.b16 %v384
    %v420 = vunpack.c.h.b16 %v384
    %v421 = vpack.c.b16 %v399, %v397
    %v422 = vpack.c.b16 %v400, %v398
    %v423 = vpack.c.b16 %v403, %v401
    %v424 = vpack.c.b16 %v404, %v402
    %v425 = vpack.c.b16 %v407, %v405
    %v426 = vpack.c.b16 %v408, %v406
    %v427 = vpack.c.b16 %v411, %v409
    %v428 = vpack.c.b16 %v412, %v410
    %v429 = vpack.c.b16 %v415, %v413
    %v430 = vpack.c.b16 %v416, %v414
    %v431 = vpack.c.b16 %v419, %v417
    %v432 = vpack.c.b16 %v420, %v418
    %v446 = vsel %vm149, %v55, 0
    %448 = vmatpush.bf16.msra.mxu0 0
    %449 = vmatpush.bf16.msra.mxu0 0
    %450 = vmatpush.bf16.msra.mxu0 %v431
    %451 = vmatpush.bf16.msra.mxu0 %v429
    %452 = vmatpush.bf16.msra.mxu0 %v427
    %453 = vmatpush.bf16.msra.mxu0 %v425
    %454 = vmatpush.bf16.msra.mxu0 %v423
    %455 = vmatpush.bf16.msra.mxu0 %v421
    %456 = vmatmul.bf16.gmra.mxu0 %v446
    %v457 = vpop.f32.mrf.mxu0
    %v458 = vadd.f32 0.0, %v457
    %v459 = vpop.f32.mrf.mxu0
    %460 = vdwg.mxu0
    %461 = vmatpush.bf16.msra.mxu0 0
    %462 = vmatpush.bf16.msra.mxu0 0
    %463 = vmatpush.bf16.msra.mxu0 %v432
    %464 = vmatpush.bf16.msra.mxu0 %v430
    %465 = vmatpush.bf16.msra.mxu0 %v428
    %466 = vmatpush.bf16.msra.mxu0 %v426
    %467 = vmatpush.bf16.msra.mxu0 %v424
    %468 = vmatpush.bf16.msra.mxu0 %v422
    %469 = vmatmul.bf16.gmra.mxu0 %v446
    %v470 = vpop.f32.mrf.mxu0
    %v471 = vadd.f32 0.0, %v470
    %v472 = vpop.f32.mrf.mxu0
    %473 = vdwg.mxu0
    %v474 = vadd.f32 %v370, %v458
    %v475 = vadd.f32 %v371, %v471
    %s476 = scalar_lea.vmem %s1, 384
    %v477 = vld [vmem:[%s476] sm:$0xff]
    %v478 = vld [vmem:[%s476 + $0x8] sm:$0xff]
    %v479 = vld [vmem:[%s476 + $0x10] sm:$0xff]
    %v480 = vld [vmem:[%s476 + $0x18] sm:$0xff]
    %v481 = vld [vmem:[%s476 + $0x20] sm:$0xff]
    %v482 = vld [vmem:[%s476 + $0x28] sm:$0xff]
    %v483 = vld [vmem:[%s476 + $0x30] sm:$0xff]
    %v484 = vld [vmem:[%s476 + $0x38] sm:$0xff]
    %v485 = vld [vmem:[%s476 + $0x40] sm:$0xff]
    %v486 = vld [vmem:[%s476 + $0x48] sm:$0xff]
    %v487 = vld [vmem:[%s476 + $0x50] sm:$0xff]
    %v488 = vld [vmem:[%s476 + $0x58] sm:$0xff]
    %v501 = vunpack.c.l.b16 %v477
    %v502 = vunpack.c.h.b16 %v477
    %v503 = vunpack.c.l.b16 %v478
    %v504 = vunpack.c.h.b16 %v478
    %v505 = vunpack.c.l.b16 %v479
    %v506 = vunpack.c.h.b16 %v479
    %v507 = vunpack.c.l.b16 %v480
    %v508 = vunpack.c.h.b16 %v480
    %v509 = vunpack.c.l.b16 %v481
    %v510 = vunpack.c.h.b16 %v481
    %v511 = vunpack.c.l.b16 %v482
    %v512 = vunpack.c.h.b16 %v482
    %v513 = vunpack.c.l.b16 %v483
    %v514 = vunpack.c.h.b16 %v483
    %v515 = vunpack.c.l.b16 %v484
    %v516 = vunpack.c.h.b16 %v484
    %v517 = vunpack.c.l.b16 %v485
    %v518 = vunpack.c.h.b16 %v485
    %v519 = vunpack.c.l.b16 %v486
    %v520 = vunpack.c.h.b16 %v486
    %v521 = vunpack.c.l.b16 %v487
    %v522 = vunpack.c.h.b16 %v487
    %v523 = vunpack.c.l.b16 %v488
    %v524 = vunpack.c.h.b16 %v488
    %v525 = vpack.c.b16 %v503, %v501
    %v526 = vpack.c.b16 %v504, %v502
    %v527 = vpack.c.b16 %v507, %v505
    %v528 = vpack.c.b16 %v508, %v506
    %v529 = vpack.c.b16 %v511, %v509
    %v530 = vpack.c.b16 %v512, %v510
    %v531 = vpack.c.b16 %v515, %v513
    %v532 = vpack.c.b16 %v516, %v514
    %v533 = vpack.c.b16 %v519, %v517
    %v534 = vpack.c.b16 %v520, %v518
    %v535 = vpack.c.b16 %v523, %v521
    %v536 = vpack.c.b16 %v524, %v522
    %v550 = vsel %vm149, %v57, 0
    %552 = vmatpush.bf16.msra.mxu0 0
    %553 = vmatpush.bf16.msra.mxu0 0
    %554 = vmatpush.bf16.msra.mxu0 %v535
    %555 = vmatpush.bf16.msra.mxu0 %v533
    %556 = vmatpush.bf16.msra.mxu0 %v531
    %557 = vmatpush.bf16.msra.mxu0 %v529
    %558 = vmatpush.bf16.msra.mxu0 %v527
    %559 = vmatpush.bf16.msra.mxu0 %v525
    %560 = vmatmul.bf16.gmra.mxu0 %v550
    %v561 = vpop.f32.mrf.mxu0
    %v562 = vadd.f32 0.0, %v561
    %v563 = vpop.f32.mrf.mxu0
    %564 = vdwg.mxu0
    %565 = vmatpush.bf16.msra.mxu0 0
    %566 = vmatpush.bf16.msra.mxu0 0
    %567 = vmatpush.bf16.msra.mxu0 %v536
    %568 = vmatpush.bf16.msra.mxu0 %v534
    %569 = vmatpush.bf16.msra.mxu0 %v532
    %570 = vmatpush.bf16.msra.mxu0 %v530
    %571 = vmatpush.bf16.msra.mxu0 %v528
    %572 = vmatpush.bf16.msra.mxu0 %v526
    %573 = vmatmul.bf16.gmra.mxu0 %v550
    %v574 = vpop.f32.mrf.mxu0
    %v575 = vadd.f32 0.0, %v574
    %v576 = vpop.f32.mrf.mxu0
    %577 = vdwg.mxu0
    %v578 = vadd.f32 %v474, %v562
    %v579 = vadd.f32 %v475, %v575
    %v581 = vperm.slane %v40, 0
    %v582 = vperm.slane %v40, 1
    %v585 = vadd.f32 %v578, %v581
    %v586 = vadd.f32 %v579, %v582
    %v587 = vmax.f32 %v585, 0.0
    %v588 = vmax.f32 %v586, 0.0
    %589 = vmatpush.bf16.msra.mxu0 0
    %590 = vmatpush.bf16.msra.mxu0 0
    %591 = vmatpush.bf16.msra.mxu0 %v135
    %592 = vmatpush.bf16.msra.mxu0 %v133
    %593 = vmatpush.bf16.msra.mxu0 %v131
    %594 = vmatpush.bf16.msra.mxu0 %v129
    %595 = vmatpush.bf16.msra.mxu0 %v127
    %596 = vmatpush.bf16.msra.mxu0 %v125
    %597 = vmatmul.bf16.gmra.mxu0 %v342
    %v598 = vpop.f32.mrf.mxu0
    %v599 = vadd.f32 0.0, %v598
    %v600 = vpop.f32.mrf.mxu0
    %601 = vdwg.mxu0
    %602 = vmatpush.bf16.msra.mxu0 0
    %603 = vmatpush.bf16.msra.mxu0 0
    %604 = vmatpush.bf16.msra.mxu0 %v136
    %605 = vmatpush.bf16.msra.mxu0 %v134
    %606 = vmatpush.bf16.msra.mxu0 %v132
    %607 = vmatpush.bf16.msra.mxu0 %v130
    %608 = vmatpush.bf16.msra.mxu0 %v128
    %609 = vmatpush.bf16.msra.mxu0 %v126
    %610 = vmatmul.bf16.gmra.mxu0 %v342
    %v611 = vpop.f32.mrf.mxu0
    %v612 = vadd.f32 0.0, %v611
    %v613 = vpop.f32.mrf.mxu0
    %614 = vdwg.mxu0
    %615 = vmatpush.bf16.msra.mxu0 0
    %616 = vmatpush.bf16.msra.mxu0 0
    %617 = vmatpush.bf16.msra.mxu0 %v225
    %618 = vmatpush.bf16.msra.mxu0 %v223
    %619 = vmatpush.bf16.msra.mxu0 %v221
    %620 = vmatpush.bf16.msra.mxu0 %v219
    %621 = vmatpush.bf16.msra.mxu0 %v217
    %622 = vmatpush.bf16.msra.mxu0 %v215
    %623 = vmatmul.bf16.gmra.mxu0 %v151
    %v624 = vpop.f32.mrf.mxu0
    %v625 = vadd.f32 %v599, %v624
    %v626 = vpop.f32.mrf.mxu0
    %627 = vdwg.mxu0
    %628 = vmatpush.bf16.msra.mxu0 0
    %629 = vmatpush.bf16.msra.mxu0 0
    %630 = vmatpush.bf16.msra.mxu0 %v226
    %631 = vmatpush.bf16.msra.mxu0 %v224
    %632 = vmatpush.bf16.msra.mxu0 %v222
    %633 = vmatpush.bf16.msra.mxu0 %v220
    %634 = vmatpush.bf16.msra.mxu0 %v218
    %635 = vmatpush.bf16.msra.mxu0 %v216
    %636 = vmatmul.bf16.gmra.mxu0 %v151
    %v637 = vpop.f32.mrf.mxu0
    %v638 = vadd.f32 %v612, %v637
    %v639 = vpop.f32.mrf.mxu0
    %640 = vdwg.mxu0
    %641 = vmatpush.bf16.msra.mxu0 0
    %642 = vmatpush.bf16.msra.mxu0 0
    %643 = vmatpush.bf16.msra.mxu0 %v327
    %644 = vmatpush.bf16.msra.mxu0 %v325
    %645 = vmatpush.bf16.msra.mxu0 %v323
    %646 = vmatpush.bf16.msra.mxu0 %v321
    %647 = vmatpush.bf16.msra.mxu0 %v319
    %648 = vmatpush.bf16.msra.mxu0 %v317
    %649 = vmatmul.bf16.gmra.mxu0 %v446
    %v650 = vpop.f32.mrf.mxu0
    %v651 = vadd.f32 0.0, %v650
    %v652 = vpop.f32.mrf.mxu0
    %653 = vdwg.mxu0
    %654 = vmatpush.bf16.msra.mxu0 0
    %655 = vmatpush.bf16.msra.mxu0 0
    %656 = vmatpush.bf16.msra.mxu0 %v328
    %657 = vmatpush.bf16.msra.mxu0 %v326
    %658 = vmatpush.bf16.msra.mxu0 %v324
    %659 = vmatpush.bf16.msra.mxu0 %v322
    %660 = vmatpush.bf16.msra.mxu0 %v320
    %661 = vmatpush.bf16.msra.mxu0 %v318
    %662 = vmatmul.bf16.gmra.mxu0 %v446
    %v663 = vpop.f32.mrf.mxu0
    %v664 = vadd.f32 0.0, %v663
    %v665 = vpop.f32.mrf.mxu0
    %666 = vdwg.mxu0
    %v667 = vadd.f32 %v625, %v651
    %v668 = vadd.f32 %v638, %v664
    %669 = vmatpush.bf16.msra.mxu0 0
    %670 = vmatpush.bf16.msra.mxu0 0
    %671 = vmatpush.bf16.msra.mxu0 %v431
    %672 = vmatpush.bf16.msra.mxu0 %v429
    %673 = vmatpush.bf16.msra.mxu0 %v427
    %674 = vmatpush.bf16.msra.mxu0 %v425
    %675 = vmatpush.bf16.msra.mxu0 %v423
    %676 = vmatpush.bf16.msra.mxu0 %v421
    %677 = vmatmul.bf16.gmra.mxu0 %v550
    %v678 = vpop.f32.mrf.mxu0
    %v679 = vadd.f32 0.0, %v678
    %v680 = vpop.f32.mrf.mxu0
    %681 = vdwg.mxu0
    %682 = vmatpush.bf16.msra.mxu0 0
    %683 = vmatpush.bf16.msra.mxu0 0
    %684 = vmatpush.bf16.msra.mxu0 %v432
    %685 = vmatpush.bf16.msra.mxu0 %v430
    %686 = vmatpush.bf16.msra.mxu0 %v428
    %687 = vmatpush.bf16.msra.mxu0 %v426
    %688 = vmatpush.bf16.msra.mxu0 %v424
    %689 = vmatpush.bf16.msra.mxu0 %v422
    %690 = vmatmul.bf16.gmra.mxu0 %v550
    %v691 = vpop.f32.mrf.mxu0
    %v692 = vadd.f32 0.0, %v691
    %v693 = vpop.f32.mrf.mxu0
    %694 = vdwg.mxu0
    %v695 = vadd.f32 %v667, %v679
    %v696 = vadd.f32 %v668, %v692
    %v698 = vsel %vm149, %v59, 0
    %700 = vmatpush.bf16.msra.mxu0 0
    %701 = vmatpush.bf16.msra.mxu0 0
    %702 = vmatpush.bf16.msra.mxu0 %v535
    %703 = vmatpush.bf16.msra.mxu0 %v533
    %704 = vmatpush.bf16.msra.mxu0 %v531
    %705 = vmatpush.bf16.msra.mxu0 %v529
    %706 = vmatpush.bf16.msra.mxu0 %v527
    %707 = vmatpush.bf16.msra.mxu0 %v525
    %708 = vmatmul.bf16.gmra.mxu0 %v698
    %v709 = vpop.f32.mrf.mxu0
    %v710 = vadd.f32 0.0, %v709
    %v711 = vpop.f32.mrf.mxu0
    %712 = vdwg.mxu0
    %713 = vmatpush.bf16.msra.mxu0 0
    %714 = vmatpush.bf16.msra.mxu0 0
    %715 = vmatpush.bf16.msra.mxu0 %v536
    %716 = vmatpush.bf16.msra.mxu0 %v534
    %717 = vmatpush.bf16.msra.mxu0 %v532
    %718 = vmatpush.bf16.msra.mxu0 %v530
    %719 = vmatpush.bf16.msra.mxu0 %v528
    %720 = vmatpush.bf16.msra.mxu0 %v526
    %721 = vmatmul.bf16.gmra.mxu0 %v698
    %v722 = vpop.f32.mrf.mxu0
    %v723 = vadd.f32 0.0, %v722
    %v724 = vpop.f32.mrf.mxu0
    %725 = vdwg.mxu0
    %v726 = vadd.f32 %v695, %v710
    %v727 = vadd.f32 %v696, %v723
    %v728 = vadd.f32 %v726, %v581
    %v729 = vadd.f32 %v727, %v582
    %v730 = vmax.f32 %v728, 0.0
    %v731 = vmax.f32 %v729, 0.0
    %732 = vmatpush.bf16.msra.mxu0 0
    %733 = vmatpush.bf16.msra.mxu0 0
    %734 = vmatpush.bf16.msra.mxu0 %v135
    %735 = vmatpush.bf16.msra.mxu0 %v133
    %736 = vmatpush.bf16.msra.mxu0 %v131
    %737 = vmatpush.bf16.msra.mxu0 %v129
    %738 = vmatpush.bf16.msra.mxu0 %v127
    %739 = vmatpush.bf16.msra.mxu0 %v125
    %740 = vmatmul.bf16.gmra.mxu0 %v446
    %v741 = vpop.f32.mrf.mxu0
    %v742 = vadd.f32 0.0, %v741
    %v743 = vpop.f32.mrf.mxu0
    %744 = vdwg.mxu0
    %745 = vmatpush.bf16.msra.mxu0 0
    %746 = vmatpush.bf16.msra.mxu0 0
    %747 = vmatpush.bf16.msra.mxu0 %v136
    %748 = vmatpush.bf16.msra.mxu0 %v134
    %749 = vmatpush.bf16.msra.mxu0 %v132
    %750 = vmatpush.bf16.msra.mxu0 %v130
    %751 = vmatpush.bf16.msra.mxu0 %v128
    %752 = vmatpush.bf16.msra.mxu0 %v126
    %753 = vmatmul.bf16.gmra.mxu0 %v446
    %v754 = vpop.f32.mrf.mxu0
    %v755 = vadd.f32 0.0, %v754
    %v756 = vpop.f32.mrf.mxu0
    %757 = vdwg.mxu0
    %758 = vmatpush.bf16.msra.mxu0 0
    %759 = vmatpush.bf16.msra.mxu0 0
    %760 = vmatpush.bf16.msra.mxu0 %v225
    %761 = vmatpush.bf16.msra.mxu0 %v223
    %762 = vmatpush.bf16.msra.mxu0 %v221
    %763 = vmatpush.bf16.msra.mxu0 %v219
    %764 = vmatpush.bf16.msra.mxu0 %v217
    %765 = vmatpush.bf16.msra.mxu0 %v215
    %766 = vmatmul.bf16.gmra.mxu0 %v342
    %v767 = vpop.f32.mrf.mxu0
    %v768 = vadd.f32 %v742, %v767
    %v769 = vpop.f32.mrf.mxu0
    %770 = vdwg.mxu0
    %771 = vmatpush.bf16.msra.mxu0 0
    %772 = vmatpush.bf16.msra.mxu0 0
    %773 = vmatpush.bf16.msra.mxu0 %v226
    %774 = vmatpush.bf16.msra.mxu0 %v224
    %775 = vmatpush.bf16.msra.mxu0 %v222
    %776 = vmatpush.bf16.msra.mxu0 %v220
    %777 = vmatpush.bf16.msra.mxu0 %v218
    %778 = vmatpush.bf16.msra.mxu0 %v216
    %779 = vmatmul.bf16.gmra.mxu0 %v342
    %v780 = vpop.f32.mrf.mxu0
    %v781 = vadd.f32 %v755, %v780
    %v782 = vpop.f32.mrf.mxu0
    %783 = vdwg.mxu0
    %784 = vmatpush.bf16.msra.mxu0 0
    %785 = vmatpush.bf16.msra.mxu0 0
    %786 = vmatpush.bf16.msra.mxu0 %v327
    %787 = vmatpush.bf16.msra.mxu0 %v325
    %788 = vmatpush.bf16.msra.mxu0 %v323
    %789 = vmatpush.bf16.msra.mxu0 %v321
    %790 = vmatpush.bf16.msra.mxu0 %v319
    %791 = vmatpush.bf16.msra.mxu0 %v317
    %792 = vmatmul.bf16.gmra.mxu0 %v550
    %v793 = vpop.f32.mrf.mxu0
    %v794 = vadd.f32 0.0, %v793
    %v795 = vpop.f32.mrf.mxu0
    %796 = vdwg.mxu0
    %797 = vmatpush.bf16.msra.mxu0 0
    %798 = vmatpush.bf16.msra.mxu0 0
    %799 = vmatpush.bf16.msra.mxu0 %v328
    %800 = vmatpush.bf16.msra.mxu0 %v326
    %801 = vmatpush.bf16.msra.mxu0 %v324
    %802 = vmatpush.bf16.msra.mxu0 %v322
    %803 = vmatpush.bf16.msra.mxu0 %v320
    %804 = vmatpush.bf16.msra.mxu0 %v318
    %805 = vmatmul.bf16.gmra.mxu0 %v550
    %v806 = vpop.f32.mrf.mxu0
    %v807 = vadd.f32 0.0, %v806
    %v808 = vpop.f32.mrf.mxu0
    %809 = vdwg.mxu0
    %v810 = vadd.f32 %v768, %v794
    %v811 = vadd.f32 %v781, %v807
    %812 = vmatpush.bf16.msra.mxu0 0
    %813 = vmatpush.bf16.msra.mxu0 0
    %814 = vmatpush.bf16.msra.mxu0 %v431
    %815 = vmatpush.bf16.msra.mxu0 %v429
    %816 = vmatpush.bf16.msra.mxu0 %v427
    %817 = vmatpush.bf16.msra.mxu0 %v425
    %818 = vmatpush.bf16.msra.mxu0 %v423
    %819 = vmatpush.bf16.msra.mxu0 %v421
    %820 = vmatmul.bf16.gmra.mxu0 %v698
    %v821 = vpop.f32.mrf.mxu0
    %v822 = vadd.f32 0.0, %v821
    %v823 = vpop.f32.mrf.mxu0
    %824 = vdwg.mxu0
    %825 = vmatpush.bf16.msra.mxu0 0
    %826 = vmatpush.bf16.msra.mxu0 0
    %827 = vmatpush.bf16.msra.mxu0 %v432
    %828 = vmatpush.bf16.msra.mxu0 %v430
    %829 = vmatpush.bf16.msra.mxu0 %v428
    %830 = vmatpush.bf16.msra.mxu0 %v426
    %831 = vmatpush.bf16.msra.mxu0 %v424
    %832 = vmatpush.bf16.msra.mxu0 %v422
    %833 = vmatmul.bf16.gmra.mxu0 %v698
    %v834 = vpop.f32.mrf.mxu0
    %v835 = vadd.f32 0.0, %v834
    %v836 = vpop.f32.mrf.mxu0
    %837 = vdwg.mxu0
    %v838 = vadd.f32 %v810, %v822
    %v839 = vadd.f32 %v811, %v835
    %v841 = vsel %vm149, %v61, 0
    %843 = vmatpush.bf16.msra.mxu0 0
    %844 = vmatpush.bf16.msra.mxu0 0
    %845 = vmatpush.bf16.msra.mxu0 %v535
    %846 = vmatpush.bf16.msra.mxu0 %v533
    %847 = vmatpush.bf16.msra.mxu0 %v531
    %848 = vmatpush.bf16.msra.mxu0 %v529
    %849 = vmatpush.bf16.msra.mxu0 %v527
    %850 = vmatpush.bf16.msra.mxu0 %v525
    %851 = vmatmul.bf16.gmra.mxu0 %v841
    %v852 = vpop.f32.mrf.mxu0
    %v853 = vadd.f32 0.0, %v852
    %v854 = vpop.f32.mrf.mxu0
    %855 = vdwg.mxu0
    %856 = vmatpush.bf16.msra.mxu0 0
    %857 = vmatpush.bf16.msra.mxu0 0
    %858 = vmatpush.bf16.msra.mxu0 %v536
    %859 = vmatpush.bf16.msra.mxu0 %v534
    %860 = vmatpush.bf16.msra.mxu0 %v532
    %861 = vmatpush.bf16.msra.mxu0 %v530
    %862 = vmatpush.bf16.msra.mxu0 %v528
    %863 = vmatpush.bf16.msra.mxu0 %v526
    %864 = vmatmul.bf16.gmra.mxu0 %v841
    %v865 = vpop.f32.mrf.mxu0
    %v866 = vadd.f32 0.0, %v865
    %v867 = vpop.f32.mrf.mxu0
    %868 = vdwg.mxu0
    %v869 = vadd.f32 %v838, %v853
    %v870 = vadd.f32 %v839, %v866
    %v871 = vadd.f32 %v869, %v581
    %v872 = vadd.f32 %v870, %v582
    %v873 = vmax.f32 %v871, 0.0
    %v874 = vmax.f32 %v872, 0.0
    %875 = vmatpush.bf16.msra.mxu0 0
    %876 = vmatpush.bf16.msra.mxu0 0
    %877 = vmatpush.bf16.msra.mxu0 %v135
    %878 = vmatpush.bf16.msra.mxu0 %v133
    %879 = vmatpush.bf16.msra.mxu0 %v131
    %880 = vmatpush.bf16.msra.mxu0 %v129
    %881 = vmatpush.bf16.msra.mxu0 %v127
    %882 = vmatpush.bf16.msra.mxu0 %v125
    %883 = vmatmul.bf16.gmra.mxu0 %v550
    %v884 = vpop.f32.mrf.mxu0
    %v885 = vadd.f32 0.0, %v884
    %v886 = vpop.f32.mrf.mxu0
    %887 = vdwg.mxu0
    %888 = vmatpush.bf16.msra.mxu0 0
    %889 = vmatpush.bf16.msra.mxu0 0
    %890 = vmatpush.bf16.msra.mxu0 %v136
    %891 = vmatpush.bf16.msra.mxu0 %v134
    %892 = vmatpush.bf16.msra.mxu0 %v132
    %893 = vmatpush.bf16.msra.mxu0 %v130
    %894 = vmatpush.bf16.msra.mxu0 %v128
    %895 = vmatpush.bf16.msra.mxu0 %v126
    %896 = vmatmul.bf16.gmra.mxu0 %v550
    %v897 = vpop.f32.mrf.mxu0
    %v898 = vadd.f32 0.0, %v897
    %v899 = vpop.f32.mrf.mxu0
    %900 = vdwg.mxu0
    %901 = vmatpush.bf16.msra.mxu0 0
    %902 = vmatpush.bf16.msra.mxu0 0
    %903 = vmatpush.bf16.msra.mxu0 %v225
    %904 = vmatpush.bf16.msra.mxu0 %v223
    %905 = vmatpush.bf16.msra.mxu0 %v221
    %906 = vmatpush.bf16.msra.mxu0 %v219
    %907 = vmatpush.bf16.msra.mxu0 %v217
    %908 = vmatpush.bf16.msra.mxu0 %v215
    %909 = vmatmul.bf16.gmra.mxu0 %v446
    %v910 = vpop.f32.mrf.mxu0
    %v911 = vadd.f32 %v885, %v910
    %v912 = vpop.f32.mrf.mxu0
    %913 = vdwg.mxu0
    %914 = vmatpush.bf16.msra.mxu0 0
    %915 = vmatpush.bf16.msra.mxu0 0
    %916 = vmatpush.bf16.msra.mxu0 %v226
    %917 = vmatpush.bf16.msra.mxu0 %v224
    %918 = vmatpush.bf16.msra.mxu0 %v222
    %919 = vmatpush.bf16.msra.mxu0 %v220
    %920 = vmatpush.bf16.msra.mxu0 %v218
    %921 = vmatpush.bf16.msra.mxu0 %v216
    %922 = vmatmul.bf16.gmra.mxu0 %v446
    %v923 = vpop.f32.mrf.mxu0
    %v924 = vadd.f32 %v898, %v923
    %v925 = vpop.f32.mrf.mxu0
    %926 = vdwg.mxu0
    %927 = vmatpush.bf16.msra.mxu0 0
    %928 = vmatpush.bf16.msra.mxu0 0
    %929 = vmatpush.bf16.msra.mxu0 %v327
    %930 = vmatpush.bf16.msra.mxu0 %v325
    %931 = vmatpush.bf16.msra.mxu0 %v323
    %932 = vmatpush.bf16.msra.mxu0 %v321
    %933 = vmatpush.bf16.msra.mxu0 %v319
    %934 = vmatpush.bf16.msra.mxu0 %v317
    %935 = vmatmul.bf16.gmra.mxu0 %v698
    %v936 = vpop.f32.mrf.mxu0
    %v937 = vadd.f32 0.0, %v936
    %v938 = vpop.f32.mrf.mxu0
    %939 = vdwg.mxu0
    %940 = vmatpush.bf16.msra.mxu0 0
    %941 = vmatpush.bf16.msra.mxu0 0
    %942 = vmatpush.bf16.msra.mxu0 %v328
    %943 = vmatpush.bf16.msra.mxu0 %v326
    %944 = vmatpush.bf16.msra.mxu0 %v324
    %945 = vmatpush.bf16.msra.mxu0 %v322
    %946 = vmatpush.bf16.msra.mxu0 %v320
    %947 = vmatpush.bf16.msra.mxu0 %v318
    %948 = vmatmul.bf16.gmra.mxu0 %v698
    %v949 = vpop.f32.mrf.mxu0
    %v950 = vadd.f32 0.0, %v949
    %v951 = vpop.f32.mrf.mxu0
    %952 = vdwg.mxu0
    %v953 = vadd.f32 %v911, %v937
    %v954 = vadd.f32 %v924, %v950
    %955 = vmatpush.bf16.msra.mxu0 0
    %956 = vmatpush.bf16.msra.mxu0 0
    %957 = vmatpush.bf16.msra.mxu0 %v431
    %958 = vmatpush.bf16.msra.mxu0 %v429
    %959 = vmatpush.bf16.msra.mxu0 %v427
    %960 = vmatpush.bf16.msra.mxu0 %v425
    %961 = vmatpush.bf16.msra.mxu0 %v423
    %962 = vmatpush.bf16.msra.mxu0 %v421
    %963 = vmatmul.bf16.gmra.mxu0 %v841
    %v964 = vpop.f32.mrf.mxu0
    %v965 = vadd.f32 0.0, %v964
    %v966 = vpop.f32.mrf.mxu0
    %967 = vdwg.mxu0
    %968 = vmatpush.bf16.msra.mxu0 0
    %969 = vmatpush.bf16.msra.mxu0 0
    %970 = vmatpush.bf16.msra.mxu0 %v432
    %971 = vmatpush.bf16.msra.mxu0 %v430
    %972 = vmatpush.bf16.msra.mxu0 %v428
    %973 = vmatpush.bf16.msra.mxu0 %v426
    %974 = vmatpush.bf16.msra.mxu0 %v424
    %975 = vmatpush.bf16.msra.mxu0 %v422
    %976 = vmatmul.bf16.gmra.mxu0 %v841
    %v977 = vpop.f32.mrf.mxu0
    %v978 = vadd.f32 0.0, %v977
    %v979 = vpop.f32.mrf.mxu0
    %980 = vdwg.mxu0
    %v981 = vadd.f32 %v953, %v965
    %v982 = vadd.f32 %v954, %v978
    %v984 = vsel %vm149, %v63, 0
    %986 = vmatpush.bf16.msra.mxu0 0
    %987 = vmatpush.bf16.msra.mxu0 0
    %988 = vmatpush.bf16.msra.mxu0 %v535
    %989 = vmatpush.bf16.msra.mxu0 %v533
    %990 = vmatpush.bf16.msra.mxu0 %v531
    %991 = vmatpush.bf16.msra.mxu0 %v529
    %992 = vmatpush.bf16.msra.mxu0 %v527
    %993 = vmatpush.bf16.msra.mxu0 %v525
    %994 = vmatmul.bf16.gmra.mxu0 %v984
    %v995 = vpop.f32.mrf.mxu0
    %v996 = vadd.f32 0.0, %v995
    %v997 = vpop.f32.mrf.mxu0
    %998 = vdwg.mxu0
    %999 = vmatpush.bf16.msra.mxu0 0
    %1000 = vmatpush.bf16.msra.mxu0 0
    %1001 = vmatpush.bf16.msra.mxu0 %v536
    %1002 = vmatpush.bf16.msra.mxu0 %v534
    %1003 = vmatpush.bf16.msra.mxu0 %v532
    %1004 = vmatpush.bf16.msra.mxu0 %v530
    %1005 = vmatpush.bf16.msra.mxu0 %v528
    %1006 = vmatpush.bf16.msra.mxu0 %v526
    %1007 = vmatmul.bf16.gmra.mxu0 %v984
    %v1008 = vpop.f32.mrf.mxu0
    %v1009 = vadd.f32 0.0, %v1008
    %v1010 = vpop.f32.mrf.mxu0
    %1011 = vdwg.mxu0
    %v1012 = vadd.f32 %v981, %v996
    %v1013 = vadd.f32 %v982, %v1009
    %v1014 = vadd.f32 %v1012, %v581
    %v1015 = vadd.f32 %v1013, %v582
    %v1016 = vmax.f32 %v1014, 0.0
    %v1017 = vmax.f32 %v1015, 0.0
    %v1018 = vmax.f32 %v587, %v730
    %v1019 = vmax.f32 %v588, %v731
    %v1020 = vmax.f32 %v1018, %v1019
    %v1021 = vmax.f32 %v873, %v1016
    %v1022 = vmax.f32 %v874, %v1017
    %v1023 = vmax.f32 %v1021, %v1022
    %v1024 = vpack.c.bf16 %v1020, %v1020
    %v1025 = vpack.c.bf16 %v1023, %v1023
    %v1026 = vld [vmem:[%s3] sm:$0xff]
    %v1027 = vld [vmem:[%s3 + $0x8] sm:$0xff]
    %v1028 = vld [vmem:[%s3 + $0x10] sm:$0xff]
    %v1029 = vld [vmem:[%s3 + $0x18] sm:$0xff]
    %v1030 = vld [vmem:[%s3 + $0x20] sm:$0xff]
    %v1031 = vld [vmem:[%s3 + $0x28] sm:$0xff]
    %v1032 = vld [vmem:[%s3 + $0x30] sm:$0xff]
    %v1033 = vld [vmem:[%s3 + $0x38] sm:$0xff]
    %v1034 = vld [vmem:[%s3 + $0x40] sm:$0xff]
    %v1035 = vld [vmem:[%s3 + $0x48] sm:$0xff]
    %v1036 = vld [vmem:[%s3 + $0x50] sm:$0xff]
    %v1037 = vld [vmem:[%s3 + $0x58] sm:$0xff]
    %v1038 = vld [vmem:[%s3 + $0x60] sm:$0xff]
    %v1039 = vld [vmem:[%s3 + $0x68] sm:$0xff]
    %v1040 = vld [vmem:[%s3 + $0x70] sm:$0xff]
    %v1041 = vld [vmem:[%s3 + $0x78] sm:$0xff]
    %s1042 = scalar_lea.vmem %s3, 128
    %v1043 = vld [vmem:[%s1042] sm:$0xff]
    %v1044 = vld [vmem:[%s1042 + $0x8] sm:$0xff]
    %v1045 = vld [vmem:[%s1042 + $0x10] sm:$0xff]
    %v1046 = vld [vmem:[%s1042 + $0x18] sm:$0xff]
    %v1047 = vld [vmem:[%s1042 + $0x20] sm:$0xff]
    %v1048 = vld [vmem:[%s1042 + $0x28] sm:$0xff]
    %v1049 = vld [vmem:[%s1042 + $0x30] sm:$0xff]
    %v1050 = vld [vmem:[%s1042 + $0x38] sm:$0xff]
    %v1051 = vld [vmem:[%s1042 + $0x40] sm:$0xff]
    %v1052 = vld [vmem:[%s1042 + $0x48] sm:$0xff]
    %v1053 = vld [vmem:[%s1042 + $0x50] sm:$0xff]
    %v1054 = vld [vmem:[%s1042 + $0x58] sm:$0xff]
    %v1055 = vld [vmem:[%s1042 + $0x60] sm:$0xff]
    %v1056 = vld [vmem:[%s1042 + $0x68] sm:$0xff]
    %v1057 = vld [vmem:[%s1042 + $0x70] sm:$0xff]
    %v1058 = vld [vmem:[%s1042 + $0x78] sm:$0xff]
    %v1075 = vunpack.c.l.b16 %v1043
    %v1076 = vunpack.c.h.b16 %v1043
    %v1077 = vunpack.c.l.b16 %v1044
    %v1078 = vunpack.c.h.b16 %v1044
    %v1079 = vunpack.c.l.b16 %v1045
    %v1080 = vunpack.c.h.b16 %v1045
    %v1081 = vunpack.c.l.b16 %v1046
    %v1082 = vunpack.c.h.b16 %v1046
    %v1083 = vunpack.c.l.b16 %v1047
    %v1084 = vunpack.c.h.b16 %v1047
    %v1085 = vunpack.c.l.b16 %v1048
    %v1086 = vunpack.c.h.b16 %v1048
    %v1087 = vunpack.c.l.b16 %v1049
    %v1088 = vunpack.c.h.b16 %v1049
    %v1089 = vunpack.c.l.b16 %v1050
    %v1090 = vunpack.c.h.b16 %v1050
    %v1091 = vunpack.c.l.b16 %v1051
    %v1092 = vunpack.c.h.b16 %v1051
    %v1093 = vunpack.c.l.b16 %v1052
    %v1094 = vunpack.c.h.b16 %v1052
    %v1095 = vunpack.c.l.b16 %v1053
    %v1096 = vunpack.c.h.b16 %v1053
    %v1097 = vunpack.c.l.b16 %v1054
    %v1098 = vunpack.c.h.b16 %v1054
    %v1099 = vunpack.c.l.b16 %v1055
    %v1100 = vunpack.c.h.b16 %v1055
    %v1101 = vunpack.c.l.b16 %v1056
    %v1102 = vunpack.c.h.b16 %v1056
    %v1103 = vunpack.c.l.b16 %v1057
    %v1104 = vunpack.c.h.b16 %v1057
    %v1105 = vunpack.c.l.b16 %v1058
    %v1106 = vunpack.c.h.b16 %v1058
    %v1107 = vpack.c.b16 %v1077, %v1075
    %v1108 = vpack.c.b16 %v1078, %v1076
    %v1109 = vpack.c.b16 %v1081, %v1079
    %v1110 = vpack.c.b16 %v1082, %v1080
    %v1111 = vpack.c.b16 %v1085, %v1083
    %v1112 = vpack.c.b16 %v1086, %v1084
    %v1113 = vpack.c.b16 %v1089, %v1087
    %v1114 = vpack.c.b16 %v1090, %v1088
    %v1115 = vpack.c.b16 %v1093, %v1091
    %v1116 = vpack.c.b16 %v1094, %v1092
    %v1117 = vpack.c.b16 %v1097, %v1095
    %v1118 = vpack.c.b16 %v1098, %v1096
    %v1119 = vpack.c.b16 %v1101, %v1099
    %v1120 = vpack.c.b16 %v1102, %v1100
    %v1121 = vpack.c.b16 %v1105, %v1103
    %v1122 = vpack.c.b16 %v1106, %v1104
    %1139 = vmatpush.bf16.msra.mxu0 %v1121
    %1140 = vmatpush.bf16.msra.mxu0 %v1119
    %1141 = vmatpush.bf16.msra.mxu0 %v1117
    %1142 = vmatpush.bf16.msra.mxu0 %v1115
    %1143 = vmatpush.bf16.msra.mxu0 %v1113
    %1144 = vmatpush.bf16.msra.mxu0 %v1111
    %1145 = vmatpush.bf16.msra.mxu0 %v1109
    %1146 = vmatpush.bf16.msra.mxu0 %v1107
    %1147 = vmatmul.bf16.gmra.mxu0 %v1025
    %v1148 = vpop.f32.mrf.mxu0
    %v1149 = vadd.f32 0.0, %v1148
    %v1150 = vpop.f32.mrf.mxu0
    %1151 = vdwg.mxu0
    %1152 = vmatpush.bf16.msra.mxu0 %v1122
    %1153 = vmatpush.bf16.msra.mxu0 %v1120
    %1154 = vmatpush.bf16.msra.mxu0 %v1118
    %1155 = vmatpush.bf16.msra.mxu0 %v1116
    %1156 = vmatpush.bf16.msra.mxu0 %v1114
    %1157 = vmatpush.bf16.msra.mxu0 %v1112
    %1158 = vmatpush.bf16.msra.mxu0 %v1110
    %1159 = vmatpush.bf16.msra.mxu0 %v1108
    %1160 = vmatmul.bf16.gmra.mxu0 %v1025
    %v1161 = vpop.f32.mrf.mxu0
    %v1162 = vadd.f32 0.0, %v1161
    %v1163 = vpop.f32.mrf.mxu0
    %1164 = vdwg.mxu0
    %v1181 = vunpack.c.l.b16 %v1026
    %v1182 = vunpack.c.h.b16 %v1026
    %v1183 = vunpack.c.l.b16 %v1027
    %v1184 = vunpack.c.h.b16 %v1027
    %v1185 = vunpack.c.l.b16 %v1028
    %v1186 = vunpack.c.h.b16 %v1028
    %v1187 = vunpack.c.l.b16 %v1029
    %v1188 = vunpack.c.h.b16 %v1029
    %v1189 = vunpack.c.l.b16 %v1030
    %v1190 = vunpack.c.h.b16 %v1030
    %v1191 = vunpack.c.l.b16 %v1031
    %v1192 = vunpack.c.h.b16 %v1031
    %v1193 = vunpack.c.l.b16 %v1032
    %v1194 = vunpack.c.h.b16 %v1032
    %v1195 = vunpack.c.l.b16 %v1033
    %v1196 = vunpack.c.h.b16 %v1033
    %v1197 = vunpack.c.l.b16 %v1034
    %v1198 = vunpack.c.h.b16 %v1034
    %v1199 = vunpack.c.l.b16 %v1035
    %v1200 = vunpack.c.h.b16 %v1035
    %v1201 = vunpack.c.l.b16 %v1036
    %v1202 = vunpack.c.h.b16 %v1036
    %v1203 = vunpack.c.l.b16 %v1037
    %v1204 = vunpack.c.h.b16 %v1037
    %v1205 = vunpack.c.l.b16 %v1038
    %v1206 = vunpack.c.h.b16 %v1038
    %v1207 = vunpack.c.l.b16 %v1039
    %v1208 = vunpack.c.h.b16 %v1039
    %v1209 = vunpack.c.l.b16 %v1040
    %v1210 = vunpack.c.h.b16 %v1040
    %v1211 = vunpack.c.l.b16 %v1041
    %v1212 = vunpack.c.h.b16 %v1041
    %v1213 = vpack.c.b16 %v1183, %v1181
    %v1214 = vpack.c.b16 %v1184, %v1182
    %v1215 = vpack.c.b16 %v1187, %v1185
    %v1216 = vpack.c.b16 %v1188, %v1186
    %v1217 = vpack.c.b16 %v1191, %v1189
    %v1218 = vpack.c.b16 %v1192, %v1190
    %v1219 = vpack.c.b16 %v1195, %v1193
    %v1220 = vpack.c.b16 %v1196, %v1194
    %v1221 = vpack.c.b16 %v1199, %v1197
    %v1222 = vpack.c.b16 %v1200, %v1198
    %v1223 = vpack.c.b16 %v1203, %v1201
    %v1224 = vpack.c.b16 %v1204, %v1202
    %v1225 = vpack.c.b16 %v1207, %v1205
    %v1226 = vpack.c.b16 %v1208, %v1206
    %v1227 = vpack.c.b16 %v1211, %v1209
    %v1228 = vpack.c.b16 %v1212, %v1210
    %1245 = vmatpush.bf16.msra.mxu0 %v1227
    %1246 = vmatpush.bf16.msra.mxu0 %v1225
    %1247 = vmatpush.bf16.msra.mxu0 %v1223
    %1248 = vmatpush.bf16.msra.mxu0 %v1221
    %1249 = vmatpush.bf16.msra.mxu0 %v1219
    %1250 = vmatpush.bf16.msra.mxu0 %v1217
    %1251 = vmatpush.bf16.msra.mxu0 %v1215
    %1252 = vmatpush.bf16.msra.mxu0 %v1213
    %1253 = vmatmul.bf16.gmra.mxu0 %v1024
    %v1254 = vpop.f32.mrf.mxu0
    %v1255 = vadd.f32 %v1149, %v1254
    %v1256 = vpop.f32.mrf.mxu0
    %1257 = vdwg.mxu0
    %1258 = vmatpush.bf16.msra.mxu0 %v1228
    %1259 = vmatpush.bf16.msra.mxu0 %v1226
    %1260 = vmatpush.bf16.msra.mxu0 %v1224
    %1261 = vmatpush.bf16.msra.mxu0 %v1222
    %1262 = vmatpush.bf16.msra.mxu0 %v1220
    %1263 = vmatpush.bf16.msra.mxu0 %v1218
    %1264 = vmatpush.bf16.msra.mxu0 %v1216
    %1265 = vmatpush.bf16.msra.mxu0 %v1214
    %1266 = vmatmul.bf16.gmra.mxu0 %v1024
    %v1267 = vpop.f32.mrf.mxu0
    %v1268 = vadd.f32 %v1162, %v1267
    %v1269 = vpop.f32.mrf.mxu0
    %1270 = vdwg.mxu0
    %s1271 = scalar_lea.vmem %s3, 256
    %v1272 = vld [vmem:[%s1271] sm:$0xff]
    %v1273 = vld [vmem:[%s1271 + $0x8] sm:$0xff]
    %v1274 = vld [vmem:[%s1271 + $0x10] sm:$0xff]
    %v1275 = vld [vmem:[%s1271 + $0x18] sm:$0xff]
    %v1276 = vld [vmem:[%s1271 + $0x20] sm:$0xff]
    %v1277 = vld [vmem:[%s1271 + $0x28] sm:$0xff]
    %v1278 = vld [vmem:[%s1271 + $0x30] sm:$0xff]
    %v1279 = vld [vmem:[%s1271 + $0x38] sm:$0xff]
    %v1280 = vld [vmem:[%s1271 + $0x40] sm:$0xff]
    %v1281 = vld [vmem:[%s1271 + $0x48] sm:$0xff]
    %v1282 = vld [vmem:[%s1271 + $0x50] sm:$0xff]
    %v1283 = vld [vmem:[%s1271 + $0x58] sm:$0xff]
    %v1284 = vld [vmem:[%s1271 + $0x60] sm:$0xff]
    %v1285 = vld [vmem:[%s1271 + $0x68] sm:$0xff]
    %v1286 = vld [vmem:[%s1271 + $0x70] sm:$0xff]
    %v1287 = vld [vmem:[%s1271 + $0x78] sm:$0xff]
    %v1289 = vshrl.u32 %v1024, 16
    %v1291 = vshll.u32 %v1024, 16
    %v1293 = vrot.slane %v1291, 1
    %v1294 = vor.u32 %v1289, %v1293
    %v1312 = vunpack.c.l.b16 %v1272
    %v1313 = vunpack.c.h.b16 %v1272
    %v1314 = vunpack.c.l.b16 %v1273
    %v1315 = vunpack.c.h.b16 %v1273
    %v1316 = vunpack.c.l.b16 %v1274
    %v1317 = vunpack.c.h.b16 %v1274
    %v1318 = vunpack.c.l.b16 %v1275
    %v1319 = vunpack.c.h.b16 %v1275
    %v1320 = vunpack.c.l.b16 %v1276
    %v1321 = vunpack.c.h.b16 %v1276
    %v1322 = vunpack.c.l.b16 %v1277
    %v1323 = vunpack.c.h.b16 %v1277
    %v1324 = vunpack.c.l.b16 %v1278
    %v1325 = vunpack.c.h.b16 %v1278
    %v1326 = vunpack.c.l.b16 %v1279
    %v1327 = vunpack.c.h.b16 %v1279
    %v1328 = vunpack.c.l.b16 %v1280
    %v1329 = vunpack.c.h.b16 %v1280
    %v1330 = vunpack.c.l.b16 %v1281
    %v1331 = vunpack.c.h.b16 %v1281
    %v1332 = vunpack.c.l.b16 %v1282
    %v1333 = vunpack.c.h.b16 %v1282
    %v1334 = vunpack.c.l.b16 %v1283
    %v1335 = vunpack.c.h.b16 %v1283
    %v1336 = vunpack.c.l.b16 %v1284
    %v1337 = vunpack.c.h.b16 %v1284
    %v1338 = vunpack.c.l.b16 %v1285
    %v1339 = vunpack.c.h.b16 %v1285
    %v1340 = vunpack.c.l.b16 %v1286
    %v1341 = vunpack.c.h.b16 %v1286
    %v1342 = vunpack.c.l.b16 %v1287
    %v1343 = vunpack.c.h.b16 %v1287
    %v1344 = vpack.c.b16 %v1314, %v1312
    %v1345 = vpack.c.b16 %v1315, %v1313
    %v1346 = vpack.c.b16 %v1318, %v1316
    %v1347 = vpack.c.b16 %v1319, %v1317
    %v1348 = vpack.c.b16 %v1322, %v1320
    %v1349 = vpack.c.b16 %v1323, %v1321
    %v1350 = vpack.c.b16 %v1326, %v1324
    %v1351 = vpack.c.b16 %v1327, %v1325
    %v1352 = vpack.c.b16 %v1330, %v1328
    %v1353 = vpack.c.b16 %v1331, %v1329
    %v1354 = vpack.c.b16 %v1334, %v1332
    %v1355 = vpack.c.b16 %v1335, %v1333
    %v1356 = vpack.c.b16 %v1338, %v1336
    %v1357 = vpack.c.b16 %v1339, %v1337
    %v1358 = vpack.c.b16 %v1342, %v1340
    %v1359 = vpack.c.b16 %v1343, %v1341
    %1376 = vmatpush.bf16.msra.mxu0 %v1358
    %1377 = vmatpush.bf16.msra.mxu0 %v1356
    %1378 = vmatpush.bf16.msra.mxu0 %v1354
    %1379 = vmatpush.bf16.msra.mxu0 %v1352
    %1380 = vmatpush.bf16.msra.mxu0 %v1350
    %1381 = vmatpush.bf16.msra.mxu0 %v1348
    %1382 = vmatpush.bf16.msra.mxu0 %v1346
    %1383 = vmatpush.bf16.msra.mxu0 %v1344
    %1384 = vmatmul.bf16.gmra.mxu0 %v1294
    %v1385 = vpop.f32.mrf.mxu0
    %v1386 = vadd.f32 0.0, %v1385
    %v1387 = vpop.f32.mrf.mxu0
    %1388 = vdwg.mxu0
    %1389 = vmatpush.bf16.msra.mxu0 %v1359
    %1390 = vmatpush.bf16.msra.mxu0 %v1357
    %1391 = vmatpush.bf16.msra.mxu0 %v1355
    %1392 = vmatpush.bf16.msra.mxu0 %v1353
    %1393 = vmatpush.bf16.msra.mxu0 %v1351
    %1394 = vmatpush.bf16.msra.mxu0 %v1349
    %1395 = vmatpush.bf16.msra.mxu0 %v1347
    %1396 = vmatpush.bf16.msra.mxu0 %v1345
    %1397 = vmatmul.bf16.gmra.mxu0 %v1294
    %v1398 = vpop.f32.mrf.mxu0
    %v1399 = vadd.f32 0.0, %v1398
    %v1400 = vpop.f32.mrf.mxu0
    %1401 = vdwg.mxu0
    %v1402 = vadd.f32 %v1255, %v1386
    %v1403 = vadd.f32 %v1268, %v1399
    %s1404 = scalar_lea.vmem %s3, 384
    %v1405 = vld [vmem:[%s1404] sm:$0xff]
    %v1406 = vld [vmem:[%s1404 + $0x8] sm:$0xff]
    %v1407 = vld [vmem:[%s1404 + $0x10] sm:$0xff]
    %v1408 = vld [vmem:[%s1404 + $0x18] sm:$0xff]
    %v1409 = vld [vmem:[%s1404 + $0x20] sm:$0xff]
    %v1410 = vld [vmem:[%s1404 + $0x28] sm:$0xff]
    %v1411 = vld [vmem:[%s1404 + $0x30] sm:$0xff]
    %v1412 = vld [vmem:[%s1404 + $0x38] sm:$0xff]
    %v1413 = vld [vmem:[%s1404 + $0x40] sm:$0xff]
    %v1414 = vld [vmem:[%s1404 + $0x48] sm:$0xff]
    %v1415 = vld [vmem:[%s1404 + $0x50] sm:$0xff]
    %v1416 = vld [vmem:[%s1404 + $0x58] sm:$0xff]
    %v1417 = vld [vmem:[%s1404 + $0x60] sm:$0xff]
    %v1418 = vld [vmem:[%s1404 + $0x68] sm:$0xff]
    %v1419 = vld [vmem:[%s1404 + $0x70] sm:$0xff]
    %v1420 = vld [vmem:[%s1404 + $0x78] sm:$0xff]
    %v1422 = vshrl.u32 %v1025, 16
    %v1424 = vshll.u32 %v1025, 16
    %v1426 = vrot.slane %v1424, 1
    %v1427 = vor.u32 %v1422, %v1426
    %v1445 = vunpack.c.l.b16 %v1405
    %v1446 = vunpack.c.h.b16 %v1405
    %v1447 = vunpack.c.l.b16 %v1406
    %v1448 = vunpack.c.h.b16 %v1406
    %v1449 = vunpack.c.l.b16 %v1407
    %v1450 = vunpack.c.h.b16 %v1407
    %v1451 = vunpack.c.l.b16 %v1408
    %v1452 = vunpack.c.h.b16 %v1408
    %v1453 = vunpack.c.l.b16 %v1409
    %v1454 = vunpack.c.h.b16 %v1409
    %v1455 = vunpack.c.l.b16 %v1410
    %v1456 = vunpack.c.h.b16 %v1410
    %v1457 = vunpack.c.l.b16 %v1411
    %v1458 = vunpack.c.h.b16 %v1411
    %v1459 = vunpack.c.l.b16 %v1412
    %v1460 = vunpack.c.h.b16 %v1412
    %v1461 = vunpack.c.l.b16 %v1413
    %v1462 = vunpack.c.h.b16 %v1413
    %v1463 = vunpack.c.l.b16 %v1414
    %v1464 = vunpack.c.h.b16 %v1414
    %v1465 = vunpack.c.l.b16 %v1415
    %v1466 = vunpack.c.h.b16 %v1415
    %v1467 = vunpack.c.l.b16 %v1416
    %v1468 = vunpack.c.h.b16 %v1416
    %v1469 = vunpack.c.l.b16 %v1417
    %v1470 = vunpack.c.h.b16 %v1417
    %v1471 = vunpack.c.l.b16 %v1418
    %v1472 = vunpack.c.h.b16 %v1418
    %v1473 = vunpack.c.l.b16 %v1419
    %v1474 = vunpack.c.h.b16 %v1419
    %v1475 = vunpack.c.l.b16 %v1420
    %v1476 = vunpack.c.h.b16 %v1420
    %v1477 = vpack.c.b16 %v1447, %v1445
    %v1478 = vpack.c.b16 %v1448, %v1446
    %v1479 = vpack.c.b16 %v1451, %v1449
    %v1480 = vpack.c.b16 %v1452, %v1450
    %v1481 = vpack.c.b16 %v1455, %v1453
    %v1482 = vpack.c.b16 %v1456, %v1454
    %v1483 = vpack.c.b16 %v1459, %v1457
    %v1484 = vpack.c.b16 %v1460, %v1458
    %v1485 = vpack.c.b16 %v1463, %v1461
    %v1486 = vpack.c.b16 %v1464, %v1462
    %v1487 = vpack.c.b16 %v1467, %v1465
    %v1488 = vpack.c.b16 %v1468, %v1466
    %v1489 = vpack.c.b16 %v1471, %v1469
    %v1490 = vpack.c.b16 %v1472, %v1470
    %v1491 = vpack.c.b16 %v1475, %v1473
    %v1492 = vpack.c.b16 %v1476, %v1474
    %1509 = vmatpush.bf16.msra.mxu0 %v1491
    %1510 = vmatpush.bf16.msra.mxu0 %v1489
    %1511 = vmatpush.bf16.msra.mxu0 %v1487
    %1512 = vmatpush.bf16.msra.mxu0 %v1485
    %1513 = vmatpush.bf16.msra.mxu0 %v1483
    %1514 = vmatpush.bf16.msra.mxu0 %v1481
    %1515 = vmatpush.bf16.msra.mxu0 %v1479
    %1516 = vmatpush.bf16.msra.mxu0 %v1477
    %1517 = vmatmul.bf16.gmra.mxu0 %v1427
    %v1518 = vpop.f32.mrf.mxu0
    %v1519 = vadd.f32 0.0, %v1518
    %v1520 = vpop.f32.mrf.mxu0
    %1521 = vdwg.mxu0
    %1522 = vmatpush.bf16.msra.mxu0 %v1492
    %1523 = vmatpush.bf16.msra.mxu0 %v1490
    %1524 = vmatpush.bf16.msra.mxu0 %v1488
    %1525 = vmatpush.bf16.msra.mxu0 %v1486
    %1526 = vmatpush.bf16.msra.mxu0 %v1484
    %1527 = vmatpush.bf16.msra.mxu0 %v1482
    %1528 = vmatpush.bf16.msra.mxu0 %v1480
    %1529 = vmatpush.bf16.msra.mxu0 %v1478
    %1530 = vmatmul.bf16.gmra.mxu0 %v1427
    %v1531 = vpop.f32.mrf.mxu0
    %v1532 = vadd.f32 0.0, %v1531
    %v1533 = vpop.f32.mrf.mxu0
    %1534 = vdwg.mxu0
    %v1535 = vadd.f32 %v1402, %v1519
    %v1536 = vadd.f32 %v1403, %v1532
    %s1537 = scalar_lea.vmem %s3, 512
    %v1538 = vld [vmem:[%s1537] sm:$0xff]
    %v1539 = vld [vmem:[%s1537 + $0x8] sm:$0xff]
    %v1540 = vld [vmem:[%s1537 + $0x10] sm:$0xff]
    %v1541 = vld [vmem:[%s1537 + $0x18] sm:$0xff]
    %v1542 = vld [vmem:[%s1537 + $0x20] sm:$0xff]
    %v1543 = vld [vmem:[%s1537 + $0x28] sm:$0xff]
    %v1544 = vld [vmem:[%s1537 + $0x30] sm:$0xff]
    %v1545 = vld [vmem:[%s1537 + $0x38] sm:$0xff]
    %v1546 = vld [vmem:[%s1537 + $0x40] sm:$0xff]
    %v1547 = vld [vmem:[%s1537 + $0x48] sm:$0xff]
    %v1548 = vld [vmem:[%s1537 + $0x50] sm:$0xff]
    %v1549 = vld [vmem:[%s1537 + $0x58] sm:$0xff]
    %v1550 = vld [vmem:[%s1537 + $0x60] sm:$0xff]
    %v1551 = vld [vmem:[%s1537 + $0x68] sm:$0xff]
    %v1552 = vld [vmem:[%s1537 + $0x70] sm:$0xff]
    %v1553 = vld [vmem:[%s1537 + $0x78] sm:$0xff]
    %v1555 = vrot.slane %v1024, 1
    %v1573 = vunpack.c.l.b16 %v1538
    %v1574 = vunpack.c.h.b16 %v1538
    %v1575 = vunpack.c.l.b16 %v1539
    %v1576 = vunpack.c.h.b16 %v1539
    %v1577 = vunpack.c.l.b16 %v1540
    %v1578 = vunpack.c.h.b16 %v1540
    %v1579 = vunpack.c.l.b16 %v1541
    %v1580 = vunpack.c.h.b16 %v1541
    %v1581 = vunpack.c.l.b16 %v1542
    %v1582 = vunpack.c.h.b16 %v1542
    %v1583 = vunpack.c.l.b16 %v1543
    %v1584 = vunpack.c.h.b16 %v1543
    %v1585 = vunpack.c.l.b16 %v1544
    %v1586 = vunpack.c.h.b16 %v1544
    %v1587 = vunpack.c.l.b16 %v1545
    %v1588 = vunpack.c.h.b16 %v1545
    %v1589 = vunpack.c.l.b16 %v1546
    %v1590 = vunpack.c.h.b16 %v1546
    %v1591 = vunpack.c.l.b16 %v1547
    %v1592 = vunpack.c.h.b16 %v1547
    %v1593 = vunpack.c.l.b16 %v1548
    %v1594 = vunpack.c.h.b16 %v1548
    %v1595 = vunpack.c.l.b16 %v1549
    %v1596 = vunpack.c.h.b16 %v1549
    %v1597 = vunpack.c.l.b16 %v1550
    %v1598 = vunpack.c.h.b16 %v1550
    %v1599 = vunpack.c.l.b16 %v1551
    %v1600 = vunpack.c.h.b16 %v1551
    %v1601 = vunpack.c.l.b16 %v1552
    %v1602 = vunpack.c.h.b16 %v1552
    %v1603 = vunpack.c.l.b16 %v1553
    %v1604 = vunpack.c.h.b16 %v1553
    %v1605 = vpack.c.b16 %v1575, %v1573
    %v1606 = vpack.c.b16 %v1576, %v1574
    %v1607 = vpack.c.b16 %v1579, %v1577
    %v1608 = vpack.c.b16 %v1580, %v1578
    %v1609 = vpack.c.b16 %v1583, %v1581
    %v1610 = vpack.c.b16 %v1584, %v1582
    %v1611 = vpack.c.b16 %v1587, %v1585
    %v1612 = vpack.c.b16 %v1588, %v1586
    %v1613 = vpack.c.b16 %v1591, %v1589
    %v1614 = vpack.c.b16 %v1592, %v1590
    %v1615 = vpack.c.b16 %v1595, %v1593
    %v1616 = vpack.c.b16 %v1596, %v1594
    %v1617 = vpack.c.b16 %v1599, %v1597
    %v1618 = vpack.c.b16 %v1600, %v1598
    %v1619 = vpack.c.b16 %v1603, %v1601
    %v1620 = vpack.c.b16 %v1604, %v1602
    %1637 = vmatpush.bf16.msra.mxu0 %v1619
    %1638 = vmatpush.bf16.msra.mxu0 %v1617
    %1639 = vmatpush.bf16.msra.mxu0 %v1615
    %1640 = vmatpush.bf16.msra.mxu0 %v1613
    %1641 = vmatpush.bf16.msra.mxu0 %v1611
    %1642 = vmatpush.bf16.msra.mxu0 %v1609
    %1643 = vmatpush.bf16.msra.mxu0 %v1607
    %1644 = vmatpush.bf16.msra.mxu0 %v1605
    %1645 = vmatmul.bf16.gmra.mxu0 %v1555
    %v1646 = vpop.f32.mrf.mxu0
    %v1647 = vadd.f32 0.0, %v1646
    %v1648 = vpop.f32.mrf.mxu0
    %1649 = vdwg.mxu0
    %1650 = vmatpush.bf16.msra.mxu0 %v1620
    %1651 = vmatpush.bf16.msra.mxu0 %v1618
    %1652 = vmatpush.bf16.msra.mxu0 %v1616
    %1653 = vmatpush.bf16.msra.mxu0 %v1614
    %1654 = vmatpush.bf16.msra.mxu0 %v1612
    %1655 = vmatpush.bf16.msra.mxu0 %v1610
    %1656 = vmatpush.bf16.msra.mxu0 %v1608
    %1657 = vmatpush.bf16.msra.mxu0 %v1606
    %1658 = vmatmul.bf16.gmra.mxu0 %v1555
    %v1659 = vpop.f32.mrf.mxu0
    %v1660 = vadd.f32 0.0, %v1659
    %v1661 = vpop.f32.mrf.mxu0
    %1662 = vdwg.mxu0
    %v1663 = vadd.f32 %v1535, %v1647
    %v1664 = vadd.f32 %v1536, %v1660
    %v1666 = vperm.slane %v41, 0
    %v1667 = vperm.slane %v41, 1
    %v1670 = vadd.f32 %v1663, %v1666
    %v1671 = vadd.f32 %v1664, %v1667
    %v1672 = vmax.f32 %v1670, 0.0
    %v1673 = vmax.f32 %v1671, 0.0
    %1674 = vmatpush.bf16.msra.mxu0 %v1121
    %1675 = vmatpush.bf16.msra.mxu0 %v1119
    %1676 = vmatpush.bf16.msra.mxu0 %v1117
    %1677 = vmatpush.bf16.msra.mxu0 %v1115
    %1678 = vmatpush.bf16.msra.mxu0 %v1113
    %1679 = vmatpush.bf16.msra.mxu0 %v1111
    %1680 = vmatpush.bf16.msra.mxu0 %v1109
    %1681 = vmatpush.bf16.msra.mxu0 %v1107
    %1682 = vmatmul.bf16.gmra.mxu0 %v1294
    %v1683 = vpop.f32.mrf.mxu0
    %v1684 = vadd.f32 0.0, %v1683
    %v1685 = vpop.f32.mrf.mxu0
    %1686 = vdwg.mxu0
    %1687 = vmatpush.bf16.msra.mxu0 %v1122
    %1688 = vmatpush.bf16.msra.mxu0 %v1120
    %1689 = vmatpush.bf16.msra.mxu0 %v1118
    %1690 = vmatpush.bf16.msra.mxu0 %v1116
    %1691 = vmatpush.bf16.msra.mxu0 %v1114
    %1692 = vmatpush.bf16.msra.mxu0 %v1112
    %1693 = vmatpush.bf16.msra.mxu0 %v1110
    %1694 = vmatpush.bf16.msra.mxu0 %v1108
    %1695 = vmatmul.bf16.gmra.mxu0 %v1294
    %v1696 = vpop.f32.mrf.mxu0
    %v1697 = vadd.f32 0.0, %v1696
    %v1698 = vpop.f32.mrf.mxu0
    %1699 = vdwg.mxu0
    %1700 = vmatpush.bf16.msra.mxu0 %v1227
    %1701 = vmatpush.bf16.msra.mxu0 %v1225
    %1702 = vmatpush.bf16.msra.mxu0 %v1223
    %1703 = vmatpush.bf16.msra.mxu0 %v1221
    %1704 = vmatpush.bf16.msra.mxu0 %v1219
    %1705 = vmatpush.bf16.msra.mxu0 %v1217
    %1706 = vmatpush.bf16.msra.mxu0 %v1215
    %1707 = vmatpush.bf16.msra.mxu0 %v1213
    %1708 = vmatmul.bf16.gmra.mxu0 %v1025
    %v1709 = vpop.f32.mrf.mxu0
    %v1710 = vadd.f32 %v1684, %v1709
    %v1711 = vpop.f32.mrf.mxu0
    %1712 = vdwg.mxu0
    %1713 = vmatpush.bf16.msra.mxu0 %v1228
    %1714 = vmatpush.bf16.msra.mxu0 %v1226
    %1715 = vmatpush.bf16.msra.mxu0 %v1224
    %1716 = vmatpush.bf16.msra.mxu0 %v1222
    %1717 = vmatpush.bf16.msra.mxu0 %v1220
    %1718 = vmatpush.bf16.msra.mxu0 %v1218
    %1719 = vmatpush.bf16.msra.mxu0 %v1216
    %1720 = vmatpush.bf16.msra.mxu0 %v1214
    %1721 = vmatmul.bf16.gmra.mxu0 %v1025
    %v1722 = vpop.f32.mrf.mxu0
    %v1723 = vadd.f32 %v1697, %v1722
    %v1724 = vpop.f32.mrf.mxu0
    %1725 = vdwg.mxu0
    %1726 = vmatpush.bf16.msra.mxu0 %v1358
    %1727 = vmatpush.bf16.msra.mxu0 %v1356
    %1728 = vmatpush.bf16.msra.mxu0 %v1354
    %1729 = vmatpush.bf16.msra.mxu0 %v1352
    %1730 = vmatpush.bf16.msra.mxu0 %v1350
    %1731 = vmatpush.bf16.msra.mxu0 %v1348
    %1732 = vmatpush.bf16.msra.mxu0 %v1346
    %1733 = vmatpush.bf16.msra.mxu0 %v1344
    %1734 = vmatmul.bf16.gmra.mxu0 %v1427
    %v1735 = vpop.f32.mrf.mxu0
    %v1736 = vadd.f32 0.0, %v1735
    %v1737 = vpop.f32.mrf.mxu0
    %1738 = vdwg.mxu0
    %1739 = vmatpush.bf16.msra.mxu0 %v1359
    %1740 = vmatpush.bf16.msra.mxu0 %v1357
    %1741 = vmatpush.bf16.msra.mxu0 %v1355
    %1742 = vmatpush.bf16.msra.mxu0 %v1353
    %1743 = vmatpush.bf16.msra.mxu0 %v1351
    %1744 = vmatpush.bf16.msra.mxu0 %v1349
    %1745 = vmatpush.bf16.msra.mxu0 %v1347
    %1746 = vmatpush.bf16.msra.mxu0 %v1345
    %1747 = vmatmul.bf16.gmra.mxu0 %v1427
    %v1748 = vpop.f32.mrf.mxu0
    %v1749 = vadd.f32 0.0, %v1748
    %v1750 = vpop.f32.mrf.mxu0
    %1751 = vdwg.mxu0
    %v1752 = vadd.f32 %v1710, %v1736
    %v1753 = vadd.f32 %v1723, %v1749
    %1754 = vmatpush.bf16.msra.mxu0 %v1491
    %1755 = vmatpush.bf16.msra.mxu0 %v1489
    %1756 = vmatpush.bf16.msra.mxu0 %v1487
    %1757 = vmatpush.bf16.msra.mxu0 %v1485
    %1758 = vmatpush.bf16.msra.mxu0 %v1483
    %1759 = vmatpush.bf16.msra.mxu0 %v1481
    %1760 = vmatpush.bf16.msra.mxu0 %v1479
    %1761 = vmatpush.bf16.msra.mxu0 %v1477
    %1762 = vmatmul.bf16.gmra.mxu0 %v1555
    %v1763 = vpop.f32.mrf.mxu0
    %v1764 = vadd.f32 0.0, %v1763
    %v1765 = vpop.f32.mrf.mxu0
    %1766 = vdwg.mxu0
    %1767 = vmatpush.bf16.msra.mxu0 %v1492
    %1768 = vmatpush.bf16.msra.mxu0 %v1490
    %1769 = vmatpush.bf16.msra.mxu0 %v1488
    %1770 = vmatpush.bf16.msra.mxu0 %v1486
    %1771 = vmatpush.bf16.msra.mxu0 %v1484
    %1772 = vmatpush.bf16.msra.mxu0 %v1482
    %1773 = vmatpush.bf16.msra.mxu0 %v1480
    %1774 = vmatpush.bf16.msra.mxu0 %v1478
    %1775 = vmatmul.bf16.gmra.mxu0 %v1555
    %v1776 = vpop.f32.mrf.mxu0
    %v1777 = vadd.f32 0.0, %v1776
    %v1778 = vpop.f32.mrf.mxu0
    %1779 = vdwg.mxu0
    %v1780 = vadd.f32 %v1752, %v1764
    %v1781 = vadd.f32 %v1753, %v1777
    %v1783 = vrot.slane %v1025, 1
    %1785 = vmatpush.bf16.msra.mxu0 %v1619
    %1786 = vmatpush.bf16.msra.mxu0 %v1617
    %1787 = vmatpush.bf16.msra.mxu0 %v1615
    %1788 = vmatpush.bf16.msra.mxu0 %v1613
    %1789 = vmatpush.bf16.msra.mxu0 %v1611
    %1790 = vmatpush.bf16.msra.mxu0 %v1609
    %1791 = vmatpush.bf16.msra.mxu0 %v1607
    %1792 = vmatpush.bf16.msra.mxu0 %v1605
    %1793 = vmatmul.bf16.gmra.mxu0 %v1783
    %v1794 = vpop.f32.mrf.mxu0
    %v1795 = vadd.f32 0.0, %v1794
    %v1796 = vpop.f32.mrf.mxu0
    %1797 = vdwg.mxu0
    %1798 = vmatpush.bf16.msra.mxu0 %v1620
    %1799 = vmatpush.bf16.msra.mxu0 %v1618
    %1800 = vmatpush.bf16.msra.mxu0 %v1616
    %1801 = vmatpush.bf16.msra.mxu0 %v1614
    %1802 = vmatpush.bf16.msra.mxu0 %v1612
    %1803 = vmatpush.bf16.msra.mxu0 %v1610
    %1804 = vmatpush.bf16.msra.mxu0 %v1608
    %1805 = vmatpush.bf16.msra.mxu0 %v1606
    %1806 = vmatmul.bf16.gmra.mxu0 %v1783
    %v1807 = vpop.f32.mrf.mxu0
    %v1808 = vadd.f32 0.0, %v1807
    %v1809 = vpop.f32.mrf.mxu0
    %1810 = vdwg.mxu0
    %v1811 = vadd.f32 %v1780, %v1795
    %v1812 = vadd.f32 %v1781, %v1808
    %v1813 = vadd.f32 %v1811, %v1666
    %v1814 = vadd.f32 %v1812, %v1667
    %v1815 = vmax.f32 %v1813, 0.0
    %v1816 = vmax.f32 %v1814, 0.0
    %v1817 = vmax.f32 %v1672, %v1815
    %v1818 = vmax.f32 %v1673, %v1816
    %v1819 = vmax.f32 %v1817, %v1818
    %v1820 = vpack.c.bf16 %v1819, %v1819
    %v1821 = vld [vmem:[%s5] sm:$0xf]
    %v1822 = vld [vmem:[%s5 + $0x4] sm:$0xf]
    %v1823 = vld [vmem:[%s5 + $0x8] sm:$0xf]
    %v1824 = vld [vmem:[%s5 + $0xc] sm:$0xf]
    %v1825 = vld [vmem:[%s5 + $0x10] sm:$0xf]
    %v1826 = vld [vmem:[%s5 + $0x14] sm:$0xf]
    %v1827 = vld [vmem:[%s5 + $0x18] sm:$0xf]
    %v1828 = vld [vmem:[%s5 + $0x1c] sm:$0xf]
    %v1829 = vld [vmem:[%s5 + $0x20] sm:$0xf]
    %v1830 = vld [vmem:[%s5 + $0x24] sm:$0xf]
    %v1831 = vld [vmem:[%s5 + $0x28] sm:$0xf]
    %v1832 = vld [vmem:[%s5 + $0x2c] sm:$0xf]
    %v1833 = vld [vmem:[%s5 + $0x30] sm:$0xf]
    %v1834 = vld [vmem:[%s5 + $0x34] sm:$0xf]
    %v1835 = vld [vmem:[%s5 + $0x38] sm:$0xf]
    %v1836 = vld [vmem:[%s5 + $0x3c] sm:$0xf]
    %s1837 = scalar_lea.vmem %s5, 64
    %v1838 = vld [vmem:[%s1837] sm:$0xf]
    %v1839 = vld [vmem:[%s1837 + $0x4] sm:$0xf]
    %v1840 = vld [vmem:[%s1837 + $0x8] sm:$0xf]
    %v1841 = vld [vmem:[%s1837 + $0xc] sm:$0xf]
    %v1842 = vld [vmem:[%s1837 + $0x10] sm:$0xf]
    %v1843 = vld [vmem:[%s1837 + $0x14] sm:$0xf]
    %v1844 = vld [vmem:[%s1837 + $0x18] sm:$0xf]
    %v1845 = vld [vmem:[%s1837 + $0x1c] sm:$0xf]
    %v1846 = vld [vmem:[%s1837 + $0x20] sm:$0xf]
    %v1847 = vld [vmem:[%s1837 + $0x24] sm:$0xf]
    %v1848 = vld [vmem:[%s1837 + $0x28] sm:$0xf]
    %v1849 = vld [vmem:[%s1837 + $0x2c] sm:$0xf]
    %v1850 = vld [vmem:[%s1837 + $0x30] sm:$0xf]
    %v1851 = vld [vmem:[%s1837 + $0x34] sm:$0xf]
    %v1852 = vld [vmem:[%s1837 + $0x38] sm:$0xf]
    %v1853 = vld [vmem:[%s1837 + $0x3c] sm:$0xf]
    %v1855 = vshrl.u32 %v1820, 16
    %v1874 = vunpack.c.l.b16 %v1838
    %v1875 = vunpack.c.l.b16 %v1839
    %v1876 = vunpack.c.l.b16 %v1840
    %v1877 = vunpack.c.l.b16 %v1841
    %v1878 = vunpack.c.l.b16 %v1842
    %v1879 = vunpack.c.l.b16 %v1843
    %v1880 = vunpack.c.l.b16 %v1844
    %v1881 = vunpack.c.l.b16 %v1845
    %v1882 = vunpack.c.l.b16 %v1846
    %v1883 = vunpack.c.l.b16 %v1847
    %v1884 = vunpack.c.l.b16 %v1848
    %v1885 = vunpack.c.l.b16 %v1849
    %v1886 = vunpack.c.l.b16 %v1850
    %v1887 = vunpack.c.l.b16 %v1851
    %v1888 = vunpack.c.l.b16 %v1852
    %v1889 = vunpack.c.l.b16 %v1853
    %v1890 = vpack.c.b16 %v1875, %v1874
    %v1891 = vpack.c.b16 %v1877, %v1876
    %v1892 = vpack.c.b16 %v1879, %v1878
    %v1893 = vpack.c.b16 %v1881, %v1880
    %v1894 = vpack.c.b16 %v1883, %v1882
    %v1895 = vpack.c.b16 %v1885, %v1884
    %v1896 = vpack.c.b16 %v1887, %v1886
    %v1897 = vpack.c.b16 %v1889, %v1888
    %1906 = vmatpush.bf16.msra.mxu0 %v1897
    %1907 = vmatpush.bf16.msra.mxu0 %v1896
    %1908 = vmatpush.bf16.msra.mxu0 %v1895
    %1909 = vmatpush.bf16.msra.mxu0 %v1894
    %1910 = vmatpush.bf16.msra.mxu0 %v1893
    %1911 = vmatpush.bf16.msra.mxu0 %v1892
    %1912 = vmatpush.bf16.msra.mxu0 %v1891
    %1913 = vmatpush.bf16.msra.mxu0 %v1890
    %1914 = vmatmul.bf16.gmra.mxu0 %v1855
    %v1915 = vpop.f32.mrf.mxu0
    %v1916 = vadd.f32 0.0, %v1915
    %v1917 = vpop.f32.mrf.mxu0
    %1918 = vdwg.mxu0
    %v1935 = vunpack.c.l.b16 %v1821
    %v1936 = vunpack.c.l.b16 %v1822
    %v1937 = vunpack.c.l.b16 %v1823
    %v1938 = vunpack.c.l.b16 %v1824
    %v1939 = vunpack.c.l.b16 %v1825
    %v1940 = vunpack.c.l.b16 %v1826
    %v1941 = vunpack.c.l.b16 %v1827
    %v1942 = vunpack.c.l.b16 %v1828
    %v1943 = vunpack.c.l.b16 %v1829
    %v1944 = vunpack.c.l.b16 %v1830
    %v1945 = vunpack.c.l.b16 %v1831
    %v1946 = vunpack.c.l.b16 %v1832
    %v1947 = vunpack.c.l.b16 %v1833
    %v1948 = vunpack.c.l.b16 %v1834
    %v1949 = vunpack.c.l.b16 %v1835
    %v1950 = vunpack.c.l.b16 %v1836
    %v1951 = vpack.c.b16 %v1936, %v1935
    %v1952 = vpack.c.b16 %v1938, %v1937
    %v1953 = vpack.c.b16 %v1940, %v1939
    %v1954 = vpack.c.b16 %v1942, %v1941
    %v1955 = vpack.c.b16 %v1944, %v1943
    %v1956 = vpack.c.b16 %v1946, %v1945
    %v1957 = vpack.c.b16 %v1948, %v1947
    %v1958 = vpack.c.b16 %v1950, %v1949
    %1967 = vmatpush.bf16.msra.mxu0 %v1958
    %1968 = vmatpush.bf16.msra.mxu0 %v1957
    %1969 = vmatpush.bf16.msra.mxu0 %v1956
    %1970 = vmatpush.bf16.msra.mxu0 %v1955
    %1971 = vmatpush.bf16.msra.mxu0 %v1954
    %1972 = vmatpush.bf16.msra.mxu0 %v1953
    %1973 = vmatpush.bf16.msra.mxu0 %v1952
    %1974 = vmatpush.bf16.msra.mxu0 %v1951
    %1975 = vmatmul.bf16.gmra.mxu0 %v1820
    %v1976 = vpop.f32.mrf.mxu0
    %v1977 = vadd.f32 %v1916, %v1976
    %v1978 = vpop.f32.mrf.mxu0
    %1979 = vdwg.mxu0
    %s1980 = scalar_lea.vmem %s5, 128
    %v1981 = vld [vmem:[%s1980] sm:$0xf]
    %v1982 = vld [vmem:[%s1980 + $0x4] sm:$0xf]
    %v1983 = vld [vmem:[%s1980 + $0x8] sm:$0xf]
    %v1984 = vld [vmem:[%s1980 + $0xc] sm:$0xf]
    %v1985 = vld [vmem:[%s1980 + $0x10] sm:$0xf]
    %v1986 = vld [vmem:[%s1980 + $0x14] sm:$0xf]
    %v1987 = vld [vmem:[%s1980 + $0x18] sm:$0xf]
    %v1988 = vld [vmem:[%s1980 + $0x1c] sm:$0xf]
    %v1989 = vld [vmem:[%s1980 + $0x20] sm:$0xf]
    %v1990 = vld [vmem:[%s1980 + $0x24] sm:$0xf]
    %v1991 = vld [vmem:[%s1980 + $0x28] sm:$0xf]
    %v1992 = vld [vmem:[%s1980 + $0x2c] sm:$0xf]
    %v1993 = vld [vmem:[%s1980 + $0x30] sm:$0xf]
    %v1994 = vld [vmem:[%s1980 + $0x34] sm:$0xf]
    %v1995 = vld [vmem:[%s1980 + $0x38] sm:$0xf]
    %v1996 = vld [vmem:[%s1980 + $0x3c] sm:$0xf]
    %v1998 = vrot.slane %v1820, 1
    %v2016 = vunpack.c.l.b16 %v1981
    %v2017 = vunpack.c.l.b16 %v1982
    %v2018 = vunpack.c.l.b16 %v1983
    %v2019 = vunpack.c.l.b16 %v1984
    %v2020 = vunpack.c.l.b16 %v1985
    %v2021 = vunpack.c.l.b16 %v1986
    %v2022 = vunpack.c.l.b16 %v1987
    %v2023 = vunpack.c.l.b16 %v1988
    %v2024 = vunpack.c.l.b16 %v1989
    %v2025 = vunpack.c.l.b16 %v1990
    %v2026 = vunpack.c.l.b16 %v1991
    %v2027 = vunpack.c.l.b16 %v1992
    %v2028 = vunpack.c.l.b16 %v1993
    %v2029 = vunpack.c.l.b16 %v1994
    %v2030 = vunpack.c.l.b16 %v1995
    %v2031 = vunpack.c.l.b16 %v1996
    %v2032 = vpack.c.b16 %v2017, %v2016
    %v2033 = vpack.c.b16 %v2019, %v2018
    %v2034 = vpack.c.b16 %v2021, %v2020
    %v2035 = vpack.c.b16 %v2023, %v2022
    %v2036 = vpack.c.b16 %v2025, %v2024
    %v2037 = vpack.c.b16 %v2027, %v2026
    %v2038 = vpack.c.b16 %v2029, %v2028
    %v2039 = vpack.c.b16 %v2031, %v2030
    %2048 = vmatpush.bf16.msra.mxu0 %v2039
    %2049 = vmatpush.bf16.msra.mxu0 %v2038
    %2050 = vmatpush.bf16.msra.mxu0 %v2037
    %2051 = vmatpush.bf16.msra.mxu0 %v2036
    %2052 = vmatpush.bf16.msra.mxu0 %v2035
    %2053 = vmatpush.bf16.msra.mxu0 %v2034
    %2054 = vmatpush.bf16.msra.mxu0 %v2033
    %2055 = vmatpush.bf16.msra.mxu0 %v2032
    %2056 = vmatmul.bf16.gmra.mxu0 %v1998
    %v2057 = vpop.f32.mrf.mxu0
    %v2058 = vadd.f32 0.0, %v2057
    %v2059 = vpop.f32.mrf.mxu0
    %2060 = vdwg.mxu0
    %v2061 = vadd.f32 %v1977, %v2058
    %s2062 = scalar_lea.vmem %s5, 192
    %v2063 = vld [vmem:[%s2062] sm:$0xf]
    %v2064 = vld [vmem:[%s2062 + $0x4] sm:$0xf]
    %v2065 = vld [vmem:[%s2062 + $0x8] sm:$0xf]
    %v2066 = vld [vmem:[%s2062 + $0xc] sm:$0xf]
    %v2067 = vld [vmem:[%s2062 + $0x10] sm:$0xf]
    %v2068 = vld [vmem:[%s2062 + $0x14] sm:$0xf]
    %v2069 = vld [vmem:[%s2062 + $0x18] sm:$0xf]
    %v2070 = vld [vmem:[%s2062 + $0x1c] sm:$0xf]
    %v2071 = vld [vmem:[%s2062 + $0x20] sm:$0xf]
    %v2072 = vld [vmem:[%s2062 + $0x24] sm:$0xf]
    %v2073 = vld [vmem:[%s2062 + $0x28] sm:$0xf]
    %v2074 = vld [vmem:[%s2062 + $0x2c] sm:$0xf]
    %v2075 = vld [vmem:[%s2062 + $0x30] sm:$0xf]
    %v2076 = vld [vmem:[%s2062 + $0x34] sm:$0xf]
    %v2077 = vld [vmem:[%s2062 + $0x38] sm:$0xf]
    %v2078 = vld [vmem:[%s2062 + $0x3c] sm:$0xf]
    %v2079 = vrot.slane %v1855, 1
    %v2097 = vunpack.c.l.b16 %v2063
    %v2098 = vunpack.c.l.b16 %v2064
    %v2099 = vunpack.c.l.b16 %v2065
    %v2100 = vunpack.c.l.b16 %v2066
    %v2101 = vunpack.c.l.b16 %v2067
    %v2102 = vunpack.c.l.b16 %v2068
    %v2103 = vunpack.c.l.b16 %v2069
    %v2104 = vunpack.c.l.b16 %v2070
    %v2105 = vunpack.c.l.b16 %v2071
    %v2106 = vunpack.c.l.b16 %v2072
    %v2107 = vunpack.c.l.b16 %v2073
    %v2108 = vunpack.c.l.b16 %v2074
    %v2109 = vunpack.c.l.b16 %v2075
    %v2110 = vunpack.c.l.b16 %v2076
    %v2111 = vunpack.c.l.b16 %v2077
    %v2112 = vunpack.c.l.b16 %v2078
    %v2113 = vpack.c.b16 %v2098, %v2097
    %v2114 = vpack.c.b16 %v2100, %v2099
    %v2115 = vpack.c.b16 %v2102, %v2101
    %v2116 = vpack.c.b16 %v2104, %v2103
    %v2117 = vpack.c.b16 %v2106, %v2105
    %v2118 = vpack.c.b16 %v2108, %v2107
    %v2119 = vpack.c.b16 %v2110, %v2109
    %v2120 = vpack.c.b16 %v2112, %v2111
    %2129 = vmatpush.bf16.msra.mxu0 %v2120
    %2130 = vmatpush.bf16.msra.mxu0 %v2119
    %2131 = vmatpush.bf16.msra.mxu0 %v2118
    %2132 = vmatpush.bf16.msra.mxu0 %v2117
    %2133 = vmatpush.bf16.msra.mxu0 %v2116
    %2134 = vmatpush.bf16.msra.mxu0 %v2115
    %2135 = vmatpush.bf16.msra.mxu0 %v2114
    %2136 = vmatpush.bf16.msra.mxu0 %v2113
    %2137 = vmatmul.bf16.gmra.mxu0 %v2079
    %v2138 = vpop.f32.mrf.mxu0
    %v2139 = vadd.f32 0.0, %v2138
    %v2140 = vpop.f32.mrf.mxu0
    %2141 = vdwg.mxu0
    %v2142 = vadd.f32 %v2061, %v2139
    %s2143 = scalar_lea.vmem %s5, 256
    %v2144 = vld [vmem:[%s2143] sm:$0xf]
    %v2145 = vld [vmem:[%s2143 + $0x4] sm:$0xf]
    %v2146 = vld [vmem:[%s2143 + $0x8] sm:$0xf]
    %v2147 = vld [vmem:[%s2143 + $0xc] sm:$0xf]
    %v2148 = vld [vmem:[%s2143 + $0x10] sm:$0xf]
    %v2149 = vld [vmem:[%s2143 + $0x14] sm:$0xf]
    %v2150 = vld [vmem:[%s2143 + $0x18] sm:$0xf]
    %v2151 = vld [vmem:[%s2143 + $0x1c] sm:$0xf]
    %v2152 = vld [vmem:[%s2143 + $0x20] sm:$0xf]
    %v2153 = vld [vmem:[%s2143 + $0x24] sm:$0xf]
    %v2154 = vld [vmem:[%s2143 + $0x28] sm:$0xf]
    %v2155 = vld [vmem:[%s2143 + $0x2c] sm:$0xf]
    %v2156 = vld [vmem:[%s2143 + $0x30] sm:$0xf]
    %v2157 = vld [vmem:[%s2143 + $0x34] sm:$0xf]
    %v2158 = vld [vmem:[%s2143 + $0x38] sm:$0xf]
    %v2159 = vld [vmem:[%s2143 + $0x3c] sm:$0xf]
    %v2160 = vrot.slane %v1820, 2
    %v2178 = vunpack.c.l.b16 %v2144
    %v2179 = vunpack.c.l.b16 %v2145
    %v2180 = vunpack.c.l.b16 %v2146
    %v2181 = vunpack.c.l.b16 %v2147
    %v2182 = vunpack.c.l.b16 %v2148
    %v2183 = vunpack.c.l.b16 %v2149
    %v2184 = vunpack.c.l.b16 %v2150
    %v2185 = vunpack.c.l.b16 %v2151
    %v2186 = vunpack.c.l.b16 %v2152
    %v2187 = vunpack.c.l.b16 %v2153
    %v2188 = vunpack.c.l.b16 %v2154
    %v2189 = vunpack.c.l.b16 %v2155
    %v2190 = vunpack.c.l.b16 %v2156
    %v2191 = vunpack.c.l.b16 %v2157
    %v2192 = vunpack.c.l.b16 %v2158
    %v2193 = vunpack.c.l.b16 %v2159
    %v2194 = vpack.c.b16 %v2179, %v2178
    %v2195 = vpack.c.b16 %v2181, %v2180
    %v2196 = vpack.c.b16 %v2183, %v2182
    %v2197 = vpack.c.b16 %v2185, %v2184
    %v2198 = vpack.c.b16 %v2187, %v2186
    %v2199 = vpack.c.b16 %v2189, %v2188
    %v2200 = vpack.c.b16 %v2191, %v2190
    %v2201 = vpack.c.b16 %v2193, %v2192
    %2210 = vmatpush.bf16.msra.mxu0 %v2201
    %2211 = vmatpush.bf16.msra.mxu0 %v2200
    %2212 = vmatpush.bf16.msra.mxu0 %v2199
    %2213 = vmatpush.bf16.msra.mxu0 %v2198
    %2214 = vmatpush.bf16.msra.mxu0 %v2197
    %2215 = vmatpush.bf16.msra.mxu0 %v2196
    %2216 = vmatpush.bf16.msra.mxu0 %v2195
    %2217 = vmatpush.bf16.msra.mxu0 %v2194
    %2218 = vmatmul.bf16.gmra.mxu0 %v2160
    %v2219 = vpop.f32.mrf.mxu0
    %v2220 = vadd.f32 0.0, %v2219
    %v2221 = vpop.f32.mrf.mxu0
    %2222 = vdwg.mxu0
    %v2223 = vadd.f32 %v2142, %v2220
    %v2224 = vadd.f32 %v2223, %v42
    %v2225 = vmax.f32 %v2224, 0.0
    %v2226 = vpack.c.bf16 %v2225, %v2225
    %v2227 = vld [vmem:[%s7] sm:$0xf]
    %v2228 = vld [vmem:[%s7 + $0x4] sm:$0xf]
    %v2229 = vld [vmem:[%s7 + $0x8] sm:$0xf]
    %v2230 = vld [vmem:[%s7 + $0xc] sm:$0xf]
    %v2231 = vld [vmem:[%s7 + $0x10] sm:$0xf]
    %v2232 = vld [vmem:[%s7 + $0x14] sm:$0xf]
    %v2233 = vld [vmem:[%s7 + $0x18] sm:$0xf]
    %v2234 = vld [vmem:[%s7 + $0x1c] sm:$0xf]
    %v2235 = vld [vmem:[%s7 + $0x20] sm:$0xf]
    %v2236 = vld [vmem:[%s7 + $0x24] sm:$0xf]
    %v2237 = vld [vmem:[%s7 + $0x28] sm:$0xf]
    %v2238 = vld [vmem:[%s7 + $0x2c] sm:$0xf]
    %v2239 = vld [vmem:[%s7 + $0x30] sm:$0xf]
    %v2240 = vld [vmem:[%s7 + $0x34] sm:$0xf]
    %v2241 = vld [vmem:[%s7 + $0x38] sm:$0xf]
    %v2257 = vunpack.c.l.b16 %v2227
    %v2258 = vunpack.c.l.b16 %v2228
    %v2259 = vunpack.c.l.b16 %v2229
    %v2260 = vunpack.c.l.b16 %v2230
    %v2261 = vunpack.c.l.b16 %v2231
    %v2262 = vunpack.c.l.b16 %v2232
    %v2263 = vunpack.c.l.b16 %v2233
    %v2264 = vunpack.c.l.b16 %v2234
    %v2265 = vunpack.c.l.b16 %v2235
    %v2266 = vunpack.c.l.b16 %v2236
    %v2267 = vunpack.c.l.b16 %v2237
    %v2268 = vunpack.c.l.b16 %v2238
    %v2269 = vunpack.c.l.b16 %v2239
    %v2270 = vunpack.c.l.b16 %v2240
    %v2271 = vunpack.c.l.b16 %v2241
    %v2272 = vpack.c.b16 %v2258, %v2257
    %v2273 = vpack.c.b16 %v2260, %v2259
    %v2274 = vpack.c.b16 %v2262, %v2261
    %v2275 = vpack.c.b16 %v2264, %v2263
    %v2276 = vpack.c.b16 %v2266, %v2265
    %v2277 = vpack.c.b16 %v2268, %v2267
    %v2278 = vpack.c.b16 %v2270, %v2269
    %v2279 = vpack.c.b16 %v2271, %v2271
    %vm2287 = vcmask 982016
    %v2289 = vsel %vm2287, %v2226, 0
    %vm2291 = vcmask 1043456
    %v2293 = vsel %vm2291, %v2279, 0
    %2295 = vmatpush.bf16.msra.mxu0 %v2293
    %2296 = vmatpush.bf16.msra.mxu0 %v2278
    %2297 = vmatpush.bf16.msra.mxu0 %v2277
    %2298 = vmatpush.bf16.msra.mxu0 %v2276
    %2299 = vmatpush.bf16.msra.mxu0 %v2275
    %2300 = vmatpush.bf16.msra.mxu0 %v2274
    %2301 = vmatpush.bf16.msra.mxu0 %v2273
    %2302 = vmatpush.bf16.msra.mxu0 %v2272
    %2303 = vmatmul.bf16.gmra.mxu0 %v2289
    %v2304 = vpop.f32.mrf.mxu0
    %v2305 = vadd.f32 %v43, %v2304
    %v2306 = vpop.f32.mrf.mxu0
    %2307 = vdwg.mxu0
    %v2308 = vmax.f32 %v2305, 0.0
    %v2309 = vpack.c.bf16 %v2308, %v2308
    %v2310 = vld [vmem:[%s9] sm:$0xf]
    %v2311 = vld [vmem:[%s9 + $0x4] sm:$0xf]
    %v2312 = vld [vmem:[%s9 + $0x8] sm:$0xf]
    %v2313 = vld [vmem:[%s9 + $0xc] sm:$0xf]
    %v2314 = vld [vmem:[%s9 + $0x10] sm:$0xf]
    %v2315 = vld [vmem:[%s9 + $0x14] sm:$0xf]
    %v2316 = vld [vmem:[%s9 + $0x18] sm:$0xf]
    %v2317 = vld [vmem:[%s9 + $0x1c] sm:$0xf]
    %v2318 = vld [vmem:[%s9 + $0x20] sm:$0xf]
    %v2319 = vld [vmem:[%s9 + $0x24] sm:$0xf]
    %v2320 = vld [vmem:[%s9 + $0x28] sm:$0xf]
    %v2321 = vld [vmem:[%s9 + $0x2c] sm:$0x1]
    %v2334 = vunpack.c.l.b16 %v2310
    %v2335 = vunpack.c.l.b16 %v2311
    %v2336 = vunpack.c.l.b16 %v2312
    %v2337 = vunpack.c.l.b16 %v2313
    %v2338 = vunpack.c.l.b16 %v2314
    %v2339 = vunpack.c.l.b16 %v2315
    %v2340 = vunpack.c.l.b16 %v2316
    %v2341 = vunpack.c.l.b16 %v2317
    %v2342 = vunpack.c.l.b16 %v2318
    %v2343 = vunpack.c.l.b16 %v2319
    %v2344 = vunpack.c.l.b16 %v2320
    %v2345 = vunpack.c.l.b16 %v2321
    %v2346 = vpack.c.b16 %v2335, %v2334
    %v2347 = vpack.c.b16 %v2337, %v2336
    %v2348 = vpack.c.b16 %v2339, %v2338
    %v2349 = vpack.c.b16 %v2341, %v2340
    %v2350 = vpack.c.b16 %v2343, %v2342
    %v2351 = vpack.c.b16 %v2345, %v2344
    %vm2357 = vcmask 736256
    %v2359 = vsel %vm2357, %v2309, 0
    %vm2361 = vcmask 1044480
    %v2363 = vsel %vm2361, %v2351, 0
    %2365 = vmatpush.bf16.msra.mxu0 0
    %2366 = vmatpush.bf16.msra.mxu0 0
    %2367 = vmatpush.bf16.msra.mxu0 %v2363
    %2368 = vmatpush.bf16.msra.mxu0 %v2350
    %2369 = vmatpush.bf16.msra.mxu0 %v2349
    %2370 = vmatpush.bf16.msra.mxu0 %v2348
    %2371 = vmatpush.bf16.msra.mxu0 %v2347
    %2372 = vmatpush.bf16.msra.mxu0 %v2346
    %2373 = vmatmul.bf16.gmra.mxu0 %v2359
    %v2374 = vpop.f32.mrf.mxu0
    %v2375 = vadd.f32 %v44, %v2374
    %v2376 = vpop.f32.mrf.mxu0
    %2377 = vdwg.mxu0
    %vm2378 = vcmask 73728
    %2379 = vst.msk [vmem:[#allocation2] sm:$0x1] %vm2378, %v2375
    %s2380 = scalar_lea.vmem %s0, 32
    %v2381 = vld [vmem:[%s2380] sm:$0x7f]
    %v2382 = vpack.c.bf16 %v2381, %v2381
    %s2383 = scalar_lea.vmem %s0, 40
    %v2384 = vld [vmem:[%s2383] sm:$0x7f]
    %v2385 = vpack.c.bf16 %v2384, %v2384
    %s2386 = scalar_lea.vmem %s0, 48
    %v2387 = vld [vmem:[%s2386] sm:$0x7f]
    %v2388 = vpack.c.bf16 %v2387, %v2387
    %s2389 = scalar_lea.vmem %s0, 56
    %v2390 = vld [vmem:[%s2389] sm:$0x7f]
    %v2391 = vpack.c.bf16 %v2390, %v2390
    %v2392 = vld [vmem:[%s2380 + $0x1] sm:$0x7f]
    %v2393 = vpack.c.bf16 %v2392, %v2392
    %v2394 = vld [vmem:[%s2383 + $0x1] sm:$0x7f]
    %v2395 = vpack.c.bf16 %v2394, %v2394
    %v2396 = vld [vmem:[%s2386 + $0x1] sm:$0x7f]
    %v2397 = vpack.c.bf16 %v2396, %v2396
    %v2398 = vld [vmem:[%s2389 + $0x1] sm:$0x7f]
    %v2399 = vpack.c.bf16 %v2398, %v2398
    %v2400 = vld [vmem:[%s1] sm:$0xff]
    %v2401 = vld [vmem:[%s1 + $0x8] sm:$0xff]
    %v2402 = vld [vmem:[%s1 + $0x10] sm:$0xff]
    %v2403 = vld [vmem:[%s1 + $0x18] sm:$0xff]
    %v2404 = vld [vmem:[%s1 + $0x20] sm:$0xff]
    %v2405 = vld [vmem:[%s1 + $0x28] sm:$0xff]
    %v2406 = vld [vmem:[%s1 + $0x30] sm:$0xff]
    %v2407 = vld [vmem:[%s1 + $0x38] sm:$0xff]
    %v2408 = vld [vmem:[%s1 + $0x40] sm:$0xff]
    %v2409 = vld [vmem:[%s1 + $0x48] sm:$0xff]
    %v2410 = vld [vmem:[%s1 + $0x50] sm:$0xff]
    %v2411 = vld [vmem:[%s1 + $0x58] sm:$0xff]
    %v2412 = vld [vmem:[%s76] sm:$0xff]
    %v2413 = vld [vmem:[%s76 + $0x8] sm:$0xff]
    %v2414 = vld [vmem:[%s76 + $0x10] sm:$0xff]
    %v2415 = vld [vmem:[%s76 + $0x18] sm:$0xff]
    %v2416 = vld [vmem:[%s76 + $0x20] sm:$0xff]
    %v2417 = vld [vmem:[%s76 + $0x28] sm:$0xff]
    %v2418 = vld [vmem:[%s76 + $0x30] sm:$0xff]
    %v2419 = vld [vmem:[%s76 + $0x38] sm:$0xff]
    %v2420 = vld [vmem:[%s76 + $0x40] sm:$0xff]
    %v2421 = vld [vmem:[%s76 + $0x48] sm:$0xff]
    %v2422 = vld [vmem:[%s76 + $0x50] sm:$0xff]
    %v2423 = vld [vmem:[%s76 + $0x58] sm:$0xff]
    %v2436 = vunpack.c.l.b16 %v2412
    %v2437 = vunpack.c.h.b16 %v2412
    %v2438 = vunpack.c.l.b16 %v2413
    %v2439 = vunpack.c.h.b16 %v2413
    %v2440 = vunpack.c.l.b16 %v2414
    %v2441 = vunpack.c.h.b16 %v2414
    %v2442 = vunpack.c.l.b16 %v2415
    %v2443 = vunpack.c.h.b16 %v2415
    %v2444 = vunpack.c.l.b16 %v2416
    %v2445 = vunpack.c.h.b16 %v2416
    %v2446 = vunpack.c.l.b16 %v2417
    %v2447 = vunpack.c.h.b16 %v2417
    %v2448 = vunpack.c.l.b16 %v2418
    %v2449 = vunpack.c.h.b16 %v2418
    %v2450 = vunpack.c.l.b16 %v2419
    %v2451 = vunpack.c.h.b16 %v2419
    %v2452 = vunpack.c.l.b16 %v2420
    %v2453 = vunpack.c.h.b16 %v2420
    %v2454 = vunpack.c.l.b16 %v2421
    %v2455 = vunpack.c.h.b16 %v2421
    %v2456 = vunpack.c.l.b16 %v2422
    %v2457 = vunpack.c.h.b16 %v2422
    %v2458 = vunpack.c.l.b16 %v2423
    %v2459 = vunpack.c.h.b16 %v2423
    %v2460 = vpack.c.b16 %v2438, %v2436
    %v2461 = vpack.c.b16 %v2439, %v2437
    %v2462 = vpack.c.b16 %v2442, %v2440
    %v2463 = vpack.c.b16 %v2443, %v2441
    %v2464 = vpack.c.b16 %v2446, %v2444
    %v2465 = vpack.c.b16 %v2447, %v2445
    %v2466 = vpack.c.b16 %v2450, %v2448
    %v2467 = vpack.c.b16 %v2451, %v2449
    %v2468 = vpack.c.b16 %v2454, %v2452
    %v2469 = vpack.c.b16 %v2455, %v2453
    %v2470 = vpack.c.b16 %v2458, %v2456
    %v2471 = vpack.c.b16 %v2459, %v2457
    %v2485 = vsel %vm149, %v2385, 0
    %2487 = vmatpush.bf16.msra.mxu0 0
    %2488 = vmatpush.bf16.msra.mxu0 0
    %2489 = vmatpush.bf16.msra.mxu0 %v2470
    %2490 = vmatpush.bf16.msra.mxu0 %v2468
    %2491 = vmatpush.bf16.msra.mxu0 %v2466
    %2492 = vmatpush.bf16.msra.mxu0 %v2464
    %2493 = vmatpush.bf16.msra.mxu0 %v2462
    %2494 = vmatpush.bf16.msra.mxu0 %v2460
    %2495 = vmatmul.bf16.gmra.mxu0 %v2485
    %v2496 = vpop.f32.mrf.mxu0
    %v2497 = vadd.f32 0.0, %v2496
    %v2498 = vpop.f32.mrf.mxu0
    %2499 = vdwg.mxu0
    %2500 = vmatpush.bf16.msra.mxu0 0
    %2501 = vmatpush.bf16.msra.mxu0 0
    %2502 = vmatpush.bf16.msra.mxu0 %v2471
    %2503 = vmatpush.bf16.msra.mxu0 %v2469
    %2504 = vmatpush.bf16.msra.mxu0 %v2467
    %2505 = vmatpush.bf16.msra.mxu0 %v2465
    %2506 = vmatpush.bf16.msra.mxu0 %v2463
    %2507 = vmatpush.bf16.msra.mxu0 %v2461
    %2508 = vmatmul.bf16.gmra.mxu0 %v2485
    %v2509 = vpop.f32.mrf.mxu0
    %v2510 = vadd.f32 0.0, %v2509
    %v2511 = vpop.f32.mrf.mxu0
    %2512 = vdwg.mxu0
    %v2525 = vunpack.c.l.b16 %v2400
    %v2526 = vunpack.c.h.b16 %v2400
    %v2527 = vunpack.c.l.b16 %v2401
    %v2528 = vunpack.c.h.b16 %v2401
    %v2529 = vunpack.c.l.b16 %v2402
    %v2530 = vunpack.c.h.b16 %v2402
    %v2531 = vunpack.c.l.b16 %v2403
    %v2532 = vunpack.c.h.b16 %v2403
    %v2533 = vunpack.c.l.b16 %v2404
    %v2534 = vunpack.c.h.b16 %v2404
    %v2535 = vunpack.c.l.b16 %v2405
    %v2536 = vunpack.c.h.b16 %v2405
    %v2537 = vunpack.c.l.b16 %v2406
    %v2538 = vunpack.c.h.b16 %v2406
    %v2539 = vunpack.c.l.b16 %v2407
    %v2540 = vunpack.c.h.b16 %v2407
    %v2541 = vunpack.c.l.b16 %v2408
    %v2542 = vunpack.c.h.b16 %v2408
    %v2543 = vunpack.c.l.b16 %v2409
    %v2544 = vunpack.c.h.b16 %v2409
    %v2545 = vunpack.c.l.b16 %v2410
    %v2546 = vunpack.c.h.b16 %v2410
    %v2547 = vunpack.c.l.b16 %v2411
    %v2548 = vunpack.c.h.b16 %v2411
    %v2549 = vpack.c.b16 %v2527, %v2525
    %v2550 = vpack.c.b16 %v2528, %v2526
    %v2551 = vpack.c.b16 %v2531, %v2529
    %v2552 = vpack.c.b16 %v2532, %v2530
    %v2553 = vpack.c.b16 %v2535, %v2533
    %v2554 = vpack.c.b16 %v2536, %v2534
    %v2555 = vpack.c.b16 %v2539, %v2537
    %v2556 = vpack.c.b16 %v2540, %v2538
    %v2557 = vpack.c.b16 %v2543, %v2541
    %v2558 = vpack.c.b16 %v2544, %v2542
    %v2559 = vpack.c.b16 %v2547, %v2545
    %v2560 = vpack.c.b16 %v2548, %v2546
    %v2574 = vsel %vm149, %v2382, 0
    %2576 = vmatpush.bf16.msra.mxu0 0
    %2577 = vmatpush.bf16.msra.mxu0 0
    %2578 = vmatpush.bf16.msra.mxu0 %v2559
    %2579 = vmatpush.bf16.msra.mxu0 %v2557
    %2580 = vmatpush.bf16.msra.mxu0 %v2555
    %2581 = vmatpush.bf16.msra.mxu0 %v2553
    %2582 = vmatpush.bf16.msra.mxu0 %v2551
    %2583 = vmatpush.bf16.msra.mxu0 %v2549
    %2584 = vmatmul.bf16.gmra.mxu0 %v2574
    %v2585 = vpop.f32.mrf.mxu0
    %v2586 = vadd.f32 %v2497, %v2585
    %v2587 = vpop.f32.mrf.mxu0
    %2588 = vdwg.mxu0
    %2589 = vmatpush.bf16.msra.mxu0 0
    %2590 = vmatpush.bf16.msra.mxu0 0
    %2591 = vmatpush.bf16.msra.mxu0 %v2560
    %2592 = vmatpush.bf16.msra.mxu0 %v2558
    %2593 = vmatpush.bf16.msra.mxu0 %v2556
    %2594 = vmatpush.bf16.msra.mxu0 %v2554
    %2595 = vmatpush.bf16.msra.mxu0 %v2552
    %2596 = vmatpush.bf16.msra.mxu0 %v2550
    %2597 = vmatmul.bf16.gmra.mxu0 %v2574
    %v2598 = vpop.f32.mrf.mxu0
    %v2599 = vadd.f32 %v2510, %v2598
    %v2600 = vpop.f32.mrf.mxu0
    %2601 = vdwg.mxu0
    %v2602 = vld [vmem:[%s268] sm:$0xff]
    %v2603 = vld [vmem:[%s268 + $0x8] sm:$0xff]
    %v2604 = vld [vmem:[%s268 + $0x10] sm:$0xff]
    %v2605 = vld [vmem:[%s268 + $0x18] sm:$0xff]
    %v2606 = vld [vmem:[%s268 + $0x20] sm:$0xff]
    %v2607 = vld [vmem:[%s268 + $0x28] sm:$0xff]
    %v2608 = vld [vmem:[%s268 + $0x30] sm:$0xff]
    %v2609 = vld [vmem:[%s268 + $0x38] sm:$0xff]
    %v2610 = vld [vmem:[%s268 + $0x40] sm:$0xff]
    %v2611 = vld [vmem:[%s268 + $0x48] sm:$0xff]
    %v2612 = vld [vmem:[%s268 + $0x50] sm:$0xff]
    %v2613 = vld [vmem:[%s268 + $0x58] sm:$0xff]
    %v2626 = vunpack.c.l.b16 %v2602
    %v2627 = vunpack.c.h.b16 %v2602
    %v2628 = vunpack.c.l.b16 %v2603
    %v2629 = vunpack.c.h.b16 %v2603
    %v2630 = vunpack.c.l.b16 %v2604
    %v2631 = vunpack.c.h.b16 %v2604
    %v2632 = vunpack.c.l.b16 %v2605
    %v2633 = vunpack.c.h.b16 %v2605
    %v2634 = vunpack.c.l.b16 %v2606
    %v2635 = vunpack.c.h.b16 %v2606
    %v2636 = vunpack.c.l.b16 %v2607
    %v2637 = vunpack.c.h.b16 %v2607
    %v2638 = vunpack.c.l.b16 %v2608
    %v2639 = vunpack.c.h.b16 %v2608
    %v2640 = vunpack.c.l.b16 %v2609
    %v2641 = vunpack.c.h.b16 %v2609
    %v2642 = vunpack.c.l.b16 %v2610
    %v2643 = vunpack.c.h.b16 %v2610
    %v2644 = vunpack.c.l.b16 %v2611
    %v2645 = vunpack.c.h.b16 %v2611
    %v2646 = vunpack.c.l.b16 %v2612
    %v2647 = vunpack.c.h.b16 %v2612
    %v2648 = vunpack.c.l.b16 %v2613
    %v2649 = vunpack.c.h.b16 %v2613
    %v2650 = vpack.c.b16 %v2628, %v2626
    %v2651 = vpack.c.b16 %v2629, %v2627
    %v2652 = vpack.c.b16 %v2632, %v2630
    %v2653 = vpack.c.b16 %v2633, %v2631
    %v2654 = vpack.c.b16 %v2636, %v2634
    %v2655 = vpack.c.b16 %v2637, %v2635
    %v2656 = vpack.c.b16 %v2640, %v2638
    %v2657 = vpack.c.b16 %v2641, %v2639
    %v2658 = vpack.c.b16 %v2644, %v2642
    %v2659 = vpack.c.b16 %v2645, %v2643
    %v2660 = vpack.c.b16 %v2648, %v2646
    %v2661 = vpack.c.b16 %v2649, %v2647
    %v2675 = vsel %vm149, %v2388, 0
    %2677 = vmatpush.bf16.msra.mxu0 0
    %2678 = vmatpush.bf16.msra.mxu0 0
    %2679 = vmatpush.bf16.msra.mxu0 %v2660
    %2680 = vmatpush.bf16.msra.mxu0 %v2658
    %2681 = vmatpush.bf16.msra.mxu0 %v2656
    %2682 = vmatpush.bf16.msra.mxu0 %v2654
    %2683 = vmatpush.bf16.msra.mxu0 %v2652
    %2684 = vmatpush.bf16.msra.mxu0 %v2650
    %2685 = vmatmul.bf16.gmra.mxu0 %v2675
    %v2686 = vpop.f32.mrf.mxu0
    %v2687 = vadd.f32 0.0, %v2686
    %v2688 = vpop.f32.mrf.mxu0
    %2689 = vdwg.mxu0
    %2690 = vmatpush.bf16.msra.mxu0 0
    %2691 = vmatpush.bf16.msra.mxu0 0
    %2692 = vmatpush.bf16.msra.mxu0 %v2661
    %2693 = vmatpush.bf16.msra.mxu0 %v2659
    %2694 = vmatpush.bf16.msra.mxu0 %v2657
    %2695 = vmatpush.bf16.msra.mxu0 %v2655
    %2696 = vmatpush.bf16.msra.mxu0 %v2653
    %2697 = vmatpush.bf16.msra.mxu0 %v2651
    %2698 = vmatmul.bf16.gmra.mxu0 %v2675
    %v2699 = vpop.f32.mrf.mxu0
    %v2700 = vadd.f32 0.0, %v2699
    %v2701 = vpop.f32.mrf.mxu0
    %2702 = vdwg.mxu0
    %v2703 = vadd.f32 %v2586, %v2687
    %v2704 = vadd.f32 %v2599, %v2700
    %v2705 = vld [vmem:[%s372] sm:$0xff]
    %v2706 = vld [vmem:[%s372 + $0x8] sm:$0xff]
    %v2707 = vld [vmem:[%s372 + $0x10] sm:$0xff]
    %v2708 = vld [vmem:[%s372 + $0x18] sm:$0xff]
    %v2709 = vld [vmem:[%s372 + $0x20] sm:$0xff]
    %v2710 = vld [vmem:[%s372 + $0x28] sm:$0xff]
    %v2711 = vld [vmem:[%s372 + $0x30] sm:$0xff]
    %v2712 = vld [vmem:[%s372 + $0x38] sm:$0xff]
    %v2713 = vld [vmem:[%s372 + $0x40] sm:$0xff]
    %v2714 = vld [vmem:[%s372 + $0x48] sm:$0xff]
    %v2715 = vld [vmem:[%s372 + $0x50] sm:$0xff]
    %v2716 = vld [vmem:[%s372 + $0x58] sm:$0xff]
    %v2729 = vunpack.c.l.b16 %v2705
    %v2730 = vunpack.c.h.b16 %v2705
    %v2731 = vunpack.c.l.b16 %v2706
    %v2732 = vunpack.c.h.b16 %v2706
    %v2733 = vunpack.c.l.b16 %v2707
    %v2734 = vunpack.c.h.b16 %v2707
    %v2735 = vunpack.c.l.b16 %v2708
    %v2736 = vunpack.c.h.b16 %v2708
    %v2737 = vunpack.c.l.b16 %v2709
    %v2738 = vunpack.c.h.b16 %v2709
    %v2739 = vunpack.c.l.b16 %v2710
    %v2740 = vunpack.c.h.b16 %v2710
    %v2741 = vunpack.c.l.b16 %v2711
    %v2742 = vunpack.c.h.b16 %v2711
    %v2743 = vunpack.c.l.b16 %v2712
    %v2744 = vunpack.c.h.b16 %v2712
    %v2745 = vunpack.c.l.b16 %v2713
    %v2746 = vunpack.c.h.b16 %v2713
    %v2747 = vunpack.c.l.b16 %v2714
    %v2748 = vunpack.c.h.b16 %v2714
    %v2749 = vunpack.c.l.b16 %v2715
    %v2750 = vunpack.c.h.b16 %v2715
    %v2751 = vunpack.c.l.b16 %v2716
    %v2752 = vunpack.c.h.b16 %v2716
    %v2753 = vpack.c.b16 %v2731, %v2729
    %v2754 = vpack.c.b16 %v2732, %v2730
    %v2755 = vpack.c.b16 %v2735, %v2733
    %v2756 = vpack.c.b16 %v2736, %v2734
    %v2757 = vpack.c.b16 %v2739, %v2737
    %v2758 = vpack.c.b16 %v2740, %v2738
    %v2759 = vpack.c.b16 %v2743, %v2741
    %v2760 = vpack.c.b16 %v2744, %v2742
    %v2761 = vpack.c.b16 %v2747, %v2745
    %v2762 = vpack.c.b16 %v2748, %v2746
    %v2763 = vpack.c.b16 %v2751, %v2749
    %v2764 = vpack.c.b16 %v2752, %v2750
    %v2778 = vsel %vm149, %v2391, 0
    %2780 = vmatpush.bf16.msra.mxu0 0
    %2781 = vmatpush.bf16.msra.mxu0 0
    %2782 = vmatpush.bf16.msra.mxu0 %v2763
    %2783 = vmatpush.bf16.msra.mxu0 %v2761
    %2784 = vmatpush.bf16.msra.mxu0 %v2759
    %2785 = vmatpush.bf16.msra.mxu0 %v2757
    %2786 = vmatpush.bf16.msra.mxu0 %v2755
    %2787 = vmatpush.bf16.msra.mxu0 %v2753
    %2788 = vmatmul.bf16.gmra.mxu0 %v2778
    %v2789 = vpop.f32.mrf.mxu0
    %v2790 = vadd.f32 0.0, %v2789
    %v2791 = vpop.f32.mrf.mxu0
    %2792 = vdwg.mxu0
    %2793 = vmatpush.bf16.msra.mxu0 0
    %2794 = vmatpush.bf16.msra.mxu0 0
    %2795 = vmatpush.bf16.msra.mxu0 %v2764
    %2796 = vmatpush.bf16.msra.mxu0 %v2762
    %2797 = vmatpush.bf16.msra.mxu0 %v2760
    %2798 = vmatpush.bf16.msra.mxu0 %v2758
    %2799 = vmatpush.bf16.msra.mxu0 %v2756
    %2800 = vmatpush.bf16.msra.mxu0 %v2754
    %2801 = vmatmul.bf16.gmra.mxu0 %v2778
    %v2802 = vpop.f32.mrf.mxu0
    %v2803 = vadd.f32 0.0, %v2802
    %v2804 = vpop.f32.mrf.mxu0
    %2805 = vdwg.mxu0
    %v2806 = vadd.f32 %v2703, %v2790
    %v2807 = vadd.f32 %v2704, %v2803
    %v2808 = vld [vmem:[%s476] sm:$0xff]
    %v2809 = vld [vmem:[%s476 + $0x8] sm:$0xff]
    %v2810 = vld [vmem:[%s476 + $0x10] sm:$0xff]
    %v2811 = vld [vmem:[%s476 + $0x18] sm:$0xff]
    %v2812 = vld [vmem:[%s476 + $0x20] sm:$0xff]
    %v2813 = vld [vmem:[%s476 + $0x28] sm:$0xff]
    %v2814 = vld [vmem:[%s476 + $0x30] sm:$0xff]
    %v2815 = vld [vmem:[%s476 + $0x38] sm:$0xff]
    %v2816 = vld [vmem:[%s476 + $0x40] sm:$0xff]
    %v2817 = vld [vmem:[%s476 + $0x48] sm:$0xff]
    %v2818 = vld [vmem:[%s476 + $0x50] sm:$0xff]
    %v2819 = vld [vmem:[%s476 + $0x58] sm:$0xff]
    %v2832 = vunpack.c.l.b16 %v2808
    %v2833 = vunpack.c.h.b16 %v2808
    %v2834 = vunpack.c.l.b16 %v2809
    %v2835 = vunpack.c.h.b16 %v2809
    %v2836 = vunpack.c.l.b16 %v2810
    %v2837 = vunpack.c.h.b16 %v2810
    %v2838 = vunpack.c.l.b16 %v2811
    %v2839 = vunpack.c.h.b16 %v2811
    %v2840 = vunpack.c.l.b16 %v2812
    %v2841 = vunpack.c.h.b16 %v2812
    %v2842 = vunpack.c.l.b16 %v2813
    %v2843 = vunpack.c.h.b16 %v2813
    %v2844 = vunpack.c.l.b16 %v2814
    %v2845 = vunpack.c.h.b16 %v2814
    %v2846 = vunpack.c.l.b16 %v2815
    %v2847 = vunpack.c.h.b16 %v2815
    %v2848 = vunpack.c.l.b16 %v2816
    %v2849 = vunpack.c.h.b16 %v2816
    %v2850 = vunpack.c.l.b16 %v2817
    %v2851 = vunpack.c.h.b16 %v2817
    %v2852 = vunpack.c.l.b16 %v2818
    %v2853 = vunpack.c.h.b16 %v2818
    %v2854 = vunpack.c.l.b16 %v2819
    %v2855 = vunpack.c.h.b16 %v2819
    %v2856 = vpack.c.b16 %v2834, %v2832
    %v2857 = vpack.c.b16 %v2835, %v2833
    %v2858 = vpack.c.b16 %v2838, %v2836
    %v2859 = vpack.c.b16 %v2839, %v2837
    %v2860 = vpack.c.b16 %v2842, %v2840
    %v2861 = vpack.c.b16 %v2843, %v2841
    %v2862 = vpack.c.b16 %v2846, %v2844
    %v2863 = vpack.c.b16 %v2847, %v2845
    %v2864 = vpack.c.b16 %v2850, %v2848
    %v2865 = vpack.c.b16 %v2851, %v2849
    %v2866 = vpack.c.b16 %v2854, %v2852
    %v2867 = vpack.c.b16 %v2855, %v2853
    %v2881 = vsel %vm149, %v2393, 0
    %2883 = vmatpush.bf16.msra.mxu0 0
    %2884 = vmatpush.bf16.msra.mxu0 0
    %2885 = vmatpush.bf16.msra.mxu0 %v2866
    %2886 = vmatpush.bf16.msra.mxu0 %v2864
    %2887 = vmatpush.bf16.msra.mxu0 %v2862
    %2888 = vmatpush.bf16.msra.mxu0 %v2860
    %2889 = vmatpush.bf16.msra.mxu0 %v2858
    %2890 = vmatpush.bf16.msra.mxu0 %v2856
    %2891 = vmatmul.bf16.gmra.mxu0 %v2881
    %v2892 = vpop.f32.mrf.mxu0
    %v2893 = vadd.f32 0.0, %v2892
    %v2894 = vpop.f32.mrf.mxu0
    %2895 = vdwg.mxu0
    %2896 = vmatpush.bf16.msra.mxu0 0
    %2897 = vmatpush.bf16.msra.mxu0 0
    %2898 = vmatpush.bf16.msra.mxu0 %v2867
    %2899 = vmatpush.bf16.msra.mxu0 %v2865
    %2900 = vmatpush.bf16.msra.mxu0 %v2863
    %2901 = vmatpush.bf16.msra.mxu0 %v2861
    %2902 = vmatpush.bf16.msra.mxu0 %v2859
    %2903 = vmatpush.bf16.msra.mxu0 %v2857
    %2904 = vmatmul.bf16.gmra.mxu0 %v2881
    %v2905 = vpop.f32.mrf.mxu0
    %v2906 = vadd.f32 0.0, %v2905
    %v2907 = vpop.f32.mrf.mxu0
    %2908 = vdwg.mxu0
    %v2909 = vadd.f32 %v2806, %v2893
    %v2910 = vadd.f32 %v2807, %v2906
    %v2911 = vadd.f32 %v2909, %v581
    %v2912 = vadd.f32 %v2910, %v582
    %v2913 = vmax.f32 %v2911, 0.0
    %v2914 = vmax.f32 %v2912, 0.0
    %2915 = vmatpush.bf16.msra.mxu0 0
    %2916 = vmatpush.bf16.msra.mxu0 0
    %2917 = vmatpush.bf16.msra.mxu0 %v2470
    %2918 = vmatpush.bf16.msra.mxu0 %v2468
    %2919 = vmatpush.bf16.msra.mxu0 %v2466
    %2920 = vmatpush.bf16.msra.mxu0 %v2464
    %2921 = vmatpush.bf16.msra.mxu0 %v2462
    %2922 = vmatpush.bf16.msra.mxu0 %v2460
    %2923 = vmatmul.bf16.gmra.mxu0 %v2675
    %v2924 = vpop.f32.mrf.mxu0
    %v2925 = vadd.f32 0.0, %v2924
    %v2926 = vpop.f32.mrf.mxu0
    %2927 = vdwg.mxu0
    %2928 = vmatpush.bf16.msra.mxu0 0
    %2929 = vmatpush.bf16.msra.mxu0 0
    %2930 = vmatpush.bf16.msra.mxu0 %v2471
    %2931 = vmatpush.bf16.msra.mxu0 %v2469
    %2932 = vmatpush.bf16.msra.mxu0 %v2467
    %2933 = vmatpush.bf16.msra.mxu0 %v2465
    %2934 = vmatpush.bf16.msra.mxu0 %v2463
    %2935 = vmatpush.bf16.msra.mxu0 %v2461
    %2936 = vmatmul.bf16.gmra.mxu0 %v2675
    %v2937 = vpop.f32.mrf.mxu0
    %v2938 = vadd.f32 0.0, %v2937
    %v2939 = vpop.f32.mrf.mxu0
    %2940 = vdwg.mxu0
    %2941 = vmatpush.bf16.msra.mxu0 0
    %2942 = vmatpush.bf16.msra.mxu0 0
    %2943 = vmatpush.bf16.msra.mxu0 %v2559
    %2944 = vmatpush.bf16.msra.mxu0 %v2557
    %2945 = vmatpush.bf16.msra.mxu0 %v2555
    %2946 = vmatpush.bf16.msra.mxu0 %v2553
    %2947 = vmatpush.bf16.msra.mxu0 %v2551
    %2948 = vmatpush.bf16.msra.mxu0 %v2549
    %2949 = vmatmul.bf16.gmra.mxu0 %v2485
    %v2950 = vpop.f32.mrf.mxu0
    %v2951 = vadd.f32 %v2925, %v2950
    %v2952 = vpop.f32.mrf.mxu0
    %2953 = vdwg.mxu0
    %2954 = vmatpush.bf16.msra.mxu0 0
    %2955 = vmatpush.bf16.msra.mxu0 0
    %2956 = vmatpush.bf16.msra.mxu0 %v2560
    %2957 = vmatpush.bf16.msra.mxu0 %v2558
    %2958 = vmatpush.bf16.msra.mxu0 %v2556
    %2959 = vmatpush.bf16.msra.mxu0 %v2554
    %2960 = vmatpush.bf16.msra.mxu0 %v2552
    %2961 = vmatpush.bf16.msra.mxu0 %v2550
    %2962 = vmatmul.bf16.gmra.mxu0 %v2485
    %v2963 = vpop.f32.mrf.mxu0
    %v2964 = vadd.f32 %v2938, %v2963
    %v2965 = vpop.f32.mrf.mxu0
    %2966 = vdwg.mxu0
    %2967 = vmatpush.bf16.msra.mxu0 0
    %2968 = vmatpush.bf16.msra.mxu0 0
    %2969 = vmatpush.bf16.msra.mxu0 %v2660
    %2970 = vmatpush.bf16.msra.mxu0 %v2658
    %2971 = vmatpush.bf16.msra.mxu0 %v2656
    %2972 = vmatpush.bf16.msra.mxu0 %v2654
    %2973 = vmatpush.bf16.msra.mxu0 %v2652
    %2974 = vmatpush.bf16.msra.mxu0 %v2650
    %2975 = vmatmul.bf16.gmra.mxu0 %v2778
    %v2976 = vpop.f32.mrf.mxu0
    %v2977 = vadd.f32 0.0, %v2976
    %v2978 = vpop.f32.mrf.mxu0
    %2979 = vdwg.mxu0
    %2980 = vmatpush.bf16.msra.mxu0 0
    %2981 = vmatpush.bf16.msra.mxu0 0
    %2982 = vmatpush.bf16.msra.mxu0 %v2661
    %2983 = vmatpush.bf16.msra.mxu0 %v2659
    %2984 = vmatpush.bf16.msra.mxu0 %v2657
    %2985 = vmatpush.bf16.msra.mxu0 %v2655
    %2986 = vmatpush.bf16.msra.mxu0 %v2653
    %2987 = vmatpush.bf16.msra.mxu0 %v2651
    %2988 = vmatmul.bf16.gmra.mxu0 %v2778
    %v2989 = vpop.f32.mrf.mxu0
    %v2990 = vadd.f32 0.0, %v2989
    %v2991 = vpop.f32.mrf.mxu0
    %2992 = vdwg.mxu0
    %v2993 = vadd.f32 %v2951, %v2977
    %v2994 = vadd.f32 %v2964, %v2990
    %2995 = vmatpush.bf16.msra.mxu0 0
    %2996 = vmatpush.bf16.msra.mxu0 0
    %2997 = vmatpush.bf16.msra.mxu0 %v2763
    %2998 = vmatpush.bf16.msra.mxu0 %v2761
    %2999 = vmatpush.bf16.msra.mxu0 %v2759
    %3000 = vmatpush.bf16.msra.mxu0 %v2757
    %3001 = vmatpush.bf16.msra.mxu0 %v2755
    %3002 = vmatpush.bf16.msra.mxu0 %v2753
    %3003 = vmatmul.bf16.gmra.mxu0 %v2881
    %v3004 = vpop.f32.mrf.mxu0
    %v3005 = vadd.f32 0.0, %v3004
    %v3006 = vpop.f32.mrf.mxu0
    %3007 = vdwg.mxu0
    %3008 = vmatpush.bf16.msra.mxu0 0
    %3009 = vmatpush.bf16.msra.mxu0 0
    %3010 = vmatpush.bf16.msra.mxu0 %v2764
    %3011 = vmatpush.bf16.msra.mxu0 %v2762
    %3012 = vmatpush.bf16.msra.mxu0 %v2760
    %3013 = vmatpush.bf16.msra.mxu0 %v2758
    %3014 = vmatpush.bf16.msra.mxu0 %v2756
    %3015 = vmatpush.bf16.msra.mxu0 %v2754
    %3016 = vmatmul.bf16.gmra.mxu0 %v2881
    %v3017 = vpop.f32.mrf.mxu0
    %v3018 = vadd.f32 0.0, %v3017
    %v3019 = vpop.f32.mrf.mxu0
    %3020 = vdwg.mxu0
    %v3021 = vadd.f32 %v2993, %v3005
    %v3022 = vadd.f32 %v2994, %v3018
    %v3024 = vsel %vm149, %v2395, 0
    %3026 = vmatpush.bf16.msra.mxu0 0
    %3027 = vmatpush.bf16.msra.mxu0 0
    %3028 = vmatpush.bf16.msra.mxu0 %v2866
    %3029 = vmatpush.bf16.msra.mxu0 %v2864
    %3030 = vmatpush.bf16.msra.mxu0 %v2862
    %3031 = vmatpush.bf16.msra.mxu0 %v2860
    %3032 = vmatpush.bf16.msra.mxu0 %v2858
    %3033 = vmatpush.bf16.msra.mxu0 %v2856
    %3034 = vmatmul.bf16.gmra.mxu0 %v3024
    %v3035 = vpop.f32.mrf.mxu0
    %v3036 = vadd.f32 0.0, %v3035
    %v3037 = vpop.f32.mrf.mxu0
    %3038 = vdwg.mxu0
    %3039 = vmatpush.bf16.msra.mxu0 0
    %3040 = vmatpush.bf16.msra.mxu0 0
    %3041 = vmatpush.bf16.msra.mxu0 %v2867
    %3042 = vmatpush.bf16.msra.mxu0 %v2865
    %3043 = vmatpush.bf16.msra.mxu0 %v2863
    %3044 = vmatpush.bf16.msra.mxu0 %v2861
    %3045 = vmatpush.bf16.msra.mxu0 %v2859
    %3046 = vmatpush.bf16.msra.mxu0 %v2857
    %3047 = vmatmul.bf16.gmra.mxu0 %v3024
    %v3048 = vpop.f32.mrf.mxu0
    %v3049 = vadd.f32 0.0, %v3048
    %v3050 = vpop.f32.mrf.mxu0
    %3051 = vdwg.mxu0
    %v3052 = vadd.f32 %v3021, %v3036
    %v3053 = vadd.f32 %v3022, %v3049
    %v3054 = vadd.f32 %v3052, %v581
    %v3055 = vadd.f32 %v3053, %v582
    %v3056 = vmax.f32 %v3054, 0.0
    %v3057 = vmax.f32 %v3055, 0.0
    %3058 = vmatpush.bf16.msra.mxu0 0
    %3059 = vmatpush.bf16.msra.mxu0 0
    %3060 = vmatpush.bf16.msra.mxu0 %v2470
    %3061 = vmatpush.bf16.msra.mxu0 %v2468
    %3062 = vmatpush.bf16.msra.mxu0 %v2466
    %3063 = vmatpush.bf16.msra.mxu0 %v2464
    %3064 = vmatpush.bf16.msra.mxu0 %v2462
    %3065 = vmatpush.bf16.msra.mxu0 %v2460
    %3066 = vmatmul.bf16.gmra.mxu0 %v2778
    %v3067 = vpop.f32.mrf.mxu0
    %v3068 = vadd.f32 0.0, %v3067
    %v3069 = vpop.f32.mrf.mxu0
    %3070 = vdwg.mxu0
    %3071 = vmatpush.bf16.msra.mxu0 0
    %3072 = vmatpush.bf16.msra.mxu0 0
    %3073 = vmatpush.bf16.msra.mxu0 %v2471
    %3074 = vmatpush.bf16.msra.mxu0 %v2469
    %3075 = vmatpush.bf16.msra.mxu0 %v2467
    %3076 = vmatpush.bf16.msra.mxu0 %v2465
    %3077 = vmatpush.bf16.msra.mxu0 %v2463
    %3078 = vmatpush.bf16.msra.mxu0 %v2461
    %3079 = vmatmul.bf16.gmra.mxu0 %v2778
    %v3080 = vpop.f32.mrf.mxu0
    %v3081 = vadd.f32 0.0, %v3080
    %v3082 = vpop.f32.mrf.mxu0
    %3083 = vdwg.mxu0
    %3084 = vmatpush.bf16.msra.mxu0 0
    %3085 = vmatpush.bf16.msra.mxu0 0
    %3086 = vmatpush.bf16.msra.mxu0 %v2559
    %3087 = vmatpush.bf16.msra.mxu0 %v2557
    %3088 = vmatpush.bf16.msra.mxu0 %v2555
    %3089 = vmatpush.bf16.msra.mxu0 %v2553
    %3090 = vmatpush.bf16.msra.mxu0 %v2551
    %3091 = vmatpush.bf16.msra.mxu0 %v2549
    %3092 = vmatmul.bf16.gmra.mxu0 %v2675
    %v3093 = vpop.f32.mrf.mxu0
    %v3094 = vadd.f32 %v3068, %v3093
    %v3095 = vpop.f32.mrf.mxu0
    %3096 = vdwg.mxu0
    %3097 = vmatpush.bf16.msra.mxu0 0
    %3098 = vmatpush.bf16.msra.mxu0 0
    %3099 = vmatpush.bf16.msra.mxu0 %v2560
    %3100 = vmatpush.bf16.msra.mxu0 %v2558
    %3101 = vmatpush.bf16.msra.mxu0 %v2556
    %3102 = vmatpush.bf16.msra.mxu0 %v2554
    %3103 = vmatpush.bf16.msra.mxu0 %v2552
    %3104 = vmatpush.bf16.msra.mxu0 %v2550
    %3105 = vmatmul.bf16.gmra.mxu0 %v2675
    %v3106 = vpop.f32.mrf.mxu0
    %v3107 = vadd.f32 %v3081, %v3106
    %v3108 = vpop.f32.mrf.mxu0
    %3109 = vdwg.mxu0
    %3110 = vmatpush.bf16.msra.mxu0 0
    %3111 = vmatpush.bf16.msra.mxu0 0
    %3112 = vmatpush.bf16.msra.mxu0 %v2660
    %3113 = vmatpush.bf16.msra.mxu0 %v2658
    %3114 = vmatpush.bf16.msra.mxu0 %v2656
    %3115 = vmatpush.bf16.msra.mxu0 %v2654
    %3116 = vmatpush.bf16.msra.mxu0 %v2652
    %3117 = vmatpush.bf16.msra.mxu0 %v2650
    %3118 = vmatmul.bf16.gmra.mxu0 %v2881
    %v3119 = vpop.f32.mrf.mxu0
    %v3120 = vadd.f32 0.0, %v3119
    %v3121 = vpop.f32.mrf.mxu0
    %3122 = vdwg.mxu0
    %3123 = vmatpush.bf16.msra.mxu0 0
    %3124 = vmatpush.bf16.msra.mxu0 0
    %3125 = vmatpush.bf16.msra.mxu0 %v2661
    %3126 = vmatpush.bf16.msra.mxu0 %v2659
    %3127 = vmatpush.bf16.msra.mxu0 %v2657
    %3128 = vmatpush.bf16.msra.mxu0 %v2655
    %3129 = vmatpush.bf16.msra.mxu0 %v2653
    %3130 = vmatpush.bf16.msra.mxu0 %v2651
    %3131 = vmatmul.bf16.gmra.mxu0 %v2881
    %v3132 = vpop.f32.mrf.mxu0
    %v3133 = vadd.f32 0.0, %v3132
    %v3134 = vpop.f32.mrf.mxu0
    %3135 = vdwg.mxu0
    %v3136 = vadd.f32 %v3094, %v3120
    %v3137 = vadd.f32 %v3107, %v3133
    %3138 = vmatpush.bf16.msra.mxu0 0
    %3139 = vmatpush.bf16.msra.mxu0 0
    %3140 = vmatpush.bf16.msra.mxu0 %v2763
    %3141 = vmatpush.bf16.msra.mxu0 %v2761
    %3142 = vmatpush.bf16.msra.mxu0 %v2759
    %3143 = vmatpush.bf16.msra.mxu0 %v2757
    %3144 = vmatpush.bf16.msra.mxu0 %v2755
    %3145 = vmatpush.bf16.msra.mxu0 %v2753
    %3146 = vmatmul.bf16.gmra.mxu0 %v3024
    %v3147 = vpop.f32.mrf.mxu0
    %v3148 = vadd.f32 0.0, %v3147
    %v3149 = vpop.f32.mrf.mxu0
    %3150 = vdwg.mxu0
    %3151 = vmatpush.bf16.msra.mxu0 0
    %3152 = vmatpush.bf16.msra.mxu0 0
    %3153 = vmatpush.bf16.msra.mxu0 %v2764
    %3154 = vmatpush.bf16.msra.mxu0 %v2762
    %3155 = vmatpush.bf16.msra.mxu0 %v2760
    %3156 = vmatpush.bf16.msra.mxu0 %v2758
    %3157 = vmatpush.bf16.msra.mxu0 %v2756
    %3158 = vmatpush.bf16.msra.mxu0 %v2754
    %3159 = vmatmul.bf16.gmra.mxu0 %v3024
    %v3160 = vpop.f32.mrf.mxu0
    %v3161 = vadd.f32 0.0, %v3160
    %v3162 = vpop.f32.mrf.mxu0
    %3163 = vdwg.mxu0
    %v3164 = vadd.f32 %v3136, %v3148
    %v3165 = vadd.f32 %v3137, %v3161
    %v3167 = vsel %vm149, %v2397, 0
    %3169 = vmatpush.bf16.msra.mxu0 0
    %3170 = vmatpush.bf16.msra.mxu0 0
    %3171 = vmatpush.bf16.msra.mxu0 %v2866
    %3172 = vmatpush.bf16.msra.mxu0 %v2864
    %3173 = vmatpush.bf16.msra.mxu0 %v2862
    %3174 = vmatpush.bf16.msra.mxu0 %v2860
    %3175 = vmatpush.bf16.msra.mxu0 %v2858
    %3176 = vmatpush.bf16.msra.mxu0 %v2856
    %3177 = vmatmul.bf16.gmra.mxu0 %v3167
    %v3178 = vpop.f32.mrf.mxu0
    %v3179 = vadd.f32 0.0, %v3178
    %v3180 = vpop.f32.mrf.mxu0
    %3181 = vdwg.mxu0
    %3182 = vmatpush.bf16.msra.mxu0 0
    %3183 = vmatpush.bf16.msra.mxu0 0
    %3184 = vmatpush.bf16.msra.mxu0 %v2867
    %3185 = vmatpush.bf16.msra.mxu0 %v2865
    %3186 = vmatpush.bf16.msra.mxu0 %v2863
    %3187 = vmatpush.bf16.msra.mxu0 %v2861
    %3188 = vmatpush.bf16.msra.mxu0 %v2859
    %3189 = vmatpush.bf16.msra.mxu0 %v2857
    %3190 = vmatmul.bf16.gmra.mxu0 %v3167
    %v3191 = vpop.f32.mrf.mxu0
    %v3192 = vadd.f32 0.0, %v3191
    %v3193 = vpop.f32.mrf.mxu0
    %3194 = vdwg.mxu0
    %v3195 = vadd.f32 %v3164, %v3179
    %v3196 = vadd.f32 %v3165, %v3192
    %v3197 = vadd.f32 %v3195, %v581
    %v3198 = vadd.f32 %v3196, %v582
    %v3199 = vmax.f32 %v3197, 0.0
    %v3200 = vmax.f32 %v3198, 0.0
    %3201 = vmatpush.bf16.msra.mxu0 0
    %3202 = vmatpush.bf16.msra.mxu0 0
    %3203 = vmatpush.bf16.msra.mxu0 %v2470
    %3204 = vmatpush.bf16.msra.mxu0 %v2468
    %3205 = vmatpush.bf16.msra.mxu0 %v2466
    %3206 = vmatpush.bf16.msra.mxu0 %v2464
    %3207 = vmatpush.bf16.msra.mxu0 %v2462
    %3208 = vmatpush.bf16.msra.mxu0 %v2460
    %3209 = vmatmul.bf16.gmra.mxu0 %v2881
    %v3210 = vpop.f32.mrf.mxu0
    %v3211 = vadd.f32 0.0, %v3210
    %v3212 = vpop.f32.mrf.mxu0
    %3213 = vdwg.mxu0
    %3214 = vmatpush.bf16.msra.mxu0 0
    %3215 = vmatpush.bf16.msra.mxu0 0
    %3216 = vmatpush.bf16.msra.mxu0 %v2471
    %3217 = vmatpush.bf16.msra.mxu0 %v2469
    %3218 = vmatpush.bf16.msra.mxu0 %v2467
    %3219 = vmatpush.bf16.msra.mxu0 %v2465
    %3220 = vmatpush.bf16.msra.mxu0 %v2463
    %3221 = vmatpush.bf16.msra.mxu0 %v2461
    %3222 = vmatmul.bf16.gmra.mxu0 %v2881
    %v3223 = vpop.f32.mrf.mxu0
    %v3224 = vadd.f32 0.0, %v3223
    %v3225 = vpop.f32.mrf.mxu0
    %3226 = vdwg.mxu0
    %3227 = vmatpush.bf16.msra.mxu0 0
    %3228 = vmatpush.bf16.msra.mxu0 0
    %3229 = vmatpush.bf16.msra.mxu0 %v2559
    %3230 = vmatpush.bf16.msra.mxu0 %v2557
    %3231 = vmatpush.bf16.msra.mxu0 %v2555
    %3232 = vmatpush.bf16.msra.mxu0 %v2553
    %3233 = vmatpush.bf16.msra.mxu0 %v2551
    %3234 = vmatpush.bf16.msra.mxu0 %v2549
    %3235 = vmatmul.bf16.gmra.mxu0 %v2778
    %v3236 = vpop.f32.mrf.mxu0
    %v3237 = vadd.f32 %v3211, %v3236
    %v3238 = vpop.f32.mrf.mxu0
    %3239 = vdwg.mxu0
    %3240 = vmatpush.bf16.msra.mxu0 0
    %3241 = vmatpush.bf16.msra.mxu0 0
    %3242 = vmatpush.bf16.msra.mxu0 %v2560
    %3243 = vmatpush.bf16.msra.mxu0 %v2558
    %3244 = vmatpush.bf16.msra.mxu0 %v2556
    %3245 = vmatpush.bf16.msra.mxu0 %v2554
    %3246 = vmatpush.bf16.msra.mxu0 %v2552
    %3247 = vmatpush.bf16.msra.mxu0 %v2550
    %3248 = vmatmul.bf16.gmra.mxu0 %v2778
    %v3249 = vpop.f32.mrf.mxu0
    %v3250 = vadd.f32 %v3224, %v3249
    %v3251 = vpop.f32.mrf.mxu0
    %3252 = vdwg.mxu0
    %3253 = vmatpush.bf16.msra.mxu0 0
    %3254 = vmatpush.bf16.msra.mxu0 0
    %3255 = vmatpush.bf16.msra.mxu0 %v2660
    %3256 = vmatpush.bf16.msra.mxu0 %v2658
    %3257 = vmatpush.bf16.msra.mxu0 %v2656
    %3258 = vmatpush.bf16.msra.mxu0 %v2654
    %3259 = vmatpush.bf16.msra.mxu0 %v2652
    %3260 = vmatpush.bf16.msra.mxu0 %v2650
    %3261 = vmatmul.bf16.gmra.mxu0 %v3024
    %v3262 = vpop.f32.mrf.mxu0
    %v3263 = vadd.f32 0.0, %v3262
    %v3264 = vpop.f32.mrf.mxu0
    %3265 = vdwg.mxu0
    %3266 = vmatpush.bf16.msra.mxu0 0
    %3267 = vmatpush.bf16.msra.mxu0 0
    %3268 = vmatpush.bf16.msra.mxu0 %v2661
    %3269 = vmatpush.bf16.msra.mxu0 %v2659
    %3270 = vmatpush.bf16.msra.mxu0 %v2657
    %3271 = vmatpush.bf16.msra.mxu0 %v2655
    %3272 = vmatpush.bf16.msra.mxu0 %v2653
    %3273 = vmatpush.bf16.msra.mxu0 %v2651
    %3274 = vmatmul.bf16.gmra.mxu0 %v3024
    %v3275 = vpop.f32.mrf.mxu0
    %v3276 = vadd.f32 0.0, %v3275
    %v3277 = vpop.f32.mrf.mxu0
    %3278 = vdwg.mxu0
    %v3279 = vadd.f32 %v3237, %v3263
    %v3280 = vadd.f32 %v3250, %v3276
    %3281 = vmatpush.bf16.msra.mxu0 0
    %3282 = vmatpush.bf16.msra.mxu0 0
    %3283 = vmatpush.bf16.msra.mxu0 %v2763
    %3284 = vmatpush.bf16.msra.mxu0 %v2761
    %3285 = vmatpush.bf16.msra.mxu0 %v2759
    %3286 = vmatpush.bf16.msra.mxu0 %v2757
    %3287 = vmatpush.bf16.msra.mxu0 %v2755
    %3288 = vmatpush.bf16.msra.mxu0 %v2753
    %3289 = vmatmul.bf16.gmra.mxu0 %v3167
    %v3290 = vpop.f32.mrf.mxu0
    %v3291 = vadd.f32 0.0, %v3290
    %v3292 = vpop.f32.mrf.mxu0
    %3293 = vdwg.mxu0
    %3294 = vmatpush.bf16.msra.mxu0 0
    %3295 = vmatpush.bf16.msra.mxu0 0
    %3296 = vmatpush.bf16.msra.mxu0 %v2764
    %3297 = vmatpush.bf16.msra.mxu0 %v2762
    %3298 = vmatpush.bf16.msra.mxu0 %v2760
    %3299 = vmatpush.bf16.msra.mxu0 %v2758
    %3300 = vmatpush.bf16.msra.mxu0 %v2756
    %3301 = vmatpush.bf16.msra.mxu0 %v2754
    %3302 = vmatmul.bf16.gmra.mxu0 %v3167
    %v3303 = vpop.f32.mrf.mxu0
    %v3304 = vadd.f32 0.0, %v3303
    %v3305 = vpop.f32.mrf.mxu0
    %3306 = vdwg.mxu0
    %v3307 = vadd.f32 %v3279, %v3291
    %v3308 = vadd.f32 %v3280, %v3304
    %v3310 = vsel %vm149, %v2399, 0
    %3312 = vmatpush.bf16.msra.mxu0 0
    %3313 = vmatpush.bf16.msra.mxu0 0
    %3314 = vmatpush.bf16.msra.mxu0 %v2866
    %3315 = vmatpush.bf16.msra.mxu0 %v2864
    %3316 = vmatpush.bf16.msra.mxu0 %v2862
    %3317 = vmatpush.bf16.msra.mxu0 %v2860
    %3318 = vmatpush.bf16.msra.mxu0 %v2858
    %3319 = vmatpush.bf16.msra.mxu0 %v2856
    %3320 = vmatmul.bf16.gmra.mxu0 %v3310
    %v3321 = vpop.f32.mrf.mxu0
    %v3322 = vadd.f32 0.0, %v3321
    %v3323 = vpop.f32.mrf.mxu0
    %3324 = vdwg.mxu0
    %3325 = vmatpush.bf16.msra.mxu0 0
    %3326 = vmatpush.bf16.msra.mxu0 0
    %3327 = vmatpush.bf16.msra.mxu0 %v2867
    %3328 = vmatpush.bf16.msra.mxu0 %v2865
    %3329 = vmatpush.bf16.msra.mxu0 %v2863
    %3330 = vmatpush.bf16.msra.mxu0 %v2861
    %3331 = vmatpush.bf16.msra.mxu0 %v2859
    %3332 = vmatpush.bf16.msra.mxu0 %v2857
    %3333 = vmatmul.bf16.gmra.mxu0 %v3310
    %v3334 = vpop.f32.mrf.mxu0
    %v3335 = vadd.f32 0.0, %v3334
    %v3336 = vpop.f32.mrf.mxu0
    %3337 = vdwg.mxu0
    %v3338 = vadd.f32 %v3307, %v3322
    %v3339 = vadd.f32 %v3308, %v3335
    %v3340 = vadd.f32 %v3338, %v581
    %v3341 = vadd.f32 %v3339, %v582
    %v3342 = vmax.f32 %v3340, 0.0
    %v3343 = vmax.f32 %v3341, 0.0
    %v3344 = vmax.f32 %v2913, %v3056
    %v3345 = vmax.f32 %v2914, %v3057
    %v3346 = vmax.f32 %v3344, %v3345
    %v3347 = vmax.f32 %v3199, %v3342
    %v3348 = vmax.f32 %v3200, %v3343
    %v3349 = vmax.f32 %v3347, %v3348
    %v3350 = vpack.c.bf16 %v3346, %v3346
    %v3351 = vpack.c.bf16 %v3349, %v3349
    %v3352 = vld [vmem:[%s3] sm:$0xff]
    %v3353 = vld [vmem:[%s3 + $0x8] sm:$0xff]
    %v3354 = vld [vmem:[%s3 + $0x10] sm:$0xff]
    %v3355 = vld [vmem:[%s3 + $0x18] sm:$0xff]
    %v3356 = vld [vmem:[%s3 + $0x20] sm:$0xff]
    %v3357 = vld [vmem:[%s3 + $0x28] sm:$0xff]
    %v3358 = vld [vmem:[%s3 + $0x30] sm:$0xff]
    %v3359 = vld [vmem:[%s3 + $0x38] sm:$0xff]
    %v3360 = vld [vmem:[%s3 + $0x40] sm:$0xff]
    %v3361 = vld [vmem:[%s3 + $0x48] sm:$0xff]
    %v3362 = vld [vmem:[%s3 + $0x50] sm:$0xff]
    %v3363 = vld [vmem:[%s3 + $0x58] sm:$0xff]
    %v3364 = vld [vmem:[%s3 + $0x60] sm:$0xff]
    %v3365 = vld [vmem:[%s3 + $0x68] sm:$0xff]
    %v3366 = vld [vmem:[%s3 + $0x70] sm:$0xff]
    %v3367 = vld [vmem:[%s3 + $0x78] sm:$0xff]
    %v3368 = vld [vmem:[%s1042] sm:$0xff]
    %v3369 = vld [vmem:[%s1042 + $0x8] sm:$0xff]
    %v3370 = vld [vmem:[%s1042 + $0x10] sm:$0xff]
    %v3371 = vld [vmem:[%s1042 + $0x18] sm:$0xff]
    %v3372 = vld [vmem:[%s1042 + $0x20] sm:$0xff]
    %v3373 = vld [vmem:[%s1042 + $0x28] sm:$0xff]
    %v3374 = vld [vmem:[%s1042 + $0x30] sm:$0xff]
    %v3375 = vld [vmem:[%s1042 + $0x38] sm:$0xff]
    %v3376 = vld [vmem:[%s1042 + $0x40] sm:$0xff]
    %v3377 = vld [vmem:[%s1042 + $0x48] sm:$0xff]
    %v3378 = vld [vmem:[%s1042 + $0x50] sm:$0xff]
    %v3379 = vld [vmem:[%s1042 + $0x58] sm:$0xff]
    %v3380 = vld [vmem:[%s1042 + $0x60] sm:$0xff]
    %v3381 = vld [vmem:[%s1042 + $0x68] sm:$0xff]
    %v3382 = vld [vmem:[%s1042 + $0x70] sm:$0xff]
    %v3383 = vld [vmem:[%s1042 + $0x78] sm:$0xff]
    %v3400 = vunpack.c.l.b16 %v3368
    %v3401 = vunpack.c.h.b16 %v3368
    %v3402 = vunpack.c.l.b16 %v3369
    %v3403 = vunpack.c.h.b16 %v3369
    %v3404 = vunpack.c.l.b16 %v3370
    %v3405 = vunpack.c.h.b16 %v3370
    %v3406 = vunpack.c.l.b16 %v3371
    %v3407 = vunpack.c.h.b16 %v3371
    %v3408 = vunpack.c.l.b16 %v3372
    %v3409 = vunpack.c.h.b16 %v3372
    %v3410 = vunpack.c.l.b16 %v3373
    %v3411 = vunpack.c.h.b16 %v3373
    %v3412 = vunpack.c.l.b16 %v3374
    %v3413 = vunpack.c.h.b16 %v3374
    %v3414 = vunpack.c.l.b16 %v3375
    %v3415 = vunpack.c.h.b16 %v3375
    %v3416 = vunpack.c.l.b16 %v3376
    %v3417 = vunpack.c.h.b16 %v3376
    %v3418 = vunpack.c.l.b16 %v3377
    %v3419 = vunpack.c.h.b16 %v3377
    %v3420 = vunpack.c.l.b16 %v3378
    %v3421 = vunpack.c.h.b16 %v3378
    %v3422 = vunpack.c.l.b16 %v3379
    %v3423 = vunpack.c.h.b16 %v3379
    %v3424 = vunpack.c.l.b16 %v3380
    %v3425 = vunpack.c.h.b16 %v3380
    %v3426 = vunpack.c.l.b16 %v3381
    %v3427 = vunpack.c.h.b16 %v3381
    %v3428 = vunpack.c.l.b16 %v3382
    %v3429 = vunpack.c.h.b16 %v3382
    %v3430 = vunpack.c.l.b16 %v3383
    %v3431 = vunpack.c.h.b16 %v3383
    %v3432 = vpack.c.b16 %v3402, %v3400
    %v3433 = vpack.c.b16 %v3403, %v3401
    %v3434 = vpack.c.b16 %v3406, %v3404
    %v3435 = vpack.c.b16 %v3407, %v3405
    %v3436 = vpack.c.b16 %v3410, %v3408
    %v3437 = vpack.c.b16 %v3411, %v3409
    %v3438 = vpack.c.b16 %v3414, %v3412
    %v3439 = vpack.c.b16 %v3415, %v3413
    %v3440 = vpack.c.b16 %v3418, %v3416
    %v3441 = vpack.c.b16 %v3419, %v3417
    %v3442 = vpack.c.b16 %v3422, %v3420
    %v3443 = vpack.c.b16 %v3423, %v3421
    %v3444 = vpack.c.b16 %v3426, %v3424
    %v3445 = vpack.c.b16 %v3427, %v3425
    %v3446 = vpack.c.b16 %v3430, %v3428
    %v3447 = vpack.c.b16 %v3431, %v3429
    %3464 = vmatpush.bf16.msra.mxu0 %v3446
    %3465 = vmatpush.bf16.msra.mxu0 %v3444
    %3466 = vmatpush.bf16.msra.mxu0 %v3442
    %3467 = vmatpush.bf16.msra.mxu0 %v3440
    %3468 = vmatpush.bf16.msra.mxu0 %v3438
    %3469 = vmatpush.bf16.msra.mxu0 %v3436
    %3470 = vmatpush.bf16.msra.mxu0 %v3434
    %3471 = vmatpush.bf16.msra.mxu0 %v3432
    %3472 = vmatmul.bf16.gmra.mxu0 %v3351
    %v3473 = vpop.f32.mrf.mxu0
    %v3474 = vadd.f32 0.0, %v3473
    %v3475 = vpop.f32.mrf.mxu0
    %3476 = vdwg.mxu0
    %3477 = vmatpush.bf16.msra.mxu0 %v3447
    %3478 = vmatpush.bf16.msra.mxu0 %v3445
    %3479 = vmatpush.bf16.msra.mxu0 %v3443
    %3480 = vmatpush.bf16.msra.mxu0 %v3441
    %3481 = vmatpush.bf16.msra.mxu0 %v3439
    %3482 = vmatpush.bf16.msra.mxu0 %v3437
    %3483 = vmatpush.bf16.msra.mxu0 %v3435
    %3484 = vmatpush.bf16.msra.mxu0 %v3433
    %3485 = vmatmul.bf16.gmra.mxu0 %v3351
    %v3486 = vpop.f32.mrf.mxu0
    %v3487 = vadd.f32 0.0, %v3486
    %v3488 = vpop.f32.mrf.mxu0
    %3489 = vdwg.mxu0
    %v3506 = vunpack.c.l.b16 %v3352
    %v3507 = vunpack.c.h.b16 %v3352
    %v3508 = vunpack.c.l.b16 %v3353
    %v3509 = vunpack.c.h.b16 %v3353
    %v3510 = vunpack.c.l.b16 %v3354
    %v3511 = vunpack.c.h.b16 %v3354
    %v3512 = vunpack.c.l.b16 %v3355
    %v3513 = vunpack.c.h.b16 %v3355
    %v3514 = vunpack.c.l.b16 %v3356
    %v3515 = vunpack.c.h.b16 %v3356
    %v3516 = vunpack.c.l.b16 %v3357
    %v3517 = vunpack.c.h.b16 %v3357
    %v3518 = vunpack.c.l.b16 %v3358
    %v3519 = vunpack.c.h.b16 %v3358
    %v3520 = vunpack.c.l.b16 %v3359
    %v3521 = vunpack.c.h.b16 %v3359
    %v3522 = vunpack.c.l.b16 %v3360
    %v3523 = vunpack.c.h.b16 %v3360
    %v3524 = vunpack.c.l.b16 %v3361
    %v3525 = vunpack.c.h.b16 %v3361
    %v3526 = vunpack.c.l.b16 %v3362
    %v3527 = vunpack.c.h.b16 %v3362
    %v3528 = vunpack.c.l.b16 %v3363
    %v3529 = vunpack.c.h.b16 %v3363
    %v3530 = vunpack.c.l.b16 %v3364
    %v3531 = vunpack.c.h.b16 %v3364
    %v3532 = vunpack.c.l.b16 %v3365
    %v3533 = vunpack.c.h.b16 %v3365
    %v3534 = vunpack.c.l.b16 %v3366
    %v3535 = vunpack.c.h.b16 %v3366
    %v3536 = vunpack.c.l.b16 %v3367
    %v3537 = vunpack.c.h.b16 %v3367
    %v3538 = vpack.c.b16 %v3508, %v3506
    %v3539 = vpack.c.b16 %v3509, %v3507
    %v3540 = vpack.c.b16 %v3512, %v3510
    %v3541 = vpack.c.b16 %v3513, %v3511
    %v3542 = vpack.c.b16 %v3516, %v3514
    %v3543 = vpack.c.b16 %v3517, %v3515
    %v3544 = vpack.c.b16 %v3520, %v3518
    %v3545 = vpack.c.b16 %v3521, %v3519
    %v3546 = vpack.c.b16 %v3524, %v3522
    %v3547 = vpack.c.b16 %v3525, %v3523
    %v3548 = vpack.c.b16 %v3528, %v3526
    %v3549 = vpack.c.b16 %v3529, %v3527
    %v3550 = vpack.c.b16 %v3532, %v3530
    %v3551 = vpack.c.b16 %v3533, %v3531
    %v3552 = vpack.c.b16 %v3536, %v3534
    %v3553 = vpack.c.b16 %v3537, %v3535
    %3570 = vmatpush.bf16.msra.mxu0 %v3552
    %3571 = vmatpush.bf16.msra.mxu0 %v3550
    %3572 = vmatpush.bf16.msra.mxu0 %v3548
    %3573 = vmatpush.bf16.msra.mxu0 %v3546
    %3574 = vmatpush.bf16.msra.mxu0 %v3544
    %3575 = vmatpush.bf16.msra.mxu0 %v3542
    %3576 = vmatpush.bf16.msra.mxu0 %v3540
    %3577 = vmatpush.bf16.msra.mxu0 %v3538
    %3578 = vmatmul.bf16.gmra.mxu0 %v3350
    %v3579 = vpop.f32.mrf.mxu0
    %v3580 = vadd.f32 %v3474, %v3579
    %v3581 = vpop.f32.mrf.mxu0
    %3582 = vdwg.mxu0
    %3583 = vmatpush.bf16.msra.mxu0 %v3553
    %3584 = vmatpush.bf16.msra.mxu0 %v3551
    %3585 = vmatpush.bf16.msra.mxu0 %v3549
    %3586 = vmatpush.bf16.msra.mxu0 %v3547
    %3587 = vmatpush.bf16.msra.mxu0 %v3545
    %3588 = vmatpush.bf16.msra.mxu0 %v3543
    %3589 = vmatpush.bf16.msra.mxu0 %v3541
    %3590 = vmatpush.bf16.msra.mxu0 %v3539
    %3591 = vmatmul.bf16.gmra.mxu0 %v3350
    %v3592 = vpop.f32.mrf.mxu0
    %v3593 = vadd.f32 %v3487, %v3592
    %v3594 = vpop.f32.mrf.mxu0
    %3595 = vdwg.mxu0
    %v3596 = vld [vmem:[%s1271] sm:$0xff]
    %v3597 = vld [vmem:[%s1271 + $0x8] sm:$0xff]
    %v3598 = vld [vmem:[%s1271 + $0x10] sm:$0xff]
    %v3599 = vld [vmem:[%s1271 + $0x18] sm:$0xff]
    %v3600 = vld [vmem:[%s1271 + $0x20] sm:$0xff]
    %v3601 = vld [vmem:[%s1271 + $0x28] sm:$0xff]
    %v3602 = vld [vmem:[%s1271 + $0x30] sm:$0xff]
    %v3603 = vld [vmem:[%s1271 + $0x38] sm:$0xff]
    %v3604 = vld [vmem:[%s1271 + $0x40] sm:$0xff]
    %v3605 = vld [vmem:[%s1271 + $0x48] sm:$0xff]
    %v3606 = vld [vmem:[%s1271 + $0x50] sm:$0xff]
    %v3607 = vld [vmem:[%s1271 + $0x58] sm:$0xff]
    %v3608 = vld [vmem:[%s1271 + $0x60] sm:$0xff]
    %v3609 = vld [vmem:[%s1271 + $0x68] sm:$0xff]
    %v3610 = vld [vmem:[%s1271 + $0x70] sm:$0xff]
    %v3611 = vld [vmem:[%s1271 + $0x78] sm:$0xff]
    %v3613 = vshrl.u32 %v3350, 16
    %v3615 = vshll.u32 %v3350, 16
    %v3617 = vrot.slane %v3615, 1
    %v3618 = vor.u32 %v3613, %v3617
    %v3636 = vunpack.c.l.b16 %v3596
    %v3637 = vunpack.c.h.b16 %v3596
    %v3638 = vunpack.c.l.b16 %v3597
    %v3639 = vunpack.c.h.b16 %v3597
    %v3640 = vunpack.c.l.b16 %v3598
    %v3641 = vunpack.c.h.b16 %v3598
    %v3642 = vunpack.c.l.b16 %v3599
    %v3643 = vunpack.c.h.b16 %v3599
    %v3644 = vunpack.c.l.b16 %v3600
    %v3645 = vunpack.c.h.b16 %v3600
    %v3646 = vunpack.c.l.b16 %v3601
    %v3647 = vunpack.c.h.b16 %v3601
    %v3648 = vunpack.c.l.b16 %v3602
    %v3649 = vunpack.c.h.b16 %v3602
    %v3650 = vunpack.c.l.b16 %v3603
    %v3651 = vunpack.c.h.b16 %v3603
    %v3652 = vunpack.c.l.b16 %v3604
    %v3653 = vunpack.c.h.b16 %v3604
    %v3654 = vunpack.c.l.b16 %v3605
    %v3655 = vunpack.c.h.b16 %v3605
    %v3656 = vunpack.c.l.b16 %v3606
    %v3657 = vunpack.c.h.b16 %v3606
    %v3658 = vunpack.c.l.b16 %v3607
    %v3659 = vunpack.c.h.b16 %v3607
    %v3660 = vunpack.c.l.b16 %v3608
    %v3661 = vunpack.c.h.b16 %v3608
    %v3662 = vunpack.c.l.b16 %v3609
    %v3663 = vunpack.c.h.b16 %v3609
    %v3664 = vunpack.c.l.b16 %v3610
    %v3665 = vunpack.c.h.b16 %v3610
    %v3666 = vunpack.c.l.b16 %v3611
    %v3667 = vunpack.c.h.b16 %v3611
    %v3668 = vpack.c.b16 %v3638, %v3636
    %v3669 = vpack.c.b16 %v3639, %v3637
    %v3670 = vpack.c.b16 %v3642, %v3640
    %v3671 = vpack.c.b16 %v3643, %v3641
    %v3672 = vpack.c.b16 %v3646, %v3644
    %v3673 = vpack.c.b16 %v3647, %v3645
    %v3674 = vpack.c.b16 %v3650, %v3648
    %v3675 = vpack.c.b16 %v3651, %v3649
    %v3676 = vpack.c.b16 %v3654, %v3652
    %v3677 = vpack.c.b16 %v3655, %v3653
    %v3678 = vpack.c.b16 %v3658, %v3656
    %v3679 = vpack.c.b16 %v3659, %v3657
    %v3680 = vpack.c.b16 %v3662, %v3660
    %v3681 = vpack.c.b16 %v3663, %v3661
    %v3682 = vpack.c.b16 %v3666, %v3664
    %v3683 = vpack.c.b16 %v3667, %v3665
    %3700 = vmatpush.bf16.msra.mxu0 %v3682
    %3701 = vmatpush.bf16.msra.mxu0 %v3680
    %3702 = vmatpush.bf16.msra.mxu0 %v3678
    %3703 = vmatpush.bf16.msra.mxu0 %v3676
    %3704 = vmatpush.bf16.msra.mxu0 %v3674
    %3705 = vmatpush.bf16.msra.mxu0 %v3672
    %3706 = vmatpush.bf16.msra.mxu0 %v3670
    %3707 = vmatpush.bf16.msra.mxu0 %v3668
    %3708 = vmatmul.bf16.gmra.mxu0 %v3618
    %v3709 = vpop.f32.mrf.mxu0
    %v3710 = vadd.f32 0.0, %v3709
    %v3711 = vpop.f32.mrf.mxu0
    %3712 = vdwg.mxu0
    %3713 = vmatpush.bf16.msra.mxu0 %v3683
    %3714 = vmatpush.bf16.msra.mxu0 %v3681
    %3715 = vmatpush.bf16.msra.mxu0 %v3679
    %3716 = vmatpush.bf16.msra.mxu0 %v3677
    %3717 = vmatpush.bf16.msra.mxu0 %v3675
    %3718 = vmatpush.bf16.msra.mxu0 %v3673
    %3719 = vmatpush.bf16.msra.mxu0 %v3671
    %3720 = vmatpush.bf16.msra.mxu0 %v3669
    %3721 = vmatmul.bf16.gmra.mxu0 %v3618
    %v3722 = vpop.f32.mrf.mxu0
    %v3723 = vadd.f32 0.0, %v3722
    %v3724 = vpop.f32.mrf.mxu0
    %3725 = vdwg.mxu0
    %v3726 = vadd.f32 %v3580, %v3710
    %v3727 = vadd.f32 %v3593, %v3723
    %v3728 = vld [vmem:[%s1404] sm:$0xff]
    %v3729 = vld [vmem:[%s1404 + $0x8] sm:$0xff]
    %v3730 = vld [vmem:[%s1404 + $0x10] sm:$0xff]
    %v3731 = vld [vmem:[%s1404 + $0x18] sm:$0xff]
    %v3732 = vld [vmem:[%s1404 + $0x20] sm:$0xff]
    %v3733 = vld [vmem:[%s1404 + $0x28] sm:$0xff]
    %v3734 = vld [vmem:[%s1404 + $0x30] sm:$0xff]
    %v3735 = vld [vmem:[%s1404 + $0x38] sm:$0xff]
    %v3736 = vld [vmem:[%s1404 + $0x40] sm:$0xff]
    %v3737 = vld [vmem:[%s1404 + $0x48] sm:$0xff]
    %v3738 = vld [vmem:[%s1404 + $0x50] sm:$0xff]
    %v3739 = vld [vmem:[%s1404 + $0x58] sm:$0xff]
    %v3740 = vld [vmem:[%s1404 + $0x60] sm:$0xff]
    %v3741 = vld [vmem:[%s1404 + $0x68] sm:$0xff]
    %v3742 = vld [vmem:[%s1404 + $0x70] sm:$0xff]
    %v3743 = vld [vmem:[%s1404 + $0x78] sm:$0xff]
    %v3745 = vshrl.u32 %v3351, 16
    %v3747 = vshll.u32 %v3351, 16
    %v3749 = vrot.slane %v3747, 1
    %v3750 = vor.u32 %v3745, %v3749
    %v3768 = vunpack.c.l.b16 %v3728
    %v3769 = vunpack.c.h.b16 %v3728
    %v3770 = vunpack.c.l.b16 %v3729
    %v3771 = vunpack.c.h.b16 %v3729
    %v3772 = vunpack.c.l.b16 %v3730
    %v3773 = vunpack.c.h.b16 %v3730
    %v3774 = vunpack.c.l.b16 %v3731
    %v3775 = vunpack.c.h.b16 %v3731
    %v3776 = vunpack.c.l.b16 %v3732
    %v3777 = vunpack.c.h.b16 %v3732
    %v3778 = vunpack.c.l.b16 %v3733
    %v3779 = vunpack.c.h.b16 %v3733
    %v3780 = vunpack.c.l.b16 %v3734
    %v3781 = vunpack.c.h.b16 %v3734
    %v3782 = vunpack.c.l.b16 %v3735
    %v3783 = vunpack.c.h.b16 %v3735
    %v3784 = vunpack.c.l.b16 %v3736
    %v3785 = vunpack.c.h.b16 %v3736
    %v3786 = vunpack.c.l.b16 %v3737
    %v3787 = vunpack.c.h.b16 %v3737
    %v3788 = vunpack.c.l.b16 %v3738
    %v3789 = vunpack.c.h.b16 %v3738
    %v3790 = vunpack.c.l.b16 %v3739
    %v3791 = vunpack.c.h.b16 %v3739
    %v3792 = vunpack.c.l.b16 %v3740
    %v3793 = vunpack.c.h.b16 %v3740
    %v3794 = vunpack.c.l.b16 %v3741
    %v3795 = vunpack.c.h.b16 %v3741
    %v3796 = vunpack.c.l.b16 %v3742
    %v3797 = vunpack.c.h.b16 %v3742
    %v3798 = vunpack.c.l.b16 %v3743
    %v3799 = vunpack.c.h.b16 %v3743
    %v3800 = vpack.c.b16 %v3770, %v3768
    %v3801 = vpack.c.b16 %v3771, %v3769
    %v3802 = vpack.c.b16 %v3774, %v3772
    %v3803 = vpack.c.b16 %v3775, %v3773
    %v3804 = vpack.c.b16 %v3778, %v3776
    %v3805 = vpack.c.b16 %v3779, %v3777
    %v3806 = vpack.c.b16 %v3782, %v3780
    %v3807 = vpack.c.b16 %v3783, %v3781
    %v3808 = vpack.c.b16 %v3786, %v3784
    %v3809 = vpack.c.b16 %v3787, %v3785
    %v3810 = vpack.c.b16 %v3790, %v3788
    %v3811 = vpack.c.b16 %v3791, %v3789
    %v3812 = vpack.c.b16 %v3794, %v3792
    %v3813 = vpack.c.b16 %v3795, %v3793
    %v3814 = vpack.c.b16 %v3798, %v3796
    %v3815 = vpack.c.b16 %v3799, %v3797
    %3832 = vmatpush.bf16.msra.mxu0 %v3814
    %3833 = vmatpush.bf16.msra.mxu0 %v3812
    %3834 = vmatpush.bf16.msra.mxu0 %v3810
    %3835 = vmatpush.bf16.msra.mxu0 %v3808
    %3836 = vmatpush.bf16.msra.mxu0 %v3806
    %3837 = vmatpush.bf16.msra.mxu0 %v3804
    %3838 = vmatpush.bf16.msra.mxu0 %v3802
    %3839 = vmatpush.bf16.msra.mxu0 %v3800
    %3840 = vmatmul.bf16.gmra.mxu0 %v3750
    %v3841 = vpop.f32.mrf.mxu0
    %v3842 = vadd.f32 0.0, %v3841
    %v3843 = vpop.f32.mrf.mxu0
    %3844 = vdwg.mxu0
    %3845 = vmatpush.bf16.msra.mxu0 %v3815
    %3846 = vmatpush.bf16.msra.mxu0 %v3813
    %3847 = vmatpush.bf16.msra.mxu0 %v3811
    %3848 = vmatpush.bf16.msra.mxu0 %v3809
    %3849 = vmatpush.bf16.msra.mxu0 %v3807
    %3850 = vmatpush.bf16.msra.mxu0 %v3805
    %3851 = vmatpush.bf16.msra.mxu0 %v3803
    %3852 = vmatpush.bf16.msra.mxu0 %v3801
    %3853 = vmatmul.bf16.gmra.mxu0 %v3750
    %v3854 = vpop.f32.mrf.mxu0
    %v3855 = vadd.f32 0.0, %v3854
    %v3856 = vpop.f32.mrf.mxu0
    %3857 = vdwg.mxu0
    %v3858 = vadd.f32 %v3726, %v3842
    %v3859 = vadd.f32 %v3727, %v3855
    %v3860 = vld [vmem:[%s1537] sm:$0xff]
    %v3861 = vld [vmem:[%s1537 + $0x8] sm:$0xff]
    %v3862 = vld [vmem:[%s1537 + $0x10] sm:$0xff]
    %v3863 = vld [vmem:[%s1537 + $0x18] sm:$0xff]
    %v3864 = vld [vmem:[%s1537 + $0x20] sm:$0xff]
    %v3865 = vld [vmem:[%s1537 + $0x28] sm:$0xff]
    %v3866 = vld [vmem:[%s1537 + $0x30] sm:$0xff]
    %v3867 = vld [vmem:[%s1537 + $0x38] sm:$0xff]
    %v3868 = vld [vmem:[%s1537 + $0x40] sm:$0xff]
    %v3869 = vld [vmem:[%s1537 + $0x48] sm:$0xff]
    %v3870 = vld [vmem:[%s1537 + $0x50] sm:$0xff]
    %v3871 = vld [vmem:[%s1537 + $0x58] sm:$0xff]
    %v3872 = vld [vmem:[%s1537 + $0x60] sm:$0xff]
    %v3873 = vld [vmem:[%s1537 + $0x68] sm:$0xff]
    %v3874 = vld [vmem:[%s1537 + $0x70] sm:$0xff]
    %v3875 = vld [vmem:[%s1537 + $0x78] sm:$0xff]
    %v3877 = vrot.slane %v3350, 1
    %v3895 = vunpack.c.l.b16 %v3860
    %v3896 = vunpack.c.h.b16 %v3860
    %v3897 = vunpack.c.l.b16 %v3861
    %v3898 = vunpack.c.h.b16 %v3861
    %v3899 = vunpack.c.l.b16 %v3862
    %v3900 = vunpack.c.h.b16 %v3862
    %v3901 = vunpack.c.l.b16 %v3863
    %v3902 = vunpack.c.h.b16 %v3863
    %v3903 = vunpack.c.l.b16 %v3864
    %v3904 = vunpack.c.h.b16 %v3864
    %v3905 = vunpack.c.l.b16 %v3865
    %v3906 = vunpack.c.h.b16 %v3865
    %v3907 = vunpack.c.l.b16 %v3866
    %v3908 = vunpack.c.h.b16 %v3866
    %v3909 = vunpack.c.l.b16 %v3867
    %v3910 = vunpack.c.h.b16 %v3867
    %v3911 = vunpack.c.l.b16 %v3868
    %v3912 = vunpack.c.h.b16 %v3868
    %v3913 = vunpack.c.l.b16 %v3869
    %v3914 = vunpack.c.h.b16 %v3869
    %v3915 = vunpack.c.l.b16 %v3870
    %v3916 = vunpack.c.h.b16 %v3870
    %v3917 = vunpack.c.l.b16 %v3871
    %v3918 = vunpack.c.h.b16 %v3871
    %v3919 = vunpack.c.l.b16 %v3872
    %v3920 = vunpack.c.h.b16 %v3872
    %v3921 = vunpack.c.l.b16 %v3873
    %v3922 = vunpack.c.h.b16 %v3873
    %v3923 = vunpack.c.l.b16 %v3874
    %v3924 = vunpack.c.h.b16 %v3874
    %v3925 = vunpack.c.l.b16 %v3875
    %v3926 = vunpack.c.h.b16 %v3875
    %v3927 = vpack.c.b16 %v3897, %v3895
    %v3928 = vpack.c.b16 %v3898, %v3896
    %v3929 = vpack.c.b16 %v3901, %v3899
    %v3930 = vpack.c.b16 %v3902, %v3900
    %v3931 = vpack.c.b16 %v3905, %v3903
    %v3932 = vpack.c.b16 %v3906, %v3904
    %v3933 = vpack.c.b16 %v3909, %v3907
    %v3934 = vpack.c.b16 %v3910, %v3908
    %v3935 = vpack.c.b16 %v3913, %v3911
    %v3936 = vpack.c.b16 %v3914, %v3912
    %v3937 = vpack.c.b16 %v3917, %v3915
    %v3938 = vpack.c.b16 %v3918, %v3916
    %v3939 = vpack.c.b16 %v3921, %v3919
    %v3940 = vpack.c.b16 %v3922, %v3920
    %v3941 = vpack.c.b16 %v3925, %v3923
    %v3942 = vpack.c.b16 %v3926, %v3924
    %3959 = vmatpush.bf16.msra.mxu0 %v3941
    %3960 = vmatpush.bf16.msra.mxu0 %v3939
    %3961 = vmatpush.bf16.msra.mxu0 %v3937
    %3962 = vmatpush.bf16.msra.mxu0 %v3935
    %3963 = vmatpush.bf16.msra.mxu0 %v3933
    %3964 = vmatpush.bf16.msra.mxu0 %v3931
    %3965 = vmatpush.bf16.msra.mxu0 %v3929
    %3966 = vmatpush.bf16.msra.mxu0 %v3927
    %3967 = vmatmul.bf16.gmra.mxu0 %v3877
    %v3968 = vpop.f32.mrf.mxu0
    %v3969 = vadd.f32 0.0, %v3968
    %v3970 = vpop.f32.mrf.mxu0
    %3971 = vdwg.mxu0
    %3972 = vmatpush.bf16.msra.mxu0 %v3942
    %3973 = vmatpush.bf16.msra.mxu0 %v3940
    %3974 = vmatpush.bf16.msra.mxu0 %v3938
    %3975 = vmatpush.bf16.msra.mxu0 %v3936
    %3976 = vmatpush.bf16.msra.mxu0 %v3934
    %3977 = vmatpush.bf16.msra.mxu0 %v3932
    %3978 = vmatpush.bf16.msra.mxu0 %v3930
    %3979 = vmatpush.bf16.msra.mxu0 %v3928
    %3980 = vmatmul.bf16.gmra.mxu0 %v3877
    %v3981 = vpop.f32.mrf.mxu0
    %v3982 = vadd.f32 0.0, %v3981
    %v3983 = vpop.f32.mrf.mxu0
    %3984 = vdwg.mxu0
    %v3985 = vadd.f32 %v3858, %v3969
    %v3986 = vadd.f32 %v3859, %v3982
    %v3987 = vadd.f32 %v3985, %v1666
    %v3988 = vadd.f32 %v3986, %v1667
    %v3989 = vmax.f32 %v3987, 0.0
    %v3990 = vmax.f32 %v3988, 0.0
    %3991 = vmatpush.bf16.msra.mxu0 %v3446
    %3992 = vmatpush.bf16.msra.mxu0 %v3444
    %3993 = vmatpush.bf16.msra.mxu0 %v3442
    %3994 = vmatpush.bf16.msra.mxu0 %v3440
    %3995 = vmatpush.bf16.msra.mxu0 %v3438
    %3996 = vmatpush.bf16.msra.mxu0 %v3436
    %3997 = vmatpush.bf16.msra.mxu0 %v3434
    %3998 = vmatpush.bf16.msra.mxu0 %v3432
    %3999 = vmatmul.bf16.gmra.mxu0 %v3618
    %v4000 = vpop.f32.mrf.mxu0
    %v4001 = vadd.f32 0.0, %v4000
    %v4002 = vpop.f32.mrf.mxu0
    %4003 = vdwg.mxu0
    %4004 = vmatpush.bf16.msra.mxu0 %v3447
    %4005 = vmatpush.bf16.msra.mxu0 %v3445
    %4006 = vmatpush.bf16.msra.mxu0 %v3443
    %4007 = vmatpush.bf16.msra.mxu0 %v3441
    %4008 = vmatpush.bf16.msra.mxu0 %v3439
    %4009 = vmatpush.bf16.msra.mxu0 %v3437
    %4010 = vmatpush.bf16.msra.mxu0 %v3435
    %4011 = vmatpush.bf16.msra.mxu0 %v3433
    %4012 = vmatmul.bf16.gmra.mxu0 %v3618
    %v4013 = vpop.f32.mrf.mxu0
    %v4014 = vadd.f32 0.0, %v4013
    %v4015 = vpop.f32.mrf.mxu0
    %4016 = vdwg.mxu0
    %4017 = vmatpush.bf16.msra.mxu0 %v3552
    %4018 = vmatpush.bf16.msra.mxu0 %v3550
    %4019 = vmatpush.bf16.msra.mxu0 %v3548
    %4020 = vmatpush.bf16.msra.mxu0 %v3546
    %4021 = vmatpush.bf16.msra.mxu0 %v3544
    %4022 = vmatpush.bf16.msra.mxu0 %v3542
    %4023 = vmatpush.bf16.msra.mxu0 %v3540
    %4024 = vmatpush.bf16.msra.mxu0 %v3538
    %4025 = vmatmul.bf16.gmra.mxu0 %v3351
    %v4026 = vpop.f32.mrf.mxu0
    %v4027 = vadd.f32 %v4001, %v4026
    %v4028 = vpop.f32.mrf.mxu0
    %4029 = vdwg.mxu0
    %4030 = vmatpush.bf16.msra.mxu0 %v3553
    %4031 = vmatpush.bf16.msra.mxu0 %v3551
    %4032 = vmatpush.bf16.msra.mxu0 %v3549
    %4033 = vmatpush.bf16.msra.mxu0 %v3547
    %4034 = vmatpush.bf16.msra.mxu0 %v3545
    %4035 = vmatpush.bf16.msra.mxu0 %v3543
    %4036 = vmatpush.bf16.msra.mxu0 %v3541
    %4037 = vmatpush.bf16.msra.mxu0 %v3539
    %4038 = vmatmul.bf16.gmra.mxu0 %v3351
    %v4039 = vpop.f32.mrf.mxu0
    %v4040 = vadd.f32 %v4014, %v4039
    %v4041 = vpop.f32.mrf.mxu0
    %4042 = vdwg.mxu0
    %4043 = vmatpush.bf16.msra.mxu0 %v3682
    %4044 = vmatpush.bf16.msra.mxu0 %v3680
    %4045 = vmatpush.bf16.msra.mxu0 %v3678
    %4046 = vmatpush.bf16.msra.mxu0 %v3676
    %4047 = vmatpush.bf16.msra.mxu0 %v3674
    %4048 = vmatpush.bf16.msra.mxu0 %v3672
    %4049 = vmatpush.bf16.msra.mxu0 %v3670
    %4050 = vmatpush.bf16.msra.mxu0 %v3668
    %4051 = vmatmul.bf16.gmra.mxu0 %v3750
    %v4052 = vpop.f32.mrf.mxu0
    %v4053 = vadd.f32 0.0, %v4052
    %v4054 = vpop.f32.mrf.mxu0
    %4055 = vdwg.mxu0
    %4056 = vmatpush.bf16.msra.mxu0 %v3683
    %4057 = vmatpush.bf16.msra.mxu0 %v3681
    %4058 = vmatpush.bf16.msra.mxu0 %v3679
    %4059 = vmatpush.bf16.msra.mxu0 %v3677
    %4060 = vmatpush.bf16.msra.mxu0 %v3675
    %4061 = vmatpush.bf16.msra.mxu0 %v3673
    %4062 = vmatpush.bf16.msra.mxu0 %v3671
    %4063 = vmatpush.bf16.msra.mxu0 %v3669
    %4064 = vmatmul.bf16.gmra.mxu0 %v3750
    %v4065 = vpop.f32.mrf.mxu0
    %v4066 = vadd.f32 0.0, %v4065
    %v4067 = vpop.f32.mrf.mxu0
    %4068 = vdwg.mxu0
    %v4069 = vadd.f32 %v4027, %v4053
    %v4070 = vadd.f32 %v4040, %v4066
    %4071 = vmatpush.bf16.msra.mxu0 %v3814
    %4072 = vmatpush.bf16.msra.mxu0 %v3812
    %4073 = vmatpush.bf16.msra.mxu0 %v3810
    %4074 = vmatpush.bf16.msra.mxu0 %v3808
    %4075 = vmatpush.bf16.msra.mxu0 %v3806
    %4076 = vmatpush.bf16.msra.mxu0 %v3804
    %4077 = vmatpush.bf16.msra.mxu0 %v3802
    %4078 = vmatpush.bf16.msra.mxu0 %v3800
    %4079 = vmatmul.bf16.gmra.mxu0 %v3877
    %v4080 = vpop.f32.mrf.mxu0
    %v4081 = vadd.f32 0.0, %v4080
    %v4082 = vpop.f32.mrf.mxu0
    %4083 = vdwg.mxu0
    %4084 = vmatpush.bf16.msra.mxu0 %v3815
    %4085 = vmatpush.bf16.msra.mxu0 %v3813
    %4086 = vmatpush.bf16.msra.mxu0 %v3811
    %4087 = vmatpush.bf16.msra.mxu0 %v3809
    %4088 = vmatpush.bf16.msra.mxu0 %v3807
    %4089 = vmatpush.bf16.msra.mxu0 %v3805
    %4090 = vmatpush.bf16.msra.mxu0 %v3803
    %4091 = vmatpush.bf16.msra.mxu0 %v3801
    %4092 = vmatmul.bf16.gmra.mxu0 %v3877
    %v4093 = vpop.f32.mrf.mxu0
    %v4094 = vadd.f32 0.0, %v4093
    %v4095 = vpop.f32.mrf.mxu0
    %4096 = vdwg.mxu0
    %v4097 = vadd.f32 %v4069, %v4081
    %v4098 = vadd.f32 %v4070, %v4094
    %v4100 = vrot.slane %v3351, 1
    %4102 = vmatpush.bf16.msra.mxu0 %v3941
    %4103 = vmatpush.bf16.msra.mxu0 %v3939
    %4104 = vmatpush.bf16.msra.mxu0 %v3937
    %4105 = vmatpush.bf16.msra.mxu0 %v3935
    %4106 = vmatpush.bf16.msra.mxu0 %v3933
    %4107 = vmatpush.bf16.msra.mxu0 %v3931
    %4108 = vmatpush.bf16.msra.mxu0 %v3929
    %4109 = vmatpush.bf16.msra.mxu0 %v3927
    %4110 = vmatmul.bf16.gmra.mxu0 %v4100
    %v4111 = vpop.f32.mrf.mxu0
    %v4112 = vadd.f32 0.0, %v4111
    %v4113 = vpop.f32.mrf.mxu0
    %4114 = vdwg.mxu0
    %4115 = vmatpush.bf16.msra.mxu0 %v3942
    %4116 = vmatpush.bf16.msra.mxu0 %v3940
    %4117 = vmatpush.bf16.msra.mxu0 %v3938
    %4118 = vmatpush.bf16.msra.mxu0 %v3936
    %4119 = vmatpush.bf16.msra.mxu0 %v3934
    %4120 = vmatpush.bf16.msra.mxu0 %v3932
    %4121 = vmatpush.bf16.msra.mxu0 %v3930
    %4122 = vmatpush.bf16.msra.mxu0 %v3928
    %4123 = vmatmul.bf16.gmra.mxu0 %v4100
    %v4124 = vpop.f32.mrf.mxu0
    %v4125 = vadd.f32 0.0, %v4124
    %v4126 = vpop.f32.mrf.mxu0
    %4127 = vdwg.mxu0
    %v4128 = vadd.f32 %v4097, %v4112
    %v4129 = vadd.f32 %v4098, %v4125
    %v4130 = vadd.f32 %v4128, %v1666
    %v4131 = vadd.f32 %v4129, %v1667
    %v4132 = vmax.f32 %v4130, 0.0
    %v4133 = vmax.f32 %v4131, 0.0
    %v4134 = vmax.f32 %v3989, %v4132
    %v4135 = vmax.f32 %v3990, %v4133
    %v4136 = vmax.f32 %v4134, %v4135
    %v4137 = vpack.c.bf16 %v4136, %v4136
    %v4138 = vld [vmem:[%s5] sm:$0xf]
    %v4139 = vld [vmem:[%s5 + $0x4] sm:$0xf]
    %v4140 = vld [vmem:[%s5 + $0x8] sm:$0xf]
    %v4141 = vld [vmem:[%s5 + $0xc] sm:$0xf]
    %v4142 = vld [vmem:[%s5 + $0x10] sm:$0xf]
    %v4143 = vld [vmem:[%s5 + $0x14] sm:$0xf]
    %v4144 = vld [vmem:[%s5 + $0x18] sm:$0xf]
    %v4145 = vld [vmem:[%s5 + $0x1c] sm:$0xf]
    %v4146 = vld [vmem:[%s5 + $0x20] sm:$0xf]
    %v4147 = vld [vmem:[%s5 + $0x24] sm:$0xf]
    %v4148 = vld [vmem:[%s5 + $0x28] sm:$0xf]
    %v4149 = vld [vmem:[%s5 + $0x2c] sm:$0xf]
    %v4150 = vld [vmem:[%s5 + $0x30] sm:$0xf]
    %v4151 = vld [vmem:[%s5 + $0x34] sm:$0xf]
    %v4152 = vld [vmem:[%s5 + $0x38] sm:$0xf]
    %v4153 = vld [vmem:[%s5 + $0x3c] sm:$0xf]
    %v4154 = vld [vmem:[%s1837] sm:$0xf]
    %v4155 = vld [vmem:[%s1837 + $0x4] sm:$0xf]
    %v4156 = vld [vmem:[%s1837 + $0x8] sm:$0xf]
    %v4157 = vld [vmem:[%s1837 + $0xc] sm:$0xf]
    %v4158 = vld [vmem:[%s1837 + $0x10] sm:$0xf]
    %v4159 = vld [vmem:[%s1837 + $0x14] sm:$0xf]
    %v4160 = vld [vmem:[%s1837 + $0x18] sm:$0xf]
    %v4161 = vld [vmem:[%s1837 + $0x1c] sm:$0xf]
    %v4162 = vld [vmem:[%s1837 + $0x20] sm:$0xf]
    %v4163 = vld [vmem:[%s1837 + $0x24] sm:$0xf]
    %v4164 = vld [vmem:[%s1837 + $0x28] sm:$0xf]
    %v4165 = vld [vmem:[%s1837 + $0x2c] sm:$0xf]
    %v4166 = vld [vmem:[%s1837 + $0x30] sm:$0xf]
    %v4167 = vld [vmem:[%s1837 + $0x34] sm:$0xf]
    %v4168 = vld [vmem:[%s1837 + $0x38] sm:$0xf]
    %v4169 = vld [vmem:[%s1837 + $0x3c] sm:$0xf]
    %v4171 = vshrl.u32 %v4137, 16
    %v4190 = vunpack.c.l.b16 %v4154
    %v4191 = vunpack.c.l.b16 %v4155
    %v4192 = vunpack.c.l.b16 %v4156
    %v4193 = vunpack.c.l.b16 %v4157
    %v4194 = vunpack.c.l.b16 %v4158
    %v4195 = vunpack.c.l.b16 %v4159
    %v4196 = vunpack.c.l.b16 %v4160
    %v4197 = vunpack.c.l.b16 %v4161
    %v4198 = vunpack.c.l.b16 %v4162
    %v4199 = vunpack.c.l.b16 %v4163
    %v4200 = vunpack.c.l.b16 %v4164
    %v4201 = vunpack.c.l.b16 %v4165
    %v4202 = vunpack.c.l.b16 %v4166
    %v4203 = vunpack.c.l.b16 %v4167
    %v4204 = vunpack.c.l.b16 %v4168
    %v4205 = vunpack.c.l.b16 %v4169
    %v4206 = vpack.c.b16 %v4191, %v4190
    %v4207 = vpack.c.b16 %v4193, %v4192
    %v4208 = vpack.c.b16 %v4195, %v4194
    %v4209 = vpack.c.b16 %v4197, %v4196
    %v4210 = vpack.c.b16 %v4199, %v4198
    %v4211 = vpack.c.b16 %v4201, %v4200
    %v4212 = vpack.c.b16 %v4203, %v4202
    %v4213 = vpack.c.b16 %v4205, %v4204
    %4222 = vmatpush.bf16.msra.mxu0 %v4213
    %4223 = vmatpush.bf16.msra.mxu0 %v4212
    %4224 = vmatpush.bf16.msra.mxu0 %v4211
    %4225 = vmatpush.bf16.msra.mxu0 %v4210
    %4226 = vmatpush.bf16.msra.mxu0 %v4209
    %4227 = vmatpush.bf16.msra.mxu0 %v4208
    %4228 = vmatpush.bf16.msra.mxu0 %v4207
    %4229 = vmatpush.bf16.msra.mxu0 %v4206
    %4230 = vmatmul.bf16.gmra.mxu0 %v4171
    %v4231 = vpop.f32.mrf.mxu0
    %v4232 = vadd.f32 0.0, %v4231
    %v4233 = vpop.f32.mrf.mxu0
    %4234 = vdwg.mxu0
    %v4251 = vunpack.c.l.b16 %v4138
    %v4252 = vunpack.c.l.b16 %v4139
    %v4253 = vunpack.c.l.b16 %v4140
    %v4254 = vunpack.c.l.b16 %v4141
    %v4255 = vunpack.c.l.b16 %v4142
    %v4256 = vunpack.c.l.b16 %v4143
    %v4257 = vunpack.c.l.b16 %v4144
    %v4258 = vunpack.c.l.b16 %v4145
    %v4259 = vunpack.c.l.b16 %v4146
    %v4260 = vunpack.c.l.b16 %v4147
    %v4261 = vunpack.c.l.b16 %v4148
    %v4262 = vunpack.c.l.b16 %v4149
    %v4263 = vunpack.c.l.b16 %v4150
    %v4264 = vunpack.c.l.b16 %v4151
    %v4265 = vunpack.c.l.b16 %v4152
    %v4266 = vunpack.c.l.b16 %v4153
    %v4267 = vpack.c.b16 %v4252, %v4251
    %v4268 = vpack.c.b16 %v4254, %v4253
    %v4269 = vpack.c.b16 %v4256, %v4255
    %v4270 = vpack.c.b16 %v4258, %v4257
    %v4271 = vpack.c.b16 %v4260, %v4259
    %v4272 = vpack.c.b16 %v4262, %v4261
    %v4273 = vpack.c.b16 %v4264, %v4263
    %v4274 = vpack.c.b16 %v4266, %v4265
    %4283 = vmatpush.bf16.msra.mxu0 %v4274
    %4284 = vmatpush.bf16.msra.mxu0 %v4273
    %4285 = vmatpush.bf16.msra.mxu0 %v4272
    %4286 = vmatpush.bf16.msra.mxu0 %v4271
    %4287 = vmatpush.bf16.msra.mxu0 %v4270
    %4288 = vmatpush.bf16.msra.mxu0 %v4269
    %4289 = vmatpush.bf16.msra.mxu0 %v4268
    %4290 = vmatpush.bf16.msra.mxu0 %v4267
    %4291 = vmatmul.bf16.gmra.mxu0 %v4137
    %v4292 = vpop.f32.mrf.mxu0
    %v4293 = vadd.f32 %v4232, %v4292
    %v4294 = vpop.f32.mrf.mxu0
    %4295 = vdwg.mxu0
    %v4296 = vld [vmem:[%s1980] sm:$0xf]
    %v4297 = vld [vmem:[%s1980 + $0x4] sm:$0xf]
    %v4298 = vld [vmem:[%s1980 + $0x8] sm:$0xf]
    %v4299 = vld [vmem:[%s1980 + $0xc] sm:$0xf]
    %v4300 = vld [vmem:[%s1980 + $0x10] sm:$0xf]
    %v4301 = vld [vmem:[%s1980 + $0x14] sm:$0xf]
    %v4302 = vld [vmem:[%s1980 + $0x18] sm:$0xf]
    %v4303 = vld [vmem:[%s1980 + $0x1c] sm:$0xf]
    %v4304 = vld [vmem:[%s1980 + $0x20] sm:$0xf]
    %v4305 = vld [vmem:[%s1980 + $0x24] sm:$0xf]
    %v4306 = vld [vmem:[%s1980 + $0x28] sm:$0xf]
    %v4307 = vld [vmem:[%s1980 + $0x2c] sm:$0xf]
    %v4308 = vld [vmem:[%s1980 + $0x30] sm:$0xf]
    %v4309 = vld [vmem:[%s1980 + $0x34] sm:$0xf]
    %v4310 = vld [vmem:[%s1980 + $0x38] sm:$0xf]
    %v4311 = vld [vmem:[%s1980 + $0x3c] sm:$0xf]
    %v4313 = vrot.slane %v4137, 1
    %v4331 = vunpack.c.l.b16 %v4296
    %v4332 = vunpack.c.l.b16 %v4297
    %v4333 = vunpack.c.l.b16 %v4298
    %v4334 = vunpack.c.l.b16 %v4299
    %v4335 = vunpack.c.l.b16 %v4300
    %v4336 = vunpack.c.l.b16 %v4301
    %v4337 = vunpack.c.l.b16 %v4302
    %v4338 = vunpack.c.l.b16 %v4303
    %v4339 = vunpack.c.l.b16 %v4304
    %v4340 = vunpack.c.l.b16 %v4305
    %v4341 = vunpack.c.l.b16 %v4306
    %v4342 = vunpack.c.l.b16 %v4307
    %v4343 = vunpack.c.l.b16 %v4308
    %v4344 = vunpack.c.l.b16 %v4309
    %v4345 = vunpack.c.l.b16 %v4310
    %v4346 = vunpack.c.l.b16 %v4311
    %v4347 = vpack.c.b16 %v4332, %v4331
    %v4348 = vpack.c.b16 %v4334, %v4333
    %v4349 = vpack.c.b16 %v4336, %v4335
    %v4350 = vpack.c.b16 %v4338, %v4337
    %v4351 = vpack.c.b16 %v4340, %v4339
    %v4352 = vpack.c.b16 %v4342, %v4341
    %v4353 = vpack.c.b16 %v4344, %v4343
    %v4354 = vpack.c.b16 %v4346, %v4345
    %4363 = vmatpush.bf16.msra.mxu0 %v4354
    %4364 = vmatpush.bf16.msra.mxu0 %v4353
    %4365 = vmatpush.bf16.msra.mxu0 %v4352
    %4366 = vmatpush.bf16.msra.mxu0 %v4351
    %4367 = vmatpush.bf16.msra.mxu0 %v4350
    %4368 = vmatpush.bf16.msra.mxu0 %v4349
    %4369 = vmatpush.bf16.msra.mxu0 %v4348
    %4370 = vmatpush.bf16.msra.mxu0 %v4347
    %4371 = vmatmul.bf16.gmra.mxu0 %v4313
    %v4372 = vpop.f32.mrf.mxu0
    %v4373 = vadd.f32 0.0, %v4372
    %v4374 = vpop.f32.mrf.mxu0
    %4375 = vdwg.mxu0
    %v4376 = vadd.f32 %v4293, %v4373
    %v4377 = vld [vmem:[%s2062] sm:$0xf]
    %v4378 = vld [vmem:[%s2062 + $0x4] sm:$0xf]
    %v4379 = vld [vmem:[%s2062 + $0x8] sm:$0xf]
    %v4380 = vld [vmem:[%s2062 + $0xc] sm:$0xf]
    %v4381 = vld [vmem:[%s2062 + $0x10] sm:$0xf]
    %v4382 = vld [vmem:[%s2062 + $0x14] sm:$0xf]
    %v4383 = vld [vmem:[%s2062 + $0x18] sm:$0xf]
    %v4384 = vld [vmem:[%s2062 + $0x1c] sm:$0xf]
    %v4385 = vld [vmem:[%s2062 + $0x20] sm:$0xf]
    %v4386 = vld [vmem:[%s2062 + $0x24] sm:$0xf]
    %v4387 = vld [vmem:[%s2062 + $0x28] sm:$0xf]
    %v4388 = vld [vmem:[%s2062 + $0x2c] sm:$0xf]
    %v4389 = vld [vmem:[%s2062 + $0x30] sm:$0xf]
    %v4390 = vld [vmem:[%s2062 + $0x34] sm:$0xf]
    %v4391 = vld [vmem:[%s2062 + $0x38] sm:$0xf]
    %v4392 = vld [vmem:[%s2062 + $0x3c] sm:$0xf]
    %v4393 = vrot.slane %v4171, 1
    %v4411 = vunpack.c.l.b16 %v4377
    %v4412 = vunpack.c.l.b16 %v4378
    %v4413 = vunpack.c.l.b16 %v4379
    %v4414 = vunpack.c.l.b16 %v4380
    %v4415 = vunpack.c.l.b16 %v4381
    %v4416 = vunpack.c.l.b16 %v4382
    %v4417 = vunpack.c.l.b16 %v4383
    %v4418 = vunpack.c.l.b16 %v4384
    %v4419 = vunpack.c.l.b16 %v4385
    %v4420 = vunpack.c.l.b16 %v4386
    %v4421 = vunpack.c.l.b16 %v4387
    %v4422 = vunpack.c.l.b16 %v4388
    %v4423 = vunpack.c.l.b16 %v4389
    %v4424 = vunpack.c.l.b16 %v4390
    %v4425 = vunpack.c.l.b16 %v4391
    %v4426 = vunpack.c.l.b16 %v4392
    %v4427 = vpack.c.b16 %v4412, %v4411
    %v4428 = vpack.c.b16 %v4414, %v4413
    %v4429 = vpack.c.b16 %v4416, %v4415
    %v4430 = vpack.c.b16 %v4418, %v4417
    %v4431 = vpack.c.b16 %v4420, %v4419
    %v4432 = vpack.c.b16 %v4422, %v4421
    %v4433 = vpack.c.b16 %v4424, %v4423
    %v4434 = vpack.c.b16 %v4426, %v4425
    %4443 = vmatpush.bf16.msra.mxu0 %v4434
    %4444 = vmatpush.bf16.msra.mxu0 %v4433
    %4445 = vmatpush.bf16.msra.mxu0 %v4432
    %4446 = vmatpush.bf16.msra.mxu0 %v4431
    %4447 = vmatpush.bf16.msra.mxu0 %v4430
    %4448 = vmatpush.bf16.msra.mxu0 %v4429
    %4449 = vmatpush.bf16.msra.mxu0 %v4428
    %4450 = vmatpush.bf16.msra.mxu0 %v4427
    %4451 = vmatmul.bf16.gmra.mxu0 %v4393
    %v4452 = vpop.f32.mrf.mxu0
    %v4453 = vadd.f32 0.0, %v4452
    %v4454 = vpop.f32.mrf.mxu0
    %4455 = vdwg.mxu0
    %v4456 = vadd.f32 %v4376, %v4453
    %v4457 = vld [vmem:[%s2143] sm:$0xf]
    %v4458 = vld [vmem:[%s2143 + $0x4] sm:$0xf]
    %v4459 = vld [vmem:[%s2143 + $0x8] sm:$0xf]
    %v4460 = vld [vmem:[%s2143 + $0xc] sm:$0xf]
    %v4461 = vld [vmem:[%s2143 + $0x10] sm:$0xf]
    %v4462 = vld [vmem:[%s2143 + $0x14] sm:$0xf]
    %v4463 = vld [vmem:[%s2143 + $0x18] sm:$0xf]
    %v4464 = vld [vmem:[%s2143 + $0x1c] sm:$0xf]
    %v4465 = vld [vmem:[%s2143 + $0x20] sm:$0xf]
    %v4466 = vld [vmem:[%s2143 + $0x24] sm:$0xf]
    %v4467 = vld [vmem:[%s2143 + $0x28] sm:$0xf]
    %v4468 = vld [vmem:[%s2143 + $0x2c] sm:$0xf]
    %v4469 = vld [vmem:[%s2143 + $0x30] sm:$0xf]
    %v4470 = vld [vmem:[%s2143 + $0x34] sm:$0xf]
    %v4471 = vld [vmem:[%s2143 + $0x38] sm:$0xf]
    %v4472 = vld [vmem:[%s2143 + $0x3c] sm:$0xf]
    %v4473 = vrot.slane %v4137, 2
    %v4491 = vunpack.c.l.b16 %v4457
    %v4492 = vunpack.c.l.b16 %v4458
    %v4493 = vunpack.c.l.b16 %v4459
    %v4494 = vunpack.c.l.b16 %v4460
    %v4495 = vunpack.c.l.b16 %v4461
    %v4496 = vunpack.c.l.b16 %v4462
    %v4497 = vunpack.c.l.b16 %v4463
    %v4498 = vunpack.c.l.b16 %v4464
    %v4499 = vunpack.c.l.b16 %v4465
    %v4500 = vunpack.c.l.b16 %v4466
    %v4501 = vunpack.c.l.b16 %v4467
    %v4502 = vunpack.c.l.b16 %v4468
    %v4503 = vunpack.c.l.b16 %v4469
    %v4504 = vunpack.c.l.b16 %v4470
    %v4505 = vunpack.c.l.b16 %v4471
    %v4506 = vunpack.c.l.b16 %v4472
    %v4507 = vpack.c.b16 %v4492, %v4491
    %v4508 = vpack.c.b16 %v4494, %v4493
    %v4509 = vpack.c.b16 %v4496, %v4495
    %v4510 = vpack.c.b16 %v4498, %v4497
    %v4511 = vpack.c.b16 %v4500, %v4499
    %v4512 = vpack.c.b16 %v4502, %v4501
    %v4513 = vpack.c.b16 %v4504, %v4503
    %v4514 = vpack.c.b16 %v4506, %v4505
    %4523 = vmatpush.bf16.msra.mxu0 %v4514
    %4524 = vmatpush.bf16.msra.mxu0 %v4513
    %4525 = vmatpush.bf16.msra.mxu0 %v4512
    %4526 = vmatpush.bf16.msra.mxu0 %v4511
    %4527 = vmatpush.bf16.msra.mxu0 %v4510
    %4528 = vmatpush.bf16.msra.mxu0 %v4509
    %4529 = vmatpush.bf16.msra.mxu0 %v4508
    %4530 = vmatpush.bf16.msra.mxu0 %v4507
    %4531 = vmatmul.bf16.gmra.mxu0 %v4473
    %v4532 = vpop.f32.mrf.mxu0
    %v4533 = vadd.f32 0.0, %v4532
    %v4534 = vpop.f32.mrf.mxu0
    %4535 = vdwg.mxu0
    %v4536 = vadd.f32 %v4456, %v4533
    %v4537 = vadd.f32 %v4536, %v42
    %v4538 = vmax.f32 %v4537, 0.0
    %v4539 = vpack.c.bf16 %v4538, %v4538
    %v4540 = vld [vmem:[%s7] sm:$0xf]
    %v4541 = vld [vmem:[%s7 + $0x4] sm:$0xf]
    %v4542 = vld [vmem:[%s7 + $0x8] sm:$0xf]
    %v4543 = vld [vmem:[%s7 + $0xc] sm:$0xf]
    %v4544 = vld [vmem:[%s7 + $0x10] sm:$0xf]
    %v4545 = vld [vmem:[%s7 + $0x14] sm:$0xf]
    %v4546 = vld [vmem:[%s7 + $0x18] sm:$0xf]
    %v4547 = vld [vmem:[%s7 + $0x1c] sm:$0xf]
    %v4548 = vld [vmem:[%s7 + $0x20] sm:$0xf]
    %v4549 = vld [vmem:[%s7 + $0x24] sm:$0xf]
    %v4550 = vld [vmem:[%s7 + $0x28] sm:$0xf]
    %v4551 = vld [vmem:[%s7 + $0x2c] sm:$0xf]
    %v4552 = vld [vmem:[%s7 + $0x30] sm:$0xf]
    %v4553 = vld [vmem:[%s7 + $0x34] sm:$0xf]
    %v4554 = vld [vmem:[%s7 + $0x38] sm:$0xf]
    %v4570 = vunpack.c.l.b16 %v4540
    %v4571 = vunpack.c.l.b16 %v4541
    %v4572 = vunpack.c.l.b16 %v4542
    %v4573 = vunpack.c.l.b16 %v4543
    %v4574 = vunpack.c.l.b16 %v4544
    %v4575 = vunpack.c.l.b16 %v4545
    %v4576 = vunpack.c.l.b16 %v4546
    %v4577 = vunpack.c.l.b16 %v4547
    %v4578 = vunpack.c.l.b16 %v4548
    %v4579 = vunpack.c.l.b16 %v4549
    %v4580 = vunpack.c.l.b16 %v4550
    %v4581 = vunpack.c.l.b16 %v4551
    %v4582 = vunpack.c.l.b16 %v4552
    %v4583 = vunpack.c.l.b16 %v4553
    %v4584 = vunpack.c.l.b16 %v4554
    %v4585 = vpack.c.b16 %v4571, %v4570
    %v4586 = vpack.c.b16 %v4573, %v4572
    %v4587 = vpack.c.b16 %v4575, %v4574
    %v4588 = vpack.c.b16 %v4577, %v4576
    %v4589 = vpack.c.b16 %v4579, %v4578
    %v4590 = vpack.c.b16 %v4581, %v4580
    %v4591 = vpack.c.b16 %v4583, %v4582
    %v4592 = vpack.c.b16 %v4584, %v4584
    %v4601 = vsel %vm2287, %v4539, 0
    %v4604 = vsel %vm2291, %v4592, 0
    %4606 = vmatpush.bf16.msra.mxu0 %v4604
    %4607 = vmatpush.bf16.msra.mxu0 %v4591
    %4608 = vmatpush.bf16.msra.mxu0 %v4590
    %4609 = vmatpush.bf16.msra.mxu0 %v4589
    %4610 = vmatpush.bf16.msra.mxu0 %v4588
    %4611 = vmatpush.bf16.msra.mxu0 %v4587
    %4612 = vmatpush.bf16.msra.mxu0 %v4586
    %4613 = vmatpush.bf16.msra.mxu0 %v4585
    %4614 = vmatmul.bf16.gmra.mxu0 %v4601
    %v4615 = vpop.f32.mrf.mxu0
    %v4616 = vadd.f32 %v43, %v4615
    %v4617 = vpop.f32.mrf.mxu0
    %4618 = vdwg.mxu0
    %v4619 = vmax.f32 %v4616, 0.0
    %v4620 = vpack.c.bf16 %v4619, %v4619
    %v4621 = vld [vmem:[%s9] sm:$0xf]
    %v4622 = vld [vmem:[%s9 + $0x4] sm:$0xf]
    %v4623 = vld [vmem:[%s9 + $0x8] sm:$0xf]
    %v4624 = vld [vmem:[%s9 + $0xc] sm:$0xf]
    %v4625 = vld [vmem:[%s9 + $0x10] sm:$0xf]
    %v4626 = vld [vmem:[%s9 + $0x14] sm:$0xf]
    %v4627 = vld [vmem:[%s9 + $0x18] sm:$0xf]
    %v4628 = vld [vmem:[%s9 + $0x1c] sm:$0xf]
    %v4629 = vld [vmem:[%s9 + $0x20] sm:$0xf]
    %v4630 = vld [vmem:[%s9 + $0x24] sm:$0xf]
    %v4631 = vld [vmem:[%s9 + $0x28] sm:$0xf]
    %v4632 = vld [vmem:[%s9 + $0x2c] sm:$0x1]
    %v4645 = vunpack.c.l.b16 %v4621
    %v4646 = vunpack.c.l.b16 %v4622
    %v4647 = vunpack.c.l.b16 %v4623
    %v4648 = vunpack.c.l.b16 %v4624
    %v4649 = vunpack.c.l.b16 %v4625
    %v4650 = vunpack.c.l.b16 %v4626
    %v4651 = vunpack.c.l.b16 %v4627
    %v4652 = vunpack.c.l.b16 %v4628
    %v4653 = vunpack.c.l.b16 %v4629
    %v4654 = vunpack.c.l.b16 %v4630
    %v4655 = vunpack.c.l.b16 %v4631
    %v4656 = vunpack.c.l.b16 %v4632
    %v4657 = vpack.c.b16 %v4646, %v4645
    %v4658 = vpack.c.b16 %v4648, %v4647
    %v4659 = vpack.c.b16 %v4650, %v4649
    %v4660 = vpack.c.b16 %v4652, %v4651
    %v4661 = vpack.c.b16 %v4654, %v4653
    %v4662 = vpack.c.b16 %v4656, %v4655
    %v4669 = vsel %vm2357, %v4620, 0
    %v4672 = vsel %vm2361, %v4662, 0
    %4674 = vmatpush.bf16.msra.mxu0 0
    %4675 = vmatpush.bf16.msra.mxu0 0
    %4676 = vmatpush.bf16.msra.mxu0 %v4672
    %4677 = vmatpush.bf16.msra.mxu0 %v4661
    %4678 = vmatpush.bf16.msra.mxu0 %v4660
    %4679 = vmatpush.bf16.msra.mxu0 %v4659
    %4680 = vmatpush.bf16.msra.mxu0 %v4658
    %4681 = vmatpush.bf16.msra.mxu0 %v4657
    %4682 = vmatmul.bf16.gmra.mxu0 %v4669
    %v4683 = vpop.f32.mrf.mxu0
    %v4684 = vadd.f32 %v44, %v4683
    %v4685 = vpop.f32.mrf.mxu0
    %4686 = vdwg.mxu0
    %4687 = vst.msk [vmem:[#allocation2 + $0x1] sm:$0x1] %vm2378, %v4684
    // Predicated region
    $region46: #{convnet_forward.1} parent=1 // pred_check
      _
    $region47: #{convnet_forward.1} parent=1 // pred_check_branch
      %4689 = sbr.rel (0) target = $region49
    $region48: #{convnet_forward.1} parent=1 // pred_region
      %4691 = vsyncadd [#allocation3], 0
      %s4693 = sshll.u32 [#allocation2], 4
      %s4694 = int_to_ptr.vmem [resolvable:$true] %s4693
      %s4695 = sshll.u32 %s11, 4
      %s4696 = int_to_ptr.hbm [resolvable:$true] %s4695
      %4698 = dma.vmem_to_hbm [thread:$0]  %s4694, 32, %s4696, [#allocation3]
    $region49: #{convnet_forward.1} parent=1 // pred_fallthru
      _
    // Predicated region
    $region50: #{convnet_forward.1} parent=1 // pred_check
      _
    $region51: #{convnet_forward.1} parent=1 // pred_check_branch
      %4700 = sbr.rel (0) target = $region53
    $region52: #{convnet_forward.1} parent=1 // pred_region
      %4702 = dma.done [#allocation3], 32
    $region53: #{convnet_forward.1} parent=1 // pred_fallthru
      _
    %4703 = vsyncpa [#allocation3], 1

</llo_original>
